<compile_context>
chip_gen: v7x
topology: tpu7x:2x2x1
jax: 0.10.0
libtpu: 0.0.40
codegen_flags: <defaults>
</compile_context>

<pallas_src>
import functools

import jax
import jax.numpy as jnp
from jax.experimental import pallas as pl
from jax.experimental.pallas import tpu as pltpu


# Architecture constants (fixed by the PyTorch module).
_LAYER_COUT = (64, 128, 256, 512, 1)
_LAYER_STRIDE = (2, 2, 2, 1, 1)
_KSIZE = 4
_PAD = 1
_NEG_SLOPE = 0.2


def _round_up(x, m):
    return (x + m - 1) // m * m


# ---------------------------------------------------------------------------
# Pallas kernels: tiled (patches @ weight) with fused activation epilogue
# ---------------------------------------------------------------------------
def _mm_lrelu_kernel(p_ref, w_ref, o_ref, acc_ref, *, negative_slope):
    k = pl.program_id(2)

    @pl.when(k == 0)
    def _init():
        acc_ref[...] = jnp.zeros_like(acc_ref)

    acc_ref[...] += jnp.dot(p_ref[...], w_ref[...],
                            preferred_element_type=jnp.float32)

    @pl.when(k == pl.num_programs(2) - 1)
    def _store():
        acc = acc_ref[...]
        o_ref[...] = jnp.where(acc >= 0.0, acc, negative_slope * acc)


def _mm_final_kernel(p_ref, w_ref, feat_ref, pred_ref, acc_ref):
    k = pl.program_id(2)

    @pl.when(k == 0)
    def _init():
        acc_ref[...] = jnp.zeros_like(acc_ref)

    acc_ref[...] += jnp.dot(p_ref[...], w_ref[...],
                            preferred_element_type=jnp.float32)

    @pl.when(k == pl.num_programs(2) - 1)
    def _store():
        acc = acc_ref[...]
        feat_ref[...] = acc
        # Numerically stable sigmoid: sigma(x) = 0.5 * (tanh(x/2) + 1).
        pred_ref[...] = 0.5 * (jnp.tanh(0.5 * acc) + 1.0)


def _tiled_conv_matmul(patches, weight, *, final):
    """patches: (M, K) bf16,  weight: (K, N) bf16 with N a multiple of 128."""
    M, K = patches.shape
    Kw, N = weight.shape
    assert K == Kw, (K, Kw)

    # Generation-friendly tiles: multiples of (8, 128), up to 256x256 output
    # tiles and 512-deep K steps -> < 2 MiB double-buffered working set.
    tm = min(256, _round_up(M, 8))
    tn = min(256, _round_up(N, 128))
    tk = min(512, _round_up(K, 128))
    Mp, Np, Kp = _round_up(M, tm), _round_up(N, tn), _round_up(K, tk)

    p = patches
    if (Mp, Kp) != (M, K):
        p = jnp.pad(p, ((0, Mp - M), (0, Kp - K)))
    w = weight
    if (Kp, Np) != (K, N):
        w = jnp.pad(w, ((0, Kp - K), (0, Np - N)))

    grid = (Mp // tm, Np // tn, Kp // tk)
    in_specs = [pl.BlockSpec((tm, tk), lambda i, j, k: (i, k)),
                pl.BlockSpec((tk, tn), lambda i, j, k: (k, j))]
    out_spec = pl.BlockSpec((tm, tn), lambda i, j, k: (i, j))
    scratch = [pltpu.VMEM((tm, tn), jnp.float32)]
    cparams = pltpu.CompilerParams(
        dimension_semantics=("parallel", "parallel", "arbitrary"))

    if not final:
        out = pl.pallas_call(
            functools.partial(_mm_lrelu_kernel, negative_slope=_NEG_SLOPE),
            out_shape=jax.ShapeDtypeStruct((Mp, Np), jnp.float32),
            grid_spec=pltpu.PrefetchScalarGridSpec(
                num_scalar_prefetch=0, grid=grid,
                in_specs=in_specs, out_specs=out_spec,
                scratch_shapes=scratch),
            compiler_params=cparams,
        )(p, w)
        return out[:M, :N]

    feat, pred = pl.pallas_call(
        _mm_final_kernel,
        out_shape=(jax.ShapeDtypeStruct((Mp, Np), jnp.float32),
                   jax.ShapeDtypeStruct((Mp, Np), jnp.float32)),
        grid_spec=pltpu.PrefetchScalarGridSpec(
            num_scalar_prefetch=0, grid=grid,
            in_specs=in_specs, out_specs=(out_spec, out_spec),
            scratch_shapes=scratch),
        compiler_params=cparams,
    )(p, w)
    return feat[:M, :N], pred[:M, :N]


# ---------------------------------------------------------------------------
# Glue: im2col patch extraction (NHWC, bf16), hoisted spectral-norm weight prep
# ---------------------------------------------------------------------------
def _im2col(x_nhwc, k, stride, padding):
    # x_nhwc: (B, H, W, C) -> patches (B*Ho*Wo, k*k*C), ordering (kh, kw, Cin).
    # TODO(synk): the 4x4 im2col still duplicates activations ~16x in HBM;
    # an in-kernel shifted-window accumulation over a kh*kw grid axis would
    # remove it but needs strided BlockSpec windows (not expressible today).
    x = jnp.pad(x_nhwc, ((0, 0), (padding, padding), (padding, padding), (0, 0)))
    B, Hp, Wp, C = x.shape
    Ho = (Hp - k) // stride + 1
    Wo = (Wp - k) // stride + 1
    cols = []
    for i in range(k):
        for j in range(k):
            cols.append(x[:, i:i + stride * Ho:stride, j:j + stride * Wo:stride, :])
    patches = jnp.stack(cols, axis=3)                     # (B, Ho, Wo, k*k, C)
    return patches.reshape(B * Ho * Wo, k * k * C), (B, Ho, Wo)


def prepare_discriminator_weights(params):
    """One-time prep (hoisted off the forward path): spectral-normalize
    (exact sigma via SVD -- the fixed point of PyTorch's power iteration),
    reshape (Cout,Cin,kh,kw) -> (kh*kw*Cin, Cout) to match im2col ordering,
    pad Cout to a multiple of 128 (lane-dense stores), cast to bf16."""
    prepped = []
    for w_oihw in params:
        cout = w_oihw.shape[0]
        w2d = w_oihw.reshape(cout, -1)
        sigma = jnp.linalg.svd(w2d, compute_uv=False)[0]
        w_sn = w_oihw / sigma
        w_mm = jnp.transpose(w_sn, (2, 3, 1, 0)).reshape(-1, cout)
        n_pad = _round_up(cout, 128)
        if n_pad != cout:
            w_mm = jnp.pad(w_mm, ((0, 0), (0, n_pad - cout)))
        prepped.append(w_mm.astype(jnp.bfloat16))
    return prepped


def _conv_layer_lrelu(x_nhwc, w2d, *, cout, stride):
    patches, (B, Ho, Wo) = _im2col(x_nhwc.astype(jnp.bfloat16),
                                   k=_KSIZE, stride=stride, padding=_PAD)
    out = _tiled_conv_matmul(patches, w2d, final=False)
    return out[:, :cout].reshape(B, Ho, Wo, cout)


def _conv_layer_final(x_nhwc, w2d, *, cout, stride):
    patches, (B, Ho, Wo) = _im2col(x_nhwc.astype(jnp.bfloat16),
                                   k=_KSIZE, stride=stride, padding=_PAD)
    feat, pred = _tiled_conv_matmul(patches, w2d, final=True)
    return (feat[:, :cout].reshape(B, Ho, Wo, cout),
            pred[:, :cout].reshape(B, Ho, Wo, cout))


# ---------------------------------------------------------------------------
# Discriminator: parameter init + forward
# ---------------------------------------------------------------------------
def init_discriminator_params(key, in_channels):
    cins = (in_channels,) + _LAYER_COUT[:-1]
    keys = jax.random.split(key, len(_LAYER_COUT))
    params = []
    for kk, cin, cout in zip(keys, cins, _LAYER_COUT):
        # nn.init.normal_(w, 0.0, 0.02); bias=False everywhere.
        params.append(0.02 * jax.random.normal(kk, (cout, cin, _KSIZE, _KSIZE),
                                               jnp.float32))
    return params


def discriminator_forward(prepped_weights, x_nchw):
    # x_nchw: (B, C, H, W) float32 — same convention as the PyTorch module.
    x = jnp.transpose(x_nchw, (0, 2, 3, 1))              # -> NHWC
    feats_nhwc = []
    for li in range(4):
        x = _conv_layer_lrelu(x, prepped_weights[li],
                              cout=_LAYER_COUT[li], stride=_LAYER_STRIDE[li])
        feats_nhwc.append(x)                             # f32 feature map
    # TODO(synk): layers 4/5 (M=18/8 rows) could be fused into one pallas_call
    # to drop a launch; kept separate for lowering robustness.
    feat5, pred = _conv_layer_final(x, prepped_weights[4],
                                    cout=_LAYER_COUT[4], stride=_LAYER_STRIDE[4])
    feats_nhwc.append(feat5)

    to_nchw = lambda a: jnp.transpose(a, (0, 3, 1, 2))
    features = [to_nchw(f) for f in feats_nhwc]
    return to_nchw(pred), features


if __name__ == "__main__":
    key = jax.random.PRNGKey(0)
    k_param, k_x = jax.random.split(key)

    in_channels = 4
    # Smallest spatial size that keeps all five 4x4 convs valid is 32.
    x = jax.random.normal(k_x, (2, in_channels, 32, 32), jnp.float32)

    params = init_discriminator_params(k_param, in_channels)
    # Spectral norm hoisted off the per-forward critical path.
    prepped = prepare_discriminator_weights(params)

    fwd = jax.jit(discriminator_forward)
    prediction, feats = fwd(prepped, x)
    jax.block_until_ready(prediction)
    jax.block_until_ready(feats)

    expected = [(2, 64, 16, 16), (2, 128, 8, 8), (2, 256, 4, 4),
                (2, 512, 3, 3), (2, 1, 2, 2)]
    assert prediction.shape == (2, 1, 2, 2), prediction.shape
    for f, s in zip(feats, expected):
        assert f.shape == s, (f.shape, s)
    assert bool(jnp.all((prediction >= 0.0) & (prediction <= 1.0)))
    assert bool(jnp.all(jnp.isfinite(prediction)))

    print("KERNEL_OK")
</pallas_src>

<mosaic_0001>
module attributes {stable_mosaic.version = 11 : i64} {
  func.func @_mm_lrelu_kernel(%arg0: i32, %arg1: i32, %arg2: i32, %arg3: memref<256x128xbf16, #tpu.memory_space<vmem>>, %arg4: memref<128x128xbf16, #tpu.memory_space<vmem>>, %arg5: memref<256x128xf32, #tpu.memory_space<vmem>>, %arg6: memref<256x128xf32, #tpu.memory_space<vmem>>) attributes {dimension_semantics = [#tpu.dimension_semantics<parallel>, #tpu.dimension_semantics<parallel>, #tpu.dimension_semantics<arbitrary>], iteration_bounds = array<i64: 2, 1, 1>, scalar_prefetch = 0 : i64, scratch_operands = 1 : i64, tpu.core_type = #tpu.core_type<tc>, window_params = [{transform_indices = @transform_0, window_bounds = array<i64: 256, 128>}, {transform_indices = @transform_1, window_bounds = array<i64: 128, 128>}, {transform_indices = @transform_2, window_bounds = array<i64: 256, 128>}]} {
    %c0_i32 = arith.constant 0 : i32
    %0 = arith.cmpi eq, %arg2, %c0_i32 : i32
    %1 = arith.extui %0 : i1 to i32
    %c0_i32_0 = arith.constant 0 : i32
    %2 = arith.cmpi ne, %1, %c0_i32_0 : i32
    scf.if %2 {
      %cst_10 = arith.constant 0.000000e+00 : f32
      %12 = vector.broadcast %cst_10 : f32 to vector<256x128xf32>
      %c0_11 = arith.constant 0 : index
      %c0_12 = arith.constant 0 : index
      %13 = vector.load %arg6[%c0_11, %c0_12] : memref<256x128xf32, #tpu.memory_space<vmem>>, vector<256x128xf32>
      tpu.vector_store %arg6[%c0_11, %c0_12], %12 {strides = array<i32>} : memref<256x128xf32, #tpu.memory_space<vmem>>, vector<256x128xf32>,
    } else {
    }
    %c0 = arith.constant 0 : index
    %c0_1 = arith.constant 0 : index
    %3 = vector.load %arg6[%c0, %c0_1] : memref<256x128xf32, #tpu.memory_space<vmem>>, vector<256x128xf32>
    %c0_2 = arith.constant 0 : index
    %c0_3 = arith.constant 0 : index
    %4 = vector.load %arg3[%c0_2, %c0_3] : memref<256x128xbf16, #tpu.memory_space<vmem>>, vector<256x128xbf16>
    %c0_4 = arith.constant 0 : index
    %c0_5 = arith.constant 0 : index
    %5 = vector.load %arg4[%c0_4, %c0_5] : memref<128x128xbf16, #tpu.memory_space<vmem>>, vector<128x128xbf16>
    %cst = arith.constant dense<0.000000e+00> : vector<256x128xf32>
    %6 = tpu.matmul %4, %5, %cst {dimension_numbers = #tpu.dot_dimension_numbers<[1], [0], [0], [1], [0, 0, 1, 1], [], []>} : vector<256x128xbf16>, vector<128x128xbf16>, vector<256x128xf32> -> vector<256x128xf32>
    %7 = arith.addf %3, %6 : vector<256x128xf32>
    %c0_6 = arith.constant 0 : index
    %c0_7 = arith.constant 0 : index
    %8 = vector.load %arg6[%c0_6, %c0_7] : memref<256x128xf32, #tpu.memory_space<vmem>>, vector<256x128xf32>
    tpu.vector_store %arg6[%c0_6, %c0_7], %7 {strides = array<i32>} : memref<256x128xf32, #tpu.memory_space<vmem>>, vector<256x128xf32>,
    %c0_i32_8 = arith.constant 0 : i32
    %9 = arith.cmpi eq, %arg2, %c0_i32_8 : i32
    %10 = arith.extui %9 : i1 to i32
    %c0_i32_9 = arith.constant 0 : i32
    %11 = arith.cmpi ne, %10, %c0_i32_9 : i32
    scf.if %11 {
      %c0_10 = arith.constant 0 : index
      %c0_11 = arith.constant 0 : index
      %12 = vector.load %arg6[%c0_10, %c0_11] : memref<256x128xf32, #tpu.memory_space<vmem>>, vector<256x128xf32>
      %cst_12 = arith.constant 0.000000e+00 : f32
      %13 = vector.broadcast %cst_12 : f32 to vector<256x128xf32>
      %14 = arith.cmpf oge, %12, %13 : vector<256x128xf32>
      %cst_13 = arith.constant 2.000000e-01 : f32
      %15 = vector.broadcast %cst_13 : f32 to vector<256x128xf32>
      %16 = arith.mulf %15, %12 : vector<256x128xf32>
      %17 = arith.select %14, %12, %16 : vector<256x128xi1>, vector<256x128xf32>
      %c0_14 = arith.constant 0 : index
      %c0_15 = arith.constant 0 : index
      %18 = vector.load %arg5[%c0_14, %c0_15] : memref<256x128xf32, #tpu.memory_space<vmem>>, vector<256x128xf32>
      tpu.vector_store %arg5[%c0_14, %c0_15], %17 {strides = array<i32>} : memref<256x128xf32, #tpu.memory_space<vmem>>, vector<256x128xf32>,
    } else {
    }
    return
  }
  func.func @transform_0(%arg0: i32, %arg1: i32, %arg2: i32) -> (i32, i32) {
    %c0_i32 = arith.constant 0 : i32
    return %arg0, %arg2 : i32, i32
  }
  func.func @transform_1(%arg0: i32, %arg1: i32, %arg2: i32) -> (i32, i32) {
    %c0_i32 = arith.constant 0 : i32
    return %arg2, %arg1 : i32, i32
  }
  func.func @transform_2(%arg0: i32, %arg1: i32, %arg2: i32) -> (i32, i32) {
    %c0_i32 = arith.constant 0 : i32
    return %arg0, %arg1 : i32, i32
  }
}

module attributes {stable_mosaic.version = 11 : i64} {
  func.func @_mm_lrelu_kernel(%arg0: i32, %arg1: i32, %arg2: i32, %arg3: memref<128x512xbf16, #tpu.memory_space<vmem>>, %arg4: memref<512x128xbf16, #tpu.memory_space<vmem>>, %arg5: memref<128x128xf32, #tpu.memory_space<vmem>>, %arg6: memref<128x128xf32, #tpu.memory_space<vmem>>) attributes {dimension_semantics = [#tpu.dimension_semantics<parallel>, #tpu.dimension_semantics<parallel>, #tpu.dimension_semantics<arbitrary>], iteration_bounds = array<i64: 1, 1, 2>, scalar_prefetch = 0 : i64, scratch_operands = 1 : i64, tpu.core_type = #tpu.core_type<tc>, window_params = [{transform_indices = @transform_0, window_bounds = array<i64: 128, 512>}, {transform_indices = @transform_1, window_bounds = array<i64: 512, 128>}, {transform_indices = @transform_2, window_bounds = array<i64: 128, 128>}]} {
    %c0_i32 = arith.constant 0 : i32
    %0 = arith.cmpi eq, %arg2, %c0_i32 : i32
    %1 = arith.extui %0 : i1 to i32
    %c0_i32_0 = arith.constant 0 : i32
    %2 = arith.cmpi ne, %1, %c0_i32_0 : i32
    scf.if %2 {
      %cst_9 = arith.constant 0.000000e+00 : f32
      %12 = vector.broadcast %cst_9 : f32 to vector<128x128xf32>
      %c0_10 = arith.constant 0 : index
      %c0_11 = arith.constant 0 : index
      %13 = vector.load %arg6[%c0_10, %c0_11] : memref<128x128xf32, #tpu.memory_space<vmem>>, vector<128x128xf32>
      tpu.vector_store %arg6[%c0_10, %c0_11], %12 {strides = array<i32>} : memref<128x128xf32, #tpu.memory_space<vmem>>, vector<128x128xf32>,
    } else {
    }
    %c0 = arith.constant 0 : index
    %c0_1 = arith.constant 0 : index
    %3 = vector.load %arg6[%c0, %c0_1] : memref<128x128xf32, #tpu.memory_space<vmem>>, vector<128x128xf32>
    %c0_2 = arith.constant 0 : index
    %c0_3 = arith.constant 0 : index
    %4 = vector.load %arg3[%c0_2, %c0_3] : memref<128x512xbf16, #tpu.memory_space<vmem>>, vector<128x512xbf16>
    %c0_4 = arith.constant 0 : index
    %c0_5 = arith.constant 0 : index
    %5 = vector.load %arg4[%c0_4, %c0_5] : memref<512x128xbf16, #tpu.memory_space<vmem>>, vector<512x128xbf16>
    %cst = arith.constant dense<0.000000e+00> : vector<128x128xf32>
    %6 = tpu.matmul %4, %5, %cst {dimension_numbers = #tpu.dot_dimension_numbers<[1], [0], [0], [1], [0, 0, 1, 1], [], []>} : vector<128x512xbf16>, vector<512x128xbf16>, vector<128x128xf32> -> vector<128x128xf32>
    %7 = arith.addf %3, %6 : vector<128x128xf32>
    %c0_6 = arith.constant 0 : index
    %c0_7 = arith.constant 0 : index
    %8 = vector.load %arg6[%c0_6, %c0_7] : memref<128x128xf32, #tpu.memory_space<vmem>>, vector<128x128xf32>
    tpu.vector_store %arg6[%c0_6, %c0_7], %7 {strides = array<i32>} : memref<128x128xf32, #tpu.memory_space<vmem>>, vector<128x128xf32>,
    %c1_i32 = arith.constant 1 : i32
    %9 = arith.cmpi eq, %arg2, %c1_i32 : i32
    %10 = arith.extui %9 : i1 to i32
    %c0_i32_8 = arith.constant 0 : i32
    %11 = arith.cmpi ne, %10, %c0_i32_8 : i32
    scf.if %11 {
      %c0_9 = arith.constant 0 : index
      %c0_10 = arith.constant 0 : index
      %12 = vector.load %arg6[%c0_9, %c0_10] : memref<128x128xf32, #tpu.memory_space<vmem>>, vector<128x128xf32>
      %cst_11 = arith.constant 0.000000e+00 : f32
      %13 = vector.broadcast %cst_11 : f32 to vector<128x128xf32>
      %14 = arith.cmpf oge, %12, %13 : vector<128x128xf32>
      %cst_12 = arith.constant 2.000000e-01 : f32
      %15 = vector.broadcast %cst_12 : f32 to vector<128x128xf32>
      %16 = arith.mulf %15, %12 : vector<128x128xf32>
      %17 = arith.select %14, %12, %16 : vector<128x128xi1>, vector<128x128xf32>
      %c0_13 = arith.constant 0 : index
      %c0_14 = arith.constant 0 : index
      %18 = vector.load %arg5[%c0_13, %c0_14] : memref<128x128xf32, #tpu.memory_space<vmem>>, vector<128x128xf32>
      tpu.vector_store %arg5[%c0_13, %c0_14], %17 {strides = array<i32>} : memref<128x128xf32, #tpu.memory_space<vmem>>, vector<128x128xf32>,
    } else {
    }
    return
  }
  func.func @transform_0(%arg0: i32, %arg1: i32, %arg2: i32) -> (i32, i32) {
    %c0_i32 = arith.constant 0 : i32
    return %arg0, %arg2 : i32, i32
  }
  func.func @transform_1(%arg0: i32, %arg1: i32, %arg2: i32) -> (i32, i32) {
    %c0_i32 = arith.constant 0 : i32
    return %arg2, %arg1 : i32, i32
  }
  func.func @transform_2(%arg0: i32, %arg1: i32, %arg2: i32) -> (i32, i32) {
    %c0_i32 = arith.constant 0 : i32
    return %arg0, %arg1 : i32, i32
  }
}

module attributes {stable_mosaic.version = 11 : i64} {
  func.func @_mm_lrelu_kernel(%arg0: i32, %arg1: i32, %arg2: i32, %arg3: memref<32x512xbf16, #tpu.memory_space<vmem>>, %arg4: memref<512x256xbf16, #tpu.memory_space<vmem>>, %arg5: memref<32x256xf32, #tpu.memory_space<vmem>>, %arg6: memref<32x256xf32, #tpu.memory_space<vmem>>) attributes {dimension_semantics = [#tpu.dimension_semantics<parallel>, #tpu.dimension_semantics<parallel>, #tpu.dimension_semantics<arbitrary>], iteration_bounds = array<i64: 1, 1, 4>, scalar_prefetch = 0 : i64, scratch_operands = 1 : i64, tpu.core_type = #tpu.core_type<tc>, window_params = [{transform_indices = @transform_0, window_bounds = array<i64: 32, 512>}, {transform_indices = @transform_1, window_bounds = array<i64: 512, 256>}, {transform_indices = @transform_2, window_bounds = array<i64: 32, 256>}]} {
    %c0_i32 = arith.constant 0 : i32
    %0 = arith.cmpi eq, %arg2, %c0_i32 : i32
    %1 = arith.extui %0 : i1 to i32
    %c0_i32_0 = arith.constant 0 : i32
    %2 = arith.cmpi ne, %1, %c0_i32_0 : i32
    scf.if %2 {
      %cst_9 = arith.constant 0.000000e+00 : f32
      %12 = vector.broadcast %cst_9 : f32 to vector<32x256xf32>
      %c0_10 = arith.constant 0 : index
      %c0_11 = arith.constant 0 : index
      %13 = vector.load %arg6[%c0_10, %c0_11] : memref<32x256xf32, #tpu.memory_space<vmem>>, vector<32x256xf32>
      tpu.vector_store %arg6[%c0_10, %c0_11], %12 {strides = array<i32>} : memref<32x256xf32, #tpu.memory_space<vmem>>, vector<32x256xf32>,
    } else {
    }
    %c0 = arith.constant 0 : index
    %c0_1 = arith.constant 0 : index
    %3 = vector.load %arg6[%c0, %c0_1] : memref<32x256xf32, #tpu.memory_space<vmem>>, vector<32x256xf32>
    %c0_2 = arith.constant 0 : index
    %c0_3 = arith.constant 0 : index
    %4 = vector.load %arg3[%c0_2, %c0_3] : memref<32x512xbf16, #tpu.memory_space<vmem>>, vector<32x512xbf16>
    %c0_4 = arith.constant 0 : index
    %c0_5 = arith.constant 0 : index
    %5 = vector.load %arg4[%c0_4, %c0_5] : memref<512x256xbf16, #tpu.memory_space<vmem>>, vector<512x256xbf16>
    %cst = arith.constant dense<0.000000e+00> : vector<32x256xf32>
    %6 = tpu.matmul %4, %5, %cst {dimension_numbers = #tpu.dot_dimension_numbers<[1], [0], [0], [1], [0, 0, 1, 1], [], []>} : vector<32x512xbf16>, vector<512x256xbf16>, vector<32x256xf32> -> vector<32x256xf32>
    %7 = arith.addf %3, %6 : vector<32x256xf32>
    %c0_6 = arith.constant 0 : index
    %c0_7 = arith.constant 0 : index
    %8 = vector.load %arg6[%c0_6, %c0_7] : memref<32x256xf32, #tpu.memory_space<vmem>>, vector<32x256xf32>
    tpu.vector_store %arg6[%c0_6, %c0_7], %7 {strides = array<i32>} : memref<32x256xf32, #tpu.memory_space<vmem>>, vector<32x256xf32>,
    %c3_i32 = arith.constant 3 : i32
    %9 = arith.cmpi eq, %arg2, %c3_i32 : i32
    %10 = arith.extui %9 : i1 to i32
    %c0_i32_8 = arith.constant 0 : i32
    %11 = arith.cmpi ne, %10, %c0_i32_8 : i32
    scf.if %11 {
      %c0_9 = arith.constant 0 : index
      %c0_10 = arith.constant 0 : index
      %12 = vector.load %arg6[%c0_9, %c0_10] : memref<32x256xf32, #tpu.memory_space<vmem>>, vector<32x256xf32>
      %cst_11 = arith.constant 0.000000e+00 : f32
      %13 = vector.broadcast %cst_11 : f32 to vector<32x256xf32>
      %14 = arith.cmpf oge, %12, %13 : vector<32x256xf32>
      %cst_12 = arith.constant 2.000000e-01 : f32
      %15 = vector.broadcast %cst_12 : f32 to vector<32x256xf32>
      %16 = arith.mulf %15, %12 : vector<32x256xf32>
      %17 = arith.select %14, %12, %16 : vector<32x256xi1>, vector<32x256xf32>
      %c0_13 = arith.constant 0 : index
      %c0_14 = arith.constant 0 : index
      %18 = vector.load %arg5[%c0_13, %c0_14] : memref<32x256xf32, #tpu.memory_space<vmem>>, vector<32x256xf32>
      tpu.vector_store %arg5[%c0_13, %c0_14], %17 {strides = array<i32>} : memref<32x256xf32, #tpu.memory_space<vmem>>, vector<32x256xf32>,
    } else {
    }
    return
  }
  func.func @transform_0(%arg0: i32, %arg1: i32, %arg2: i32) -> (i32, i32) {
    %c0_i32 = arith.constant 0 : i32
    return %arg0, %arg2 : i32, i32
  }
  func.func @transform_1(%arg0: i32, %arg1: i32, %arg2: i32) -> (i32, i32) {
    %c0_i32 = arith.constant 0 : i32
    return %arg2, %arg1 : i32, i32
  }
  func.func @transform_2(%arg0: i32, %arg1: i32, %arg2: i32) -> (i32, i32) {
    %c0_i32 = arith.constant 0 : i32
    return %arg0, %arg1 : i32, i32
  }
}

module attributes {stable_mosaic.version = 11 : i64} {
  func.func @_mm_lrelu_kernel(%arg0: i32, %arg1: i32, %arg2: i32, %arg3: memref<24x512xbf16, #tpu.memory_space<vmem>>, %arg4: memref<512x256xbf16, #tpu.memory_space<vmem>>, %arg5: memref<24x256xf32, #tpu.memory_space<vmem>>, %arg6: memref<24x256xf32, #tpu.memory_space<vmem>>) attributes {dimension_semantics = [#tpu.dimension_semantics<parallel>, #tpu.dimension_semantics<parallel>, #tpu.dimension_semantics<arbitrary>], iteration_bounds = array<i64: 1, 2, 8>, scalar_prefetch = 0 : i64, scratch_operands = 1 : i64, tpu.core_type = #tpu.core_type<tc>, window_params = [{transform_indices = @transform_0, window_bounds = array<i64: 24, 512>}, {transform_indices = @transform_1, window_bounds = array<i64: 512, 256>}, {transform_indices = @transform_2, window_bounds = array<i64: 24, 256>}]} {
    %c0_i32 = arith.constant 0 : i32
    %0 = arith.cmpi eq, %arg2, %c0_i32 : i32
    %1 = arith.extui %0 : i1 to i32
    %c0_i32_0 = arith.constant 0 : i32
    %2 = arith.cmpi ne, %1, %c0_i32_0 : i32
    scf.if %2 {
      %cst_9 = arith.constant 0.000000e+00 : f32
      %12 = vector.broadcast %cst_9 : f32 to vector<24x256xf32>
      %c0_10 = arith.constant 0 : index
      %c0_11 = arith.constant 0 : index
      %13 = vector.load %arg6[%c0_10, %c0_11] : memref<24x256xf32, #tpu.memory_space<vmem>>, vector<24x256xf32>
      tpu.vector_store %arg6[%c0_10, %c0_11], %12 {strides = array<i32>} : memref<24x256xf32, #tpu.memory_space<vmem>>, vector<24x256xf32>,
    } else {
    }
    %c0 = arith.constant 0 : index
    %c0_1 = arith.constant 0 : index
    %3 = vector.load %arg6[%c0, %c0_1] : memref<24x256xf32, #tpu.memory_space<vmem>>, vector<24x256xf32>
    %c0_2 = arith.constant 0 : index
    %c0_3 = arith.constant 0 : index
    %4 = vector.load %arg3[%c0_2, %c0_3] : memref<24x512xbf16, #tpu.memory_space<vmem>>, vector<24x512xbf16>
    %c0_4 = arith.constant 0 : index
    %c0_5 = arith.constant 0 : index
    %5 = vector.load %arg4[%c0_4, %c0_5] : memref<512x256xbf16, #tpu.memory_space<vmem>>, vector<512x256xbf16>
    %cst = arith.constant dense<0.000000e+00> : vector<24x256xf32>
    %6 = tpu.matmul %4, %5, %cst {dimension_numbers = #tpu.dot_dimension_numbers<[1], [0], [0], [1], [0, 0, 1, 1], [], []>} : vector<24x512xbf16>, vector<512x256xbf16>, vector<24x256xf32> -> vector<24x256xf32>
    %7 = arith.addf %3, %6 : vector<24x256xf32>
    %c0_6 = arith.constant 0 : index
    %c0_7 = arith.constant 0 : index
    %8 = vector.load %arg6[%c0_6, %c0_7] : memref<24x256xf32, #tpu.memory_space<vmem>>, vector<24x256xf32>
    tpu.vector_store %arg6[%c0_6, %c0_7], %7 {strides = array<i32>} : memref<24x256xf32, #tpu.memory_space<vmem>>, vector<24x256xf32>,
    %c7_i32 = arith.constant 7 : i32
    %9 = arith.cmpi eq, %arg2, %c7_i32 : i32
    %10 = arith.extui %9 : i1 to i32
    %c0_i32_8 = arith.constant 0 : i32
    %11 = arith.cmpi ne, %10, %c0_i32_8 : i32
    scf.if %11 {
      %c0_9 = arith.constant 0 : index
      %c0_10 = arith.constant 0 : index
      %12 = vector.load %arg6[%c0_9, %c0_10] : memref<24x256xf32, #tpu.memory_space<vmem>>, vector<24x256xf32>
      %cst_11 = arith.constant 0.000000e+00 : f32
      %13 = vector.broadcast %cst_11 : f32 to vector<24x256xf32>
      %14 = arith.cmpf oge, %12, %13 : vector<24x256xf32>
      %cst_12 = arith.constant 2.000000e-01 : f32
      %15 = vector.broadcast %cst_12 : f32 to vector<24x256xf32>
      %16 = arith.mulf %15, %12 : vector<24x256xf32>
      %17 = arith.select %14, %12, %16 : vector<24x256xi1>, vector<24x256xf32>
      %c0_13 = arith.constant 0 : index
      %c0_14 = arith.constant 0 : index
      %18 = vector.load %arg5[%c0_13, %c0_14] : memref<24x256xf32, #tpu.memory_space<vmem>>, vector<24x256xf32>
      tpu.vector_store %arg5[%c0_13, %c0_14], %17 {strides = array<i32>} : memref<24x256xf32, #tpu.memory_space<vmem>>, vector<24x256xf32>,
    } else {
    }
    return
  }
  func.func @transform_0(%arg0: i32, %arg1: i32, %arg2: i32) -> (i32, i32) {
    %c0_i32 = arith.constant 0 : i32
    return %arg0, %arg2 : i32, i32
  }
  func.func @transform_1(%arg0: i32, %arg1: i32, %arg2: i32) -> (i32, i32) {
    %c0_i32 = arith.constant 0 : i32
    return %arg2, %arg1 : i32, i32
  }
  func.func @transform_2(%arg0: i32, %arg1: i32, %arg2: i32) -> (i32, i32) {
    %c0_i32 = arith.constant 0 : i32
    return %arg0, %arg1 : i32, i32
  }
}

module attributes {stable_mosaic.version = 11 : i64} {
  func.func @_mm_final_kernel(%arg0: i32, %arg1: i32, %arg2: i32, %arg3: memref<8x512xbf16, #tpu.memory_space<vmem>>, %arg4: memref<512x128xbf16, #tpu.memory_space<vmem>>, %arg5: memref<8x128xf32, #tpu.memory_space<vmem>>, %arg6: memref<8x128xf32, #tpu.memory_space<vmem>>, %arg7: memref<8x128xf32, #tpu.memory_space<vmem>>) attributes {dimension_semantics = [#tpu.dimension_semantics<parallel>, #tpu.dimension_semantics<parallel>, #tpu.dimension_semantics<arbitrary>], iteration_bounds = array<i64: 1, 1, 16>, scalar_prefetch = 0 : i64, scratch_operands = 1 : i64, tpu.core_type = #tpu.core_type<tc>, window_params = [{transform_indices = @transform_0, window_bounds = array<i64: 8, 512>}, {transform_indices = @transform_1, window_bounds = array<i64: 512, 128>}, {transform_indices = @transform_2, window_bounds = array<i64: 8, 128>}, {transform_indices = @transform_3, window_bounds = array<i64: 8, 128>}]} {
    %c0_i32 = arith.constant 0 : i32
    %0 = arith.cmpi eq, %arg2, %c0_i32 : i32
    %1 = arith.extui %0 : i1 to i32
    %c0_i32_0 = arith.constant 0 : i32
    %2 = arith.cmpi ne, %1, %c0_i32_0 : i32
    scf.if %2 {
      %cst_9 = arith.constant 0.000000e+00 : f32
      %12 = vector.broadcast %cst_9 : f32 to vector<8x128xf32>
      %c0_10 = arith.constant 0 : index
      %c0_11 = arith.constant 0 : index
      %13 = vector.load %arg7[%c0_10, %c0_11] : memref<8x128xf32, #tpu.memory_space<vmem>>, vector<8x128xf32>
      tpu.vector_store %arg7[%c0_10, %c0_11], %12 {strides = array<i32>} : memref<8x128xf32, #tpu.memory_space<vmem>>, vector<8x128xf32>,
    } else {
    }
    %c0 = arith.constant 0 : index
    %c0_1 = arith.constant 0 : index
    %3 = vector.load %arg7[%c0, %c0_1] : memref<8x128xf32, #tpu.memory_space<vmem>>, vector<8x128xf32>
    %c0_2 = arith.constant 0 : index
    %c0_3 = arith.constant 0 : index
    %4 = vector.load %arg3[%c0_2, %c0_3] : memref<8x512xbf16, #tpu.memory_space<vmem>>, vector<8x512xbf16>
    %c0_4 = arith.constant 0 : index
    %c0_5 = arith.constant 0 : index
    %5 = vector.load %arg4[%c0_4, %c0_5] : memref<512x128xbf16, #tpu.memory_space<vmem>>, vector<512x128xbf16>
    %cst = arith.constant dense<0.000000e+00> : vector<8x128xf32>
    %6 = tpu.matmul %4, %5, %cst {dimension_numbers = #tpu.dot_dimension_numbers<[1], [0], [0], [1], [0, 0, 1, 1], [], []>} : vector<8x512xbf16>, vector<512x128xbf16>, vector<8x128xf32> -> vector<8x128xf32>
    %7 = arith.addf %3, %6 : vector<8x128xf32>
    %c0_6 = arith.constant 0 : index
    %c0_7 = arith.constant 0 : index
    %8 = vector.load %arg7[%c0_6, %c0_7] : memref<8x128xf32, #tpu.memory_space<vmem>>, vector<8x128xf32>
    tpu.vector_store %arg7[%c0_6, %c0_7], %7 {strides = array<i32>} : memref<8x128xf32, #tpu.memory_space<vmem>>, vector<8x128xf32>,
    %c15_i32 = arith.constant 15 : i32
    %9 = arith.cmpi eq, %arg2, %c15_i32 : i32
    %10 = arith.extui %9 : i1 to i32
    %c0_i32_8 = arith.constant 0 : i32
    %11 = arith.cmpi ne, %10, %c0_i32_8 : i32
    scf.if %11 {
      %c0_9 = arith.constant 0 : index
      %c0_10 = arith.constant 0 : index
      %12 = vector.load %arg7[%c0_9, %c0_10] : memref<8x128xf32, #tpu.memory_space<vmem>>, vector<8x128xf32>
      %c0_11 = arith.constant 0 : index
      %c0_12 = arith.constant 0 : index
      %13 = vector.load %arg5[%c0_11, %c0_12] : memref<8x128xf32, #tpu.memory_space<vmem>>, vector<8x128xf32>
      tpu.vector_store %arg5[%c0_11, %c0_12], %12 {strides = array<i32>} : memref<8x128xf32, #tpu.memory_space<vmem>>, vector<8x128xf32>,
      %cst_13 = arith.constant 5.000000e-01 : f32
      %14 = vector.broadcast %cst_13 : f32 to vector<8x128xf32>
      %15 = arith.mulf %14, %12 : vector<8x128xf32>
      %16 = math.tanh %15 : vector<8x128xf32>
      %cst_14 = arith.constant 1.000000e+00 : f32
      %17 = vector.broadcast %cst_14 : f32 to vector<8x128xf32>
      %18 = arith.addf %16, %17 : vector<8x128xf32>
      %cst_15 = arith.constant 5.000000e-01 : f32
      %19 = vector.broadcast %cst_15 : f32 to vector<8x128xf32>
      %20 = arith.mulf %19, %18 : vector<8x128xf32>
      %c0_16 = arith.constant 0 : index
      %c0_17 = arith.constant 0 : index
      %21 = vector.load %arg6[%c0_16, %c0_17] : memref<8x128xf32, #tpu.memory_space<vmem>>, vector<8x128xf32>
      tpu.vector_store %arg6[%c0_16, %c0_17], %20 {strides = array<i32>} : memref<8x128xf32, #tpu.memory_space<vmem>>, vector<8x128xf32>,
    } else {
    }
    return
  }
  func.func @transform_0(%arg0: i32, %arg1: i32, %arg2: i32) -> (i32, i32) {
    %c0_i32 = arith.constant 0 : i32
    return %arg0, %arg2 : i32, i32
  }
  func.func @transform_1(%arg0: i32, %arg1: i32, %arg2: i32) -> (i32, i32) {
    %c0_i32 = arith.constant 0 : i32
    return %arg2, %arg1 : i32, i32
  }
  func.func @transform_2(%arg0: i32, %arg1: i32, %arg2: i32) -> (i32, i32) {
    %c0_i32 = arith.constant 0 : i32
    return %arg0, %arg1 : i32, i32
  }
  func.func @transform_3(%arg0: i32, %arg1: i32, %arg2: i32) -> (i32, i32) {
    %c0_i32 = arith.constant 0 : i32
    return %arg0, %arg1 : i32, i32
  }
}

</mosaic_0001>

<llo_original>
// kernel: discriminator_forward.5
$region0: #{discriminator_forward.5}
  #allocation0 [shape = 'u32[]', space=smem, size = 0x4, offset = 0x4, fixed_abs, tag = 'smem constant byte address 0x4 - core index']
  #allocation1 [shape = 'u32[144,128]{1,0:T(1,128)}', space=vmem, size = 0x12000, scoped, tag = 'internal scratch']
  #allocation2 [shape = 'f32[256,128]{1,0:T(8,128)}', space=vmem, size = 0x20000, scoped, tag = 'scratch operand']
  %s0 = inlined_call_operand.vmem [shape: bf16[512,128], index: 0, kind: input, shape index: {}]
  %s1 = inlined_call_operand.vmem [shape: bf16[128,128], index: 1, kind: input, shape index: {}]
  %s2 = inlined_call_operand.vmem [shape: f32[512,128], index: 2, kind: output, shape index: {}]
  %s3 = sld [smem:[#allocation0]]
  $region49: #{discriminator_forward.5} parent=0
    _
  %s5 = ssub.s32 1, %s3
  %s6 = scalar_select 0, %s5, %s3
  loop: start=0, step=1, limit=4
  $region2: #{discriminator_forward.5} parent=0 // loop_pre_header
    _
  $region3: #{discriminator_forward.5} parent=0 // loop_header
    %s8 = sphi 0, %s12
    %p9 = scmp.ge.s32.totalorder %s8, 4
    %s15 = sphi 0, %s34
    %s16 = sphi 0, %s30
    %s17 = sphi 0, %s26
    %s18 = sphi 0, %s15
    %s19 = sphi 0, %s16
    %s20 = sphi 0, %s17
    %s21 = sphi 0, %s18
    %s22 = sphi 0, %s19
    %s23 = sphi 0, %s20
    %s39 = sphi 0, %s41
    %s42 = sphi 0, %s39
    %s43 = sphi 0, %s42
    %s59 = sphi 0, %s43
    %s67 = sphi 0, %s69
    %s70 = sphi 0, %s67
    %s71 = sphi 0, %s70
    %s87 = sphi 0, %s71
    %s95 = sphi 0, %s97
    %s98 = sphi 0, %s95
    %s99 = sphi 0, %s98
    %s115 = sphi 0, %s99
  $region4: #{discriminator_forward.5} parent=0 // loop_header_branch
    %11 = sbr.rel (%p9) target = $region8
  $region5: #{discriminator_forward.5} parent=0 // loop_body
    %s13 = ssub.s32 %s8, 1
    %s14 = ssub.s32 %s8, 2
    %s24 = sadd.s32 1, %s17
    %p25 = scmp.ge.s32.totalorder %s24, 1
    %s26 = scalar_select %p25, 0, %s24
    %s27 = sadd.s32 1, %s16
    %s28 = scalar_select %p25, %s27, %s16
    %p29 = scmp.ge.s32.totalorder %s28, 1
    %s30 = scalar_select %p29, 0, %s28
    %s31 = sadd.s32 1, %s15
    %s32 = scalar_select %p29, %s31, %s15
    %p33 = scmp.ge.s32.totalorder %s32, 2
    %s34 = scalar_select %p33, 0, %s32
    %s35 = ssub.s32 %s15, %s34
    %s36 = ssub.s32 %s17, %s26
    %s37 = sor.u32 %s35, %s36
    %p38 = scmp.eq.s32.totalorder %s37, 0
    %s40 = sadd.s32 %s39, 1
    %s41 = scalar_select %p38, %s39, %s40
    %p44 = pneg %p38
    %p45 = scmp.eq.s32.totalorder %s8, 1
    %p46 = por %p44, %p45
    %p47 = scmp.ne.s32.totalorder %s39, %s42
    %p48 = scmp.eq.s32.totalorder %s8, 0
    %p49 = por %p47, %p48
    %p50 = scmp.ne.s32.totalorder %s39, %s42
    %p51 = scmp.eq.s32.totalorder %s13, 1
    %p52 = por %p50, %p51
    %p53 = scmp.ne.s32.totalorder %s42, %s43
    %p54 = scmp.eq.s32.totalorder %s13, 0
    %p55 = por %p53, %p54
    %p56 = scmp.ne.s32.totalorder %s42, %s43
    %p57 = scmp.eq.s32.totalorder %s14, 1
    %p58 = por %p56, %p57
    %p60 = scmp.ne.s32.totalorder %s43, %s59
    %p61 = scmp.eq.s32.totalorder %s14, 0
    %p62 = por %p60, %p61
    %s63 = ssub.s32 %s17, %s26
    %s64 = ssub.s32 %s16, %s30
    %s65 = sor.u32 %s63, %s64
    %p66 = scmp.eq.s32.totalorder %s65, 0
    %s68 = sadd.s32 %s67, 1
    %s69 = scalar_select %p66, %s67, %s68
    %p72 = pneg %p66
    %p73 = scmp.eq.s32.totalorder %s8, 1
    %p74 = por %p72, %p73
    %p75 = scmp.ne.s32.totalorder %s67, %s70
    %p76 = scmp.eq.s32.totalorder %s8, 0
    %p77 = por %p75, %p76
    %p78 = scmp.ne.s32.totalorder %s67, %s70
    %p79 = scmp.eq.s32.totalorder %s13, 1
    %p80 = por %p78, %p79
    %p81 = scmp.ne.s32.totalorder %s70, %s71
    %p82 = scmp.eq.s32.totalorder %s13, 0
    %p83 = por %p81, %p82
    %p84 = scmp.ne.s32.totalorder %s70, %s71
    %p85 = scmp.eq.s32.totalorder %s14, 1
    %p86 = por %p84, %p85
    %p88 = scmp.ne.s32.totalorder %s71, %s87
    %p89 = scmp.eq.s32.totalorder %s14, 0
    %p90 = por %p88, %p89
    %s91 = ssub.s32 %s15, %s34
    %s92 = ssub.s32 %s16, %s30
    %s93 = sor.u32 %s91, %s92
    %p94 = scmp.eq.s32.totalorder %s93, 0
    %s96 = sadd.s32 %s95, 1
    %s97 = scalar_select %p94, %s95, %s96
    %p100 = pneg %p94
    %p101 = scmp.eq.s32.totalorder %s8, 1
    %p102 = por %p100, %p101
    %p103 = scmp.ne.s32.totalorder %s95, %s98
    %p104 = scmp.eq.s32.totalorder %s8, 0
    %p105 = por %p103, %p104
    %p106 = scmp.ne.s32.totalorder %s95, %s98
    %p107 = scmp.eq.s32.totalorder %s13, 1
    %p108 = por %p106, %p107
    %p109 = scmp.ne.s32.totalorder %s98, %s99
    %p110 = scmp.eq.s32.totalorder %s13, 0
    %p111 = por %p109, %p110
    %p112 = scmp.ne.s32.totalorder %s98, %s99
    %p113 = scmp.eq.s32.totalorder %s14, 1
    %p114 = por %p112, %p113
    %p116 = scmp.ne.s32.totalorder %s99, %s115
    %p117 = scmp.eq.s32.totalorder %s14, 0
    %p118 = por %p116, %p117
    %p119 = scmp.le.s32.totalorder 1, %s8
    %p120 = scmp.lt.s32.totalorder %s8, 3
    %p121 = pnand %p119, %p120
    %p122 = pneg %p121
    // Predicated region
    $region9: #{discriminator_forward.5} parent=5 // pred_check
      _
    $region10: #{discriminator_forward.5} parent=5 // pred_check_branch
      %124 = sbr.rel (%p121) target = $region12
    $region11: #{discriminator_forward.5} parent=5 // pred_region
      %s125 = ssub.s32 %s8, 1
      // Predicated region
      $region13: #{discriminator_forward.5} parent=11 // pred_check
        %p126 = pneg %p83
      $region14: #{discriminator_forward.5} parent=11 // pred_check_branch
        %128 = sbr.rel (%p126) target = $region16
      $region15: #{discriminator_forward.5} parent=11 // pred_region
        %s129 = smul.u32 16, %s20
        %p130 = scmp.lt.s32.totalorder %s129, 15
        %s131 = scalar_select %p130, %s129, 15
        %p132 = scmp.lt.s32.totalorder %s19, 0
        %s133 = scalar_select %p132, %s19, 0
        %s134 = sadd.s32 %s133, %s131
        %s135 = smul.addr %s134, 4
        %s136 = scalar_lea.vmem %s1, %s135
        %s137 = smul.u32 16, %s20
      $region16: #{discriminator_forward.5} parent=11 // pred_fallthru
        _
    $region12: #{discriminator_forward.5} parent=5 // pred_fallthru
      _
    %p138 = scmp.lt.s32.totalorder %s8, 2
    // Predicated region
    $region17: #{discriminator_forward.5} parent=5 // pred_check
      %p139 = pneg %p138
    $region18: #{discriminator_forward.5} parent=5 // pred_check_branch
      %141 = sbr.rel (%p139) target = $region20
    $region19: #{discriminator_forward.5} parent=5 // pred_region
      // Predicated region
      $region21: #{discriminator_forward.5} parent=19 // pred_check
        %p142 = pneg %p49
      $region22: #{discriminator_forward.5} parent=19 // pred_check_branch
        %144 = sbr.rel (%p142) target = $region24
      $region23: #{discriminator_forward.5} parent=19 // pred_region
        %s145 = smul.u32 32, %s15
        %p146 = scmp.lt.s32.totalorder %s145, 63
        %s147 = scalar_select %p146, %s145, 63
        %p148 = scmp.lt.s32.totalorder %s17, 0
        %s149 = scalar_select %p148, %s17, 0
        %s150 = sadd.s32 %s149, %s147
        %s151 = smul.addr %s150, 4
        %s152 = scalar_lea.vmem %s0, %s151
        %s153 = smul.u32 32, %s15
      $region24: #{discriminator_forward.5} parent=19 // pred_fallthru
        _
    $region20: #{discriminator_forward.5} parent=5 // pred_fallthru
      _
    %p154 = scmp.le.s32.totalorder 1, %s8
    %p155 = scmp.lt.s32.totalorder %s8, 3
    %p156 = pnand %p154, %p155
    %p157 = pneg %p156
    // Predicated region
    $region25: #{discriminator_forward.5} parent=5 // pred_check
      _
    $region26: #{discriminator_forward.5} parent=5 // pred_check_branch
      %159 = sbr.rel (%p156) target = $region28
    $region27: #{discriminator_forward.5} parent=5 // pred_region
      %s160 = ssub.s32 %s8, 1
      %s161 = smul.u32 32, %s18
      %p162 = scmp.lt.s32.totalorder %s161, 63
      %s163 = scalar_select %p162, %s161, 63
      %p164 = scmp.lt.s32.totalorder %s20, 0
      %s165 = scalar_select %p164, %s20, 0
      %s166 = sadd.s32 %s165, %s163
      %s167 = smul.addr %s166, 4
      %s168 = scalar_lea.vmem %s0, %s167
      %p169 = pneg %p55
      %p170 = pneg %p52
      %s171 = smul.u32 16, %s20
      %p172 = scmp.lt.s32.totalorder %s171, 15
      %s173 = scalar_select %p172, %s171, 15
      %p174 = scmp.lt.s32.totalorder %s19, 0
      %s175 = scalar_select %p174, %s19, 0
      %s176 = sadd.s32 %s175, %s173
      %s177 = smul.addr %s176, 4
      %s178 = scalar_lea.vmem %s1, %s177
      %p179 = pneg %p83
      %p180 = pneg %p80
      %p181 = pneg %p111
      %p182 = pneg %p108
      %s183 = smul.u32 32, %s18
      %p184 = scmp.lt.s32.totalorder %s183, 63
      %s185 = scalar_select %p184, %s183, 63
      %p186 = scmp.lt.s32.totalorder %s19, 0
      %s187 = scalar_select %p186, %s19, 0
      %s188 = sadd.s32 %s187, %s185
      %s189 = smul.addr %s188, 8
      %s190 = scalar_lea.vmem %s2, %s189
      %s191 = smul.u32 32, %s18
      %p192 = scmp.lt.s32.totalorder %s191, 63
      %s193 = scalar_select %p192, %s191, 63
      %p194 = scmp.lt.s32.totalorder %s20, 0
      %s195 = scalar_select %p194, %s20, 0
      %s196 = sadd.s32 %s195, %s193
      %s197 = smul.addr %s196, 4
      %s198 = scalar_lea.vmem %s0, %s197
      %s199 = smul.u32 32, %s18
      %s200 = smul.u32 16, %s20
      %p201 = scmp.lt.s32.totalorder %s200, 15
      %s202 = scalar_select %p201, %s200, 15
      %p203 = scmp.lt.s32.totalorder %s19, 0
      %s204 = scalar_select %p203, %s19, 0
      %s205 = sadd.s32 %s204, %s202
      %s206 = smul.addr %s205, 4
      %s207 = scalar_lea.vmem %s1, %s206
      %s208 = smul.u32 16, %s20
      %s209 = smul.u32 32, %s18
      %p210 = scmp.lt.s32.totalorder %s209, 63
      %s211 = scalar_select %p210, %s209, 63
      %p212 = scmp.lt.s32.totalorder %s19, 0
      %s213 = scalar_select %p212, %s19, 0
      %s214 = sadd.s32 %s213, %s211
      %s215 = smul.addr %s214, 8
      %s216 = scalar_lea.vmem %s2, %s215
      %s217 = smul.u32 32, %s18
      %p219 = scmp.eq.s32.totalorder %s20, 0
      // Predicated region
      $region29: #{discriminator_forward.5} parent=27 // pred_check
        %p220 = pneg %p219
      $region30: #{discriminator_forward.5} parent=27 // pred_check_branch
        %222 = sbr.rel (%p220) target = $region32
      $region31: #{discriminator_forward.5} parent=27 // pred_region
        %223 = vst [vmem:[#allocation2] sm:$0xff] 0.0
        %224 = vst [vmem:[#allocation2 + $0x8] sm:$0xff] 0.0
        %225 = vst [vmem:[#allocation2 + $0x10] sm:$0xff] 0.0
        %226 = vst [vmem:[#allocation2 + $0x18] sm:$0xff] 0.0
        %227 = vst [vmem:[#allocation2 + $0x20] sm:$0xff] 0.0
        %228 = vst [vmem:[#allocation2 + $0x28] sm:$0xff] 0.0
        %229 = vst [vmem:[#allocation2 + $0x30] sm:$0xff] 0.0
        %230 = vst [vmem:[#allocation2 + $0x38] sm:$0xff] 0.0
        %231 = vst [vmem:[#allocation2 + $0x40] sm:$0xff] 0.0
        %232 = vst [vmem:[#allocation2 + $0x48] sm:$0xff] 0.0
        %233 = vst [vmem:[#allocation2 + $0x50] sm:$0xff] 0.0
        %234 = vst [vmem:[#allocation2 + $0x58] sm:$0xff] 0.0
        %235 = vst [vmem:[#allocation2 + $0x60] sm:$0xff] 0.0
        %236 = vst [vmem:[#allocation2 + $0x68] sm:$0xff] 0.0
        %237 = vst [vmem:[#allocation2 + $0x70] sm:$0xff] 0.0
        %238 = vst [vmem:[#allocation2 + $0x78] sm:$0xff] 0.0
        %239 = vst [vmem:[#allocation2 + $0x80] sm:$0xff] 0.0
        %240 = vst [vmem:[#allocation2 + $0x88] sm:$0xff] 0.0
        %241 = vst [vmem:[#allocation2 + $0x90] sm:$0xff] 0.0
        %242 = vst [vmem:[#allocation2 + $0x98] sm:$0xff] 0.0
        %243 = vst [vmem:[#allocation2 + $0xa0] sm:$0xff] 0.0
        %244 = vst [vmem:[#allocation2 + $0xa8] sm:$0xff] 0.0
        %245 = vst [vmem:[#allocation2 + $0xb0] sm:$0xff] 0.0
        %246 = vst [vmem:[#allocation2 + $0xb8] sm:$0xff] 0.0
        %247 = vst [vmem:[#allocation2 + $0xc0] sm:$0xff] 0.0
        %248 = vst [vmem:[#allocation2 + $0xc8] sm:$0xff] 0.0
        %249 = vst [vmem:[#allocation2 + $0xd0] sm:$0xff] 0.0
        %250 = vst [vmem:[#allocation2 + $0xd8] sm:$0xff] 0.0
        %251 = vst [vmem:[#allocation2 + $0xe0] sm:$0xff] 0.0
        %252 = vst [vmem:[#allocation2 + $0xe8] sm:$0xff] 0.0
        %253 = vst [vmem:[#allocation2 + $0xf0] sm:$0xff] 0.0
        %254 = vst [vmem:[#allocation2 + $0xf8] sm:$0xff] 0.0
      $region32: #{discriminator_forward.5} parent=27 // pred_fallthru
        _
      %v255 = vld [vmem:[#allocation2] sm:$0xff]
      %v256 = vld [vmem:[#allocation2 + $0x8] sm:$0xff]
      %v257 = vld [vmem:[#allocation2 + $0x10] sm:$0xff]
      %v258 = vld [vmem:[#allocation2 + $0x18] sm:$0xff]
      %v259 = vld [vmem:[#allocation2 + $0x20] sm:$0xff]
      %v260 = vld [vmem:[#allocation2 + $0x28] sm:$0xff]
      %v261 = vld [vmem:[#allocation2 + $0x30] sm:$0xff]
      %v262 = vld [vmem:[#allocation2 + $0x38] sm:$0xff]
      %v263 = vld [vmem:[#allocation2 + $0x40] sm:$0xff]
      %v264 = vld [vmem:[#allocation2 + $0x48] sm:$0xff]
      %v265 = vld [vmem:[#allocation2 + $0x50] sm:$0xff]
      %v266 = vld [vmem:[#allocation2 + $0x58] sm:$0xff]
      %v267 = vld [vmem:[#allocation2 + $0x60] sm:$0xff]
      %v268 = vld [vmem:[#allocation2 + $0x68] sm:$0xff]
      %v269 = vld [vmem:[#allocation2 + $0x70] sm:$0xff]
      %v270 = vld [vmem:[#allocation2 + $0x78] sm:$0xff]
      %v271 = vld [vmem:[#allocation2 + $0x80] sm:$0xff]
      %v272 = vld [vmem:[#allocation2 + $0x88] sm:$0xff]
      %v273 = vld [vmem:[#allocation2 + $0x90] sm:$0xff]
      %v274 = vld [vmem:[#allocation2 + $0x98] sm:$0xff]
      %v275 = vld [vmem:[#allocation2 + $0xa0] sm:$0xff]
      %v276 = vld [vmem:[#allocation2 + $0xa8] sm:$0xff]
      %v277 = vld [vmem:[#allocation2 + $0xb0] sm:$0xff]
      %v278 = vld [vmem:[#allocation2 + $0xb8] sm:$0xff]
      %v279 = vld [vmem:[#allocation2 + $0xc0] sm:$0xff]
      %v280 = vld [vmem:[#allocation2 + $0xc8] sm:$0xff]
      %v281 = vld [vmem:[#allocation2 + $0xd0] sm:$0xff]
      %v282 = vld [vmem:[#allocation2 + $0xd8] sm:$0xff]
      %v283 = vld [vmem:[#allocation2 + $0xe0] sm:$0xff]
      %v284 = vld [vmem:[#allocation2 + $0xe8] sm:$0xff]
      %v285 = vld [vmem:[#allocation2 + $0xf0] sm:$0xff]
      %v286 = vld [vmem:[#allocation2 + $0xf8] sm:$0xff]
      %v287 = vld [vmem:[%s198] sm:$0xf]
      %v288 = vld [vmem:[%s198 + $0x4] sm:$0xf]
      %v289 = vld [vmem:[%s198 + $0x8] sm:$0xf]
      %v290 = vld [vmem:[%s198 + $0xc] sm:$0xf]
      %v291 = vld [vmem:[%s198 + $0x10] sm:$0xf]
      %v292 = vld [vmem:[%s198 + $0x14] sm:$0xf]
      %v293 = vld [vmem:[%s198 + $0x18] sm:$0xf]
      %v294 = vld [vmem:[%s198 + $0x1c] sm:$0xf]
      %v295 = vld [vmem:[%s198 + $0x20] sm:$0xf]
      %v296 = vld [vmem:[%s198 + $0x24] sm:$0xf]
      %v297 = vld [vmem:[%s198 + $0x28] sm:$0xf]
      %v298 = vld [vmem:[%s198 + $0x2c] sm:$0xf]
      %v299 = vld [vmem:[%s198 + $0x30] sm:$0xf]
      %v300 = vld [vmem:[%s198 + $0x34] sm:$0xf]
      %v301 = vld [vmem:[%s198 + $0x38] sm:$0xf]
      %v302 = vld [vmem:[%s198 + $0x3c] sm:$0xf]
      %v303 = vld [vmem:[%s198 + $0x40] sm:$0xf]
      %v304 = vld [vmem:[%s198 + $0x44] sm:$0xf]
      %v305 = vld [vmem:[%s198 + $0x48] sm:$0xf]
      %v306 = vld [vmem:[%s198 + $0x4c] sm:$0xf]
      %v307 = vld [vmem:[%s198 + $0x50] sm:$0xf]
      %v308 = vld [vmem:[%s198 + $0x54] sm:$0xf]
      %v309 = vld [vmem:[%s198 + $0x58] sm:$0xf]
      %v310 = vld [vmem:[%s198 + $0x5c] sm:$0xf]
      %v311 = vld [vmem:[%s198 + $0x60] sm:$0xf]
      %v312 = vld [vmem:[%s198 + $0x64] sm:$0xf]
      %v313 = vld [vmem:[%s198 + $0x68] sm:$0xf]
      %v314 = vld [vmem:[%s198 + $0x6c] sm:$0xf]
      %v315 = vld [vmem:[%s198 + $0x70] sm:$0xf]
      %v316 = vld [vmem:[%s198 + $0x74] sm:$0xf]
      %v317 = vld [vmem:[%s198 + $0x78] sm:$0xf]
      %v318 = vld [vmem:[%s198 + $0x7c] sm:$0xf]
      %v319 = vld [vmem:[%s207] sm:$0xf]
      %v320 = vld [vmem:[%s207 + $0x4] sm:$0xf]
      %v321 = vld [vmem:[%s207 + $0x8] sm:$0xf]
      %v322 = vld [vmem:[%s207 + $0xc] sm:$0xf]
      %v323 = vld [vmem:[%s207 + $0x10] sm:$0xf]
      %v324 = vld [vmem:[%s207 + $0x14] sm:$0xf]
      %v325 = vld [vmem:[%s207 + $0x18] sm:$0xf]
      %v326 = vld [vmem:[%s207 + $0x1c] sm:$0xf]
      %v327 = vld [vmem:[%s207 + $0x20] sm:$0xf]
      %v328 = vld [vmem:[%s207 + $0x24] sm:$0xf]
      %v329 = vld [vmem:[%s207 + $0x28] sm:$0xf]
      %v330 = vld [vmem:[%s207 + $0x2c] sm:$0xf]
      %v331 = vld [vmem:[%s207 + $0x30] sm:$0xf]
      %v332 = vld [vmem:[%s207 + $0x34] sm:$0xf]
      %v333 = vld [vmem:[%s207 + $0x38] sm:$0xf]
      %v334 = vld [vmem:[%s207 + $0x3c] sm:$0xf]
      %v367 = vunpack.c.l.b16 %v287
      %v368 = vunpack.c.l.b16 %v288
      %v369 = vunpack.c.l.b16 %v289
      %v370 = vunpack.c.l.b16 %v290
      %v371 = vunpack.c.l.b16 %v291
      %v372 = vunpack.c.l.b16 %v292
      %v373 = vunpack.c.l.b16 %v293
      %v374 = vunpack.c.l.b16 %v294
      %v375 = vunpack.c.l.b16 %v295
      %v376 = vunpack.c.l.b16 %v296
      %v377 = vunpack.c.l.b16 %v297
      %v378 = vunpack.c.l.b16 %v298
      %v379 = vunpack.c.l.b16 %v299
      %v380 = vunpack.c.l.b16 %v300
      %v381 = vunpack.c.l.b16 %v301
      %v382 = vunpack.c.l.b16 %v302
      %v383 = vunpack.c.l.b16 %v303
      %v384 = vunpack.c.l.b16 %v304
      %v385 = vunpack.c.l.b16 %v305
      %v386 = vunpack.c.l.b16 %v306
      %v387 = vunpack.c.l.b16 %v307
      %v388 = vunpack.c.l.b16 %v308
      %v389 = vunpack.c.l.b16 %v309
      %v390 = vunpack.c.l.b16 %v310
      %v391 = vunpack.c.l.b16 %v311
      %v392 = vunpack.c.l.b16 %v312
      %v393 = vunpack.c.l.b16 %v313
      %v394 = vunpack.c.l.b16 %v314
      %v395 = vunpack.c.l.b16 %v315
      %v396 = vunpack.c.l.b16 %v316
      %v397 = vunpack.c.l.b16 %v317
      %v398 = vunpack.c.l.b16 %v318
      %v399 = vpack.c.b16 %v368, %v367
      %v400 = vpack.c.b16 %v370, %v369
      %v401 = vpack.c.b16 %v372, %v371
      %v402 = vpack.c.b16 %v374, %v373
      %v403 = vpack.c.b16 %v376, %v375
      %v404 = vpack.c.b16 %v378, %v377
      %v405 = vpack.c.b16 %v380, %v379
      %v406 = vpack.c.b16 %v382, %v381
      %v407 = vpack.c.b16 %v384, %v383
      %v408 = vpack.c.b16 %v386, %v385
      %v409 = vpack.c.b16 %v388, %v387
      %v410 = vpack.c.b16 %v390, %v389
      %v411 = vpack.c.b16 %v392, %v391
      %v412 = vpack.c.b16 %v394, %v393
      %v413 = vpack.c.b16 %v396, %v395
      %v414 = vpack.c.b16 %v398, %v397
      %v447 = vunpack.c.l.b16 %v319
      %v448 = vunpack.c.l.b16 %v320
      %v449 = vunpack.c.l.b16 %v321
      %v450 = vunpack.c.l.b16 %v322
      %v451 = vunpack.c.l.b16 %v323
      %v452 = vunpack.c.l.b16 %v324
      %v453 = vunpack.c.l.b16 %v325
      %v454 = vunpack.c.l.b16 %v326
      %v455 = vunpack.c.l.b16 %v327
      %v456 = vunpack.c.l.b16 %v328
      %v457 = vunpack.c.l.b16 %v329
      %v458 = vunpack.c.l.b16 %v330
      %v459 = vunpack.c.l.b16 %v331
      %v460 = vunpack.c.l.b16 %v332
      %v461 = vunpack.c.l.b16 %v333
      %v462 = vunpack.c.l.b16 %v334
      %v463 = vpack.c.b16 %v448, %v447
      %v464 = vpack.c.b16 %v450, %v449
      %v465 = vpack.c.b16 %v452, %v451
      %v466 = vpack.c.b16 %v454, %v453
      %v467 = vpack.c.b16 %v456, %v455
      %v468 = vpack.c.b16 %v458, %v457
      %v469 = vpack.c.b16 %v460, %v459
      %v470 = vpack.c.b16 %v462, %v461
      %479 = vmatprep.subr.bf16.mxu0 0
      %480 = vmatpush1.bf16.msra.mxu0 %v463
      %481 = vmatprep.subr.bf16.mxu0 0
      %482 = vmatpush1.bf16.msra.mxu0 %v464
      %483 = vmatprep.subr.bf16.mxu0 0
      %484 = vmatpush1.bf16.msra.mxu0 %v465
      %485 = vmatprep.subr.bf16.mxu0 0
      %486 = vmatpush1.bf16.msra.mxu0 %v466
      %487 = vmatprep.subr.bf16.mxu0 0
      %488 = vmatpush1.bf16.msra.mxu0 %v467
      %489 = vmatprep.subr.bf16.mxu0 0
      %490 = vmatpush1.bf16.msra.mxu0 %v468
      %491 = vmatprep.subr.bf16.mxu0 0
      %492 = vmatpush1.bf16.msra.mxu0 %v469
      %493 = vmatprep.subr.bf16.mxu0 0
      %494 = vmatpush1.bf16.msra.mxu0 %v470
      %495 = vmatprep.subr.bf16.mxu0 0
      %496 = vmatpush1.bf16.msra.mxu0 0
      %497 = vmatprep.subr.bf16.mxu0 0
      %498 = vmatpush1.bf16.msra.mxu0 0
      %499 = vmatprep.subr.bf16.mxu0 0
      %500 = vmatpush1.bf16.msra.mxu0 0
      %501 = vmatprep.subr.bf16.mxu0 0
      %502 = vmatpush1.bf16.msra.mxu0 0
      %503 = vmatprep.subr.bf16.mxu0 0
      %504 = vmatpush1.bf16.msra.mxu0 0
      %505 = vmatprep.subr.bf16.mxu0 0
      %506 = vmatpush1.bf16.msra.mxu0 0
      %507 = vmatprep.subr.bf16.mxu0 0
      %508 = vmatpush1.bf16.msra.mxu0 0
      %509 = vmatprep.subr.bf16.mxu0 0
      %510 = vmatpush1.bf16.msra.mxu0 0
      %511 = vmatprep.mubr.bf16.mxu0 0
      %512 = vmatmul.mubr.bf16.gmra.mrb[0].mxu0 %v399
      %v513 = vpop.f32.mrb[0].mxu0
      %v514 = vadd.f32 0.0, %v513
      %v515 = vpop.f32.mrb[0].mxu0
      %v516 = vpop.f32.mrb[0].mxu0
      %v517 = vadd.f32 0.0, %v516
      %v518 = vpop.f32.mrb[0].mxu0
      %519 = vmatprep.mubr.bf16.mxu0 0
      %520 = vmatmul.mubr.bf16.gmra.mrb[0].mxu0 %v400
      %v521 = vpop.f32.mrb[0].mxu0
      %v522 = vadd.f32 0.0, %v521
      %v523 = vpop.f32.mrb[0].mxu0
      %v524 = vpop.f32.mrb[0].mxu0
      %v525 = vadd.f32 0.0, %v524
      %v526 = vpop.f32.mrb[0].mxu0
      %527 = vmatprep.mubr.bf16.mxu0 0
      %528 = vmatmul.mubr.bf16.gmra.mrb[0].mxu0 %v401
      %v529 = vpop.f32.mrb[0].mxu0
      %v530 = vadd.f32 0.0, %v529
      %v531 = vpop.f32.mrb[0].mxu0
      %v532 = vpop.f32.mrb[0].mxu0
      %v533 = vadd.f32 0.0, %v532
      %v534 = vpop.f32.mrb[0].mxu0
      %535 = vmatprep.mubr.bf16.mxu0 0
      %536 = vmatmul.mubr.bf16.gmra.mrb[0].mxu0 %v402
      %v537 = vpop.f32.mrb[0].mxu0
      %v538 = vadd.f32 0.0, %v537
      %v539 = vpop.f32.mrb[0].mxu0
      %v540 = vpop.f32.mrb[0].mxu0
      %v541 = vadd.f32 0.0, %v540
      %v542 = vpop.f32.mrb[0].mxu0
      %543 = vmatprep.mubr.bf16.mxu0 0
      %544 = vmatmul.mubr.bf16.gmra.mrb[0].mxu0 %v403
      %v545 = vpop.f32.mrb[0].mxu0
      %v546 = vadd.f32 0.0, %v545
      %v547 = vpop.f32.mrb[0].mxu0
      %v548 = vpop.f32.mrb[0].mxu0
      %v549 = vadd.f32 0.0, %v548
      %v550 = vpop.f32.mrb[0].mxu0
      %551 = vmatprep.mubr.bf16.mxu0 0
      %552 = vmatmul.mubr.bf16.gmra.mrb[0].mxu0 %v404
      %v553 = vpop.f32.mrb[0].mxu0
      %v554 = vadd.f32 0.0, %v553
      %v555 = vpop.f32.mrb[0].mxu0
      %v556 = vpop.f32.mrb[0].mxu0
      %v557 = vadd.f32 0.0, %v556
      %v558 = vpop.f32.mrb[0].mxu0
      %559 = vmatprep.mubr.bf16.mxu0 0
      %560 = vmatmul.mubr.bf16.gmra.mrb[0].mxu0 %v405
      %v561 = vpop.f32.mrb[0].mxu0
      %v562 = vadd.f32 0.0, %v561
      %v563 = vpop.f32.mrb[0].mxu0
      %v564 = vpop.f32.mrb[0].mxu0
      %v565 = vadd.f32 0.0, %v564
      %v566 = vpop.f32.mrb[0].mxu0
      %567 = vmatprep.mubr.bf16.mxu0 0
      %568 = vmatmul.mubr.bf16.gmra.mrb[0].mxu0 %v406
      %v569 = vpop.f32.mrb[0].mxu0
      %v570 = vadd.f32 0.0, %v569
      %v571 = vpop.f32.mrb[0].mxu0
      %v572 = vpop.f32.mrb[0].mxu0
      %v573 = vadd.f32 0.0, %v572
      %v574 = vpop.f32.mrb[0].mxu0
      %575 = vmatprep.mubr.bf16.mxu0 0
      %576 = vmatmul.mubr.bf16.gmra.mrb[0].mxu0 %v407
      %v577 = vpop.f32.mrb[0].mxu0
      %v578 = vadd.f32 0.0, %v577
      %v579 = vpop.f32.mrb[0].mxu0
      %v580 = vpop.f32.mrb[0].mxu0
      %v581 = vadd.f32 0.0, %v580
      %v582 = vpop.f32.mrb[0].mxu0
      %583 = vmatprep.mubr.bf16.mxu0 0
      %584 = vmatmul.mubr.bf16.gmra.mrb[0].mxu0 %v408
      %v585 = vpop.f32.mrb[0].mxu0
      %v586 = vadd.f32 0.0, %v585
      %v587 = vpop.f32.mrb[0].mxu0
      %v588 = vpop.f32.mrb[0].mxu0
      %v589 = vadd.f32 0.0, %v588
      %v590 = vpop.f32.mrb[0].mxu0
      %591 = vmatprep.mubr.bf16.mxu0 0
      %592 = vmatmul.mubr.bf16.gmra.mrb[0].mxu0 %v409
      %v593 = vpop.f32.mrb[0].mxu0
      %v594 = vadd.f32 0.0, %v593
      %v595 = vpop.f32.mrb[0].mxu0
      %v596 = vpop.f32.mrb[0].mxu0
      %v597 = vadd.f32 0.0, %v596
      %v598 = vpop.f32.mrb[0].mxu0
      %599 = vmatprep.mubr.bf16.mxu0 0
      %600 = vmatmul.mubr.bf16.gmra.mrb[0].mxu0 %v410
      %v601 = vpop.f32.mrb[0].mxu0
      %v602 = vadd.f32 0.0, %v601
      %v603 = vpop.f32.mrb[0].mxu0
      %v604 = vpop.f32.mrb[0].mxu0
      %v605 = vadd.f32 0.0, %v604
      %v606 = vpop.f32.mrb[0].mxu0
      %607 = vmatprep.mubr.bf16.mxu0 0
      %608 = vmatmul.mubr.bf16.gmra.mrb[0].mxu0 %v411
      %v609 = vpop.f32.mrb[0].mxu0
      %v610 = vadd.f32 0.0, %v609
      %v611 = vpop.f32.mrb[0].mxu0
      %v612 = vpop.f32.mrb[0].mxu0
      %v613 = vadd.f32 0.0, %v612
      %v614 = vpop.f32.mrb[0].mxu0
      %615 = vmatprep.mubr.bf16.mxu0 0
      %616 = vmatmul.mubr.bf16.gmra.mrb[0].mxu0 %v412
      %v617 = vpop.f32.mrb[0].mxu0
      %v618 = vadd.f32 0.0, %v617
      %v619 = vpop.f32.mrb[0].mxu0
      %v620 = vpop.f32.mrb[0].mxu0
      %v621 = vadd.f32 0.0, %v620
      %v622 = vpop.f32.mrb[0].mxu0
      %623 = vmatprep.mubr.bf16.mxu0 0
      %624 = vmatmul.mubr.bf16.gmra.mrb[0].mxu0 %v413
      %v625 = vpop.f32.mrb[0].mxu0
      %v626 = vadd.f32 0.0, %v625
      %v627 = vpop.f32.mrb[0].mxu0
      %v628 = vpop.f32.mrb[0].mxu0
      %v629 = vadd.f32 0.0, %v628
      %v630 = vpop.f32.mrb[0].mxu0
      %631 = vmatprep.mubr.bf16.mxu0 0
      %632 = vmatmul.mubr.bf16.gmra.mrb[0].mxu0 %v414
      %v633 = vpop.f32.mrb[0].mxu0
      %v634 = vadd.f32 0.0, %v633
      %v635 = vpop.f32.mrb[0].mxu0
      %v636 = vpop.f32.mrb[0].mxu0
      %v637 = vadd.f32 0.0, %v636
      %v638 = vpop.f32.mrb[0].mxu0
      %639 = vdwg.mxu0
      %v640 = vadd.f32 %v255, %v514
      %v641 = vadd.f32 %v256, %v517
      %v642 = vadd.f32 %v257, %v522
      %v643 = vadd.f32 %v258, %v525
      %v644 = vadd.f32 %v259, %v530
      %v645 = vadd.f32 %v260, %v533
      %v646 = vadd.f32 %v261, %v538
      %v647 = vadd.f32 %v262, %v541
      %v648 = vadd.f32 %v263, %v546
      %v649 = vadd.f32 %v264, %v549
      %v650 = vadd.f32 %v265, %v554
      %v651 = vadd.f32 %v266, %v557
      %v652 = vadd.f32 %v267, %v562
      %v653 = vadd.f32 %v268, %v565
      %v654 = vadd.f32 %v269, %v570
      %v655 = vadd.f32 %v270, %v573
      %v656 = vadd.f32 %v271, %v578
      %v657 = vadd.f32 %v272, %v581
      %v658 = vadd.f32 %v273, %v586
      %v659 = vadd.f32 %v274, %v589
      %v660 = vadd.f32 %v275, %v594
      %v661 = vadd.f32 %v276, %v597
      %v662 = vadd.f32 %v277, %v602
      %v663 = vadd.f32 %v278, %v605
      %v664 = vadd.f32 %v279, %v610
      %v665 = vadd.f32 %v280, %v613
      %v666 = vadd.f32 %v281, %v618
      %v667 = vadd.f32 %v282, %v621
      %v668 = vadd.f32 %v283, %v626
      %v669 = vadd.f32 %v284, %v629
      %v670 = vadd.f32 %v285, %v634
      %v671 = vadd.f32 %v286, %v637
      %672 = vst [vmem:[#allocation2] sm:$0xff] %v640
      %673 = vst [vmem:[#allocation2 + $0x8] sm:$0xff] %v641
      %674 = vst [vmem:[#allocation2 + $0x10] sm:$0xff] %v642
      %675 = vst [vmem:[#allocation2 + $0x18] sm:$0xff] %v643
      %676 = vst [vmem:[#allocation2 + $0x20] sm:$0xff] %v644
      %677 = vst [vmem:[#allocation2 + $0x28] sm:$0xff] %v645
      %678 = vst [vmem:[#allocation2 + $0x30] sm:$0xff] %v646
      %679 = vst [vmem:[#allocation2 + $0x38] sm:$0xff] %v647
      %680 = vst [vmem:[#allocation2 + $0x40] sm:$0xff] %v648
      %681 = vst [vmem:[#allocation2 + $0x48] sm:$0xff] %v649
      %682 = vst [vmem:[#allocation2 + $0x50] sm:$0xff] %v650
      %683 = vst [vmem:[#allocation2 + $0x58] sm:$0xff] %v651
      %684 = vst [vmem:[#allocation2 + $0x60] sm:$0xff] %v652
      %685 = vst [vmem:[#allocation2 + $0x68] sm:$0xff] %v653
      %686 = vst [vmem:[#allocation2 + $0x70] sm:$0xff] %v654
      %687 = vst [vmem:[#allocation2 + $0x78] sm:$0xff] %v655
      %688 = vst [vmem:[#allocation2 + $0x80] sm:$0xff] %v656
      %689 = vst [vmem:[#allocation2 + $0x88] sm:$0xff] %v657
      %690 = vst [vmem:[#allocation2 + $0x90] sm:$0xff] %v658
      %691 = vst [vmem:[#allocation2 + $0x98] sm:$0xff] %v659
      %692 = vst [vmem:[#allocation2 + $0xa0] sm:$0xff] %v660
      %693 = vst [vmem:[#allocation2 + $0xa8] sm:$0xff] %v661
      %694 = vst [vmem:[#allocation2 + $0xb0] sm:$0xff] %v662
      %695 = vst [vmem:[#allocation2 + $0xb8] sm:$0xff] %v663
      %696 = vst [vmem:[#allocation2 + $0xc0] sm:$0xff] %v664
      %697 = vst [vmem:[#allocation2 + $0xc8] sm:$0xff] %v665
      %698 = vst [vmem:[#allocation2 + $0xd0] sm:$0xff] %v666
      %699 = vst [vmem:[#allocation2 + $0xd8] sm:$0xff] %v667
      %700 = vst [vmem:[#allocation2 + $0xe0] sm:$0xff] %v668
      %701 = vst [vmem:[#allocation2 + $0xe8] sm:$0xff] %v669
      %702 = vst [vmem:[#allocation2 + $0xf0] sm:$0xff] %v670
      %703 = vst [vmem:[#allocation2 + $0xf8] sm:$0xff] %v671
      // Predicated region
      $region33: #{discriminator_forward.5} parent=27 // pred_check
        %p704 = pneg %p219
      $region34: #{discriminator_forward.5} parent=27 // pred_check_branch
        %706 = sbr.rel (%p704) target = $region36
      $region35: #{discriminator_forward.5} parent=27 // pred_region
        %v707 = vld [vmem:[#allocation2] sm:$0xff]
        %v708 = vld [vmem:[#allocation2 + $0x8] sm:$0xff]
        %v709 = vld [vmem:[#allocation2 + $0x10] sm:$0xff]
        %v710 = vld [vmem:[#allocation2 + $0x18] sm:$0xff]
        %v711 = vld [vmem:[#allocation2 + $0x20] sm:$0xff]
        %v712 = vld [vmem:[#allocation2 + $0x28] sm:$0xff]
        %v713 = vld [vmem:[#allocation2 + $0x30] sm:$0xff]
        %v714 = vld [vmem:[#allocation2 + $0x38] sm:$0xff]
        %v715 = vld [vmem:[#allocation2 + $0x40] sm:$0xff]
        %v716 = vld [vmem:[#allocation2 + $0x48] sm:$0xff]
        %v717 = vld [vmem:[#allocation2 + $0x50] sm:$0xff]
        %v718 = vld [vmem:[#allocation2 + $0x58] sm:$0xff]
        %v719 = vld [vmem:[#allocation2 + $0x60] sm:$0xff]
        %v720 = vld [vmem:[#allocation2 + $0x68] sm:$0xff]
        %v721 = vld [vmem:[#allocation2 + $0x70] sm:$0xff]
        %v722 = vld [vmem:[#allocation2 + $0x78] sm:$0xff]
        %v723 = vld [vmem:[#allocation2 + $0x80] sm:$0xff]
        %v724 = vld [vmem:[#allocation2 + $0x88] sm:$0xff]
        %v725 = vld [vmem:[#allocation2 + $0x90] sm:$0xff]
        %v726 = vld [vmem:[#allocation2 + $0x98] sm:$0xff]
        %v727 = vld [vmem:[#allocation2 + $0xa0] sm:$0xff]
        %v728 = vld [vmem:[#allocation2 + $0xa8] sm:$0xff]
        %v729 = vld [vmem:[#allocation2 + $0xb0] sm:$0xff]
        %v730 = vld [vmem:[#allocation2 + $0xb8] sm:$0xff]
        %v731 = vld [vmem:[#allocation2 + $0xc0] sm:$0xff]
        %v732 = vld [vmem:[#allocation2 + $0xc8] sm:$0xff]
        %v733 = vld [vmem:[#allocation2 + $0xd0] sm:$0xff]
        %v734 = vld [vmem:[#allocation2 + $0xd8] sm:$0xff]
        %v735 = vld [vmem:[#allocation2 + $0xe0] sm:$0xff]
        %v736 = vld [vmem:[#allocation2 + $0xe8] sm:$0xff]
        %v737 = vld [vmem:[#allocation2 + $0xf0] sm:$0xff]
        %v738 = vld [vmem:[#allocation2 + $0xf8] sm:$0xff]
        %vm739 = vcmp.ge.f32.partialorder %v707, 0.0
        %vm740 = vcmp.ge.f32.partialorder %v708, 0.0
        %vm741 = vcmp.ge.f32.partialorder %v709, 0.0
        %vm742 = vcmp.ge.f32.partialorder %v710, 0.0
        %vm743 = vcmp.ge.f32.partialorder %v711, 0.0
        %vm744 = vcmp.ge.f32.partialorder %v712, 0.0
        %vm745 = vcmp.ge.f32.partialorder %v713, 0.0
        %vm746 = vcmp.ge.f32.partialorder %v714, 0.0
        %vm747 = vcmp.ge.f32.partialorder %v715, 0.0
        %vm748 = vcmp.ge.f32.partialorder %v716, 0.0
        %vm749 = vcmp.ge.f32.partialorder %v717, 0.0
        %vm750 = vcmp.ge.f32.partialorder %v718, 0.0
        %vm751 = vcmp.ge.f32.partialorder %v719, 0.0
        %vm752 = vcmp.ge.f32.partialorder %v720, 0.0
        %vm753 = vcmp.ge.f32.partialorder %v721, 0.0
        %vm754 = vcmp.ge.f32.partialorder %v722, 0.0
        %vm755 = vcmp.ge.f32.partialorder %v723, 0.0
        %vm756 = vcmp.ge.f32.partialorder %v724, 0.0
        %vm757 = vcmp.ge.f32.partialorder %v725, 0.0
        %vm758 = vcmp.ge.f32.partialorder %v726, 0.0
        %vm759 = vcmp.ge.f32.partialorder %v727, 0.0
        %vm760 = vcmp.ge.f32.partialorder %v728, 0.0
        %vm761 = vcmp.ge.f32.partialorder %v729, 0.0
        %vm762 = vcmp.ge.f32.partialorder %v730, 0.0
        %vm763 = vcmp.ge.f32.partialorder %v731, 0.0
        %vm764 = vcmp.ge.f32.partialorder %v732, 0.0
        %vm765 = vcmp.ge.f32.partialorder %v733, 0.0
        %vm766 = vcmp.ge.f32.partialorder %v734, 0.0
        %vm767 = vcmp.ge.f32.partialorder %v735, 0.0
        %vm768 = vcmp.ge.f32.partialorder %v736, 0.0
        %vm769 = vcmp.ge.f32.partialorder %v737, 0.0
        %vm770 = vcmp.ge.f32.partialorder %v738, 0.0
        %v771 = vmul.f32 %v707, 0.2
        %v772 = vmul.f32 %v708, 0.2
        %v773 = vmul.f32 %v709, 0.2
        %v774 = vmul.f32 %v710, 0.2
        %v775 = vmul.f32 %v711, 0.2
        %v776 = vmul.f32 %v712, 0.2
        %v777 = vmul.f32 %v713, 0.2
        %v778 = vmul.f32 %v714, 0.2
        %v779 = vmul.f32 %v715, 0.2
        %v780 = vmul.f32 %v716, 0.2
        %v781 = vmul.f32 %v717, 0.2
        %v782 = vmul.f32 %v718, 0.2
        %v783 = vmul.f32 %v719, 0.2
        %v784 = vmul.f32 %v720, 0.2
        %v785 = vmul.f32 %v721, 0.2
        %v786 = vmul.f32 %v722, 0.2
        %v787 = vmul.f32 %v723, 0.2
        %v788 = vmul.f32 %v724, 0.2
        %v789 = vmul.f32 %v725, 0.2
        %v790 = vmul.f32 %v726, 0.2
        %v791 = vmul.f32 %v727, 0.2
        %v792 = vmul.f32 %v728, 0.2
        %v793 = vmul.f32 %v729, 0.2
        %v794 = vmul.f32 %v730, 0.2
        %v795 = vmul.f32 %v731, 0.2
        %v796 = vmul.f32 %v732, 0.2
        %v797 = vmul.f32 %v733, 0.2
        %v798 = vmul.f32 %v734, 0.2
        %v799 = vmul.f32 %v735, 0.2
        %v800 = vmul.f32 %v736, 0.2
        %v801 = vmul.f32 %v737, 0.2
        %v802 = vmul.f32 %v738, 0.2
        %v803 = vsel %vm739, %v707, %v771
        %v804 = vsel %vm740, %v708, %v772
        %v805 = vsel %vm741, %v709, %v773
        %v806 = vsel %vm742, %v710, %v774
        %v807 = vsel %vm743, %v711, %v775
        %v808 = vsel %vm744, %v712, %v776
        %v809 = vsel %vm745, %v713, %v777
        %v810 = vsel %vm746, %v714, %v778
        %v811 = vsel %vm747, %v715, %v779
        %v812 = vsel %vm748, %v716, %v780
        %v813 = vsel %vm749, %v717, %v781
        %v814 = vsel %vm750, %v718, %v782
        %v815 = vsel %vm751, %v719, %v783
        %v816 = vsel %vm752, %v720, %v784
        %v817 = vsel %vm753, %v721, %v785
        %v818 = vsel %vm754, %v722, %v786
        %v819 = vsel %vm755, %v723, %v787
        %v820 = vsel %vm756, %v724, %v788
        %v821 = vsel %vm757, %v725, %v789
        %v822 = vsel %vm758, %v726, %v790
        %v823 = vsel %vm759, %v727, %v791
        %v824 = vsel %vm760, %v728, %v792
        %v825 = vsel %vm761, %v729, %v793
        %v826 = vsel %vm762, %v730, %v794
        %v827 = vsel %vm763, %v731, %v795
        %v828 = vsel %vm764, %v732, %v796
        %v829 = vsel %vm765, %v733, %v797
        %v830 = vsel %vm766, %v734, %v798
        %v831 = vsel %vm767, %v735, %v799
        %v832 = vsel %vm768, %v736, %v800
        %v833 = vsel %vm769, %v737, %v801
        %v834 = vsel %vm770, %v738, %v802
        %835 = vst [vmem:[%s216] sm:$0xff] %v803
        %836 = vst [vmem:[%s216 + $0x8] sm:$0xff] %v804
        %837 = vst [vmem:[%s216 + $0x10] sm:$0xff] %v805
        %838 = vst [vmem:[%s216 + $0x18] sm:$0xff] %v806
        %839 = vst [vmem:[%s216 + $0x20] sm:$0xff] %v807
        %840 = vst [vmem:[%s216 + $0x28] sm:$0xff] %v808
        %841 = vst [vmem:[%s216 + $0x30] sm:$0xff] %v809
        %842 = vst [vmem:[%s216 + $0x38] sm:$0xff] %v810
        %843 = vst [vmem:[%s216 + $0x40] sm:$0xff] %v811
        %844 = vst [vmem:[%s216 + $0x48] sm:$0xff] %v812
        %845 = vst [vmem:[%s216 + $0x50] sm:$0xff] %v813
        %846 = vst [vmem:[%s216 + $0x58] sm:$0xff] %v814
        %847 = vst [vmem:[%s216 + $0x60] sm:$0xff] %v815
        %848 = vst [vmem:[%s216 + $0x68] sm:$0xff] %v816
        %849 = vst [vmem:[%s216 + $0x70] sm:$0xff] %v817
        %850 = vst [vmem:[%s216 + $0x78] sm:$0xff] %v818
        %851 = vst [vmem:[%s216 + $0x80] sm:$0xff] %v819
        %852 = vst [vmem:[%s216 + $0x88] sm:$0xff] %v820
        %853 = vst [vmem:[%s216 + $0x90] sm:$0xff] %v821
        %854 = vst [vmem:[%s216 + $0x98] sm:$0xff] %v822
        %855 = vst [vmem:[%s216 + $0xa0] sm:$0xff] %v823
        %856 = vst [vmem:[%s216 + $0xa8] sm:$0xff] %v824
        %857 = vst [vmem:[%s216 + $0xb0] sm:$0xff] %v825
        %858 = vst [vmem:[%s216 + $0xb8] sm:$0xff] %v826
        %859 = vst [vmem:[%s216 + $0xc0] sm:$0xff] %v827
        %860 = vst [vmem:[%s216 + $0xc8] sm:$0xff] %v828
        %861 = vst [vmem:[%s216 + $0xd0] sm:$0xff] %v829
        %862 = vst [vmem:[%s216 + $0xd8] sm:$0xff] %v830
        %863 = vst [vmem:[%s216 + $0xe0] sm:$0xff] %v831
        %864 = vst [vmem:[%s216 + $0xe8] sm:$0xff] %v832
        %865 = vst [vmem:[%s216 + $0xf0] sm:$0xff] %v833
        %866 = vst [vmem:[%s216 + $0xf8] sm:$0xff] %v834
      $region36: #{discriminator_forward.5} parent=27 // pred_fallthru
        _
      %s867 = smul.u32 32, %s18
      %p868 = scmp.lt.s32.totalorder %s867, 63
      %s869 = scalar_select %p868, %s867, 63
      %p870 = scmp.lt.s32.totalorder %s19, 0
      %s871 = scalar_select %p870, %s19, 0
      %s872 = sadd.s32 %s871, %s869
      %s873 = smul.addr %s872, 8
      %s874 = scalar_lea.vmem %s2, %s873
      // Predicated region
      $region37: #{discriminator_forward.5} parent=27 // pred_check
        %p875 = pneg %p108
      $region38: #{discriminator_forward.5} parent=27 // pred_check_branch
        %877 = sbr.rel (%p875) target = $region40
      $region39: #{discriminator_forward.5} parent=27 // pred_region
        %s878 = smul.u32 32, %s18
      $region40: #{discriminator_forward.5} parent=27 // pred_fallthru
        _
    $region28: #{discriminator_forward.5} parent=5 // pred_fallthru
      _
    %p879 = scmp.le.s32.totalorder 2, %s8
    // Predicated region
    $region41: #{discriminator_forward.5} parent=5 // pred_check
      %p880 = pneg %p879
    $region42: #{discriminator_forward.5} parent=5 // pred_check_branch
      %882 = sbr.rel (%p880) target = $region44
    $region43: #{discriminator_forward.5} parent=5 // pred_region
      %s883 = ssub.s32 %s8, 2
      // Predicated region
      $region45: #{discriminator_forward.5} parent=43 // pred_check
        %p884 = pneg %p114
      $region46: #{discriminator_forward.5} parent=43 // pred_check_branch
        %886 = sbr.rel (%p884) target = $region48
      $region47: #{discriminator_forward.5} parent=43 // pred_region
        %s887 = smul.u32 32, %s21
        %p888 = scmp.lt.s32.totalorder %s887, 63
        %s889 = scalar_select %p888, %s887, 63
        %p890 = scmp.lt.s32.totalorder %s22, 0
        %s891 = scalar_select %p890, %s22, 0
        %s892 = sadd.s32 %s891, %s889
        %s893 = smul.addr %s892, 8
        %s894 = scalar_lea.vmem %s2, %s893
      $region48: #{discriminator_forward.5} parent=43 // pred_fallthru
        _
    $region44: #{discriminator_forward.5} parent=5 // pred_fallthru
      _
  $region6: #{discriminator_forward.5} parent=0 // loop_footer
    %s12 = sadd.s32 1, %s8
  $region7: #{discriminator_forward.5} parent=0 // loop_footer_branch
    %7 = sbr.rel target = $region3
  $region8: #{discriminator_forward.5} parent=0 // loop_exit
    _

// kernel: discriminator_forward.6
$region0: #{discriminator_forward.6}
  #allocation0 [shape = 'u32[]', space=smem, size = 0x4, offset = 0x4, fixed_abs, tag = 'smem constant byte address 0x4 - core index']
  #allocation1 [shape = 'u32[144,128]{1,0:T(1,128)}', space=vmem, size = 0x12000, scoped, tag = 'internal scratch']
  #allocation2 [shape = 'f32[128,128]{1,0:T(8,128)}', space=vmem, size = 0x10000, scoped, tag = 'scratch operand']
  %s0 = inlined_call_operand.vmem [shape: bf16[128,1024], index: 0, kind: input, shape index: {}]
  %s1 = inlined_call_operand.vmem [shape: bf16[1024,128], index: 1, kind: input, shape index: {}]
  %s2 = inlined_call_operand.vmem [shape: f32[128,128], index: 2, kind: output, shape index: {}]
  %s3 = sld [smem:[#allocation0]]
  $region72: #{discriminator_forward.6} parent=0
    _
  %s5 = ssub.s32 1, %s3
  %s6 = scalar_select 0, %s5, %s3
  $region1: #{discriminator_forward.6} parent=0
    #allocation3 [shape = 'u8[262144]{0}', space=vmem, size = 0x40000, scoped, tag = 'input window, operand 0']
    loop: start=0, step=1, limit=4
    $region2: #{discriminator_forward.6} parent=1 // loop_pre_header
      _
    $region3: #{discriminator_forward.6} parent=1 // loop_header
      %s8 = sphi 0, %s12
      %p9 = scmp.ge.s32.totalorder %s8, 4
      %s15 = sphi 0, %s34
      %s16 = sphi 0, %s30
      %s17 = sphi 0, %s26
      %s18 = sphi 0, %s15
      %s19 = sphi 0, %s16
      %s20 = sphi 0, %s17
      %s21 = sphi 0, %s18
      %s22 = sphi 0, %s19
      %s23 = sphi 0, %s20
      %s39 = sphi 0, %s41
      %s42 = sphi 0, %s39
      %s43 = sphi 0, %s42
      %s59 = sphi 0, %s43
      %s67 = sphi 0, %s69
      %s70 = sphi 0, %s67
      %s71 = sphi 0, %s70
      %s87 = sphi 0, %s71
      %s95 = sphi 0, %s97
      %s98 = sphi 0, %s95
      %s99 = sphi 0, %s98
      %s115 = sphi 0, %s99
    $region4: #{discriminator_forward.6} parent=1 // loop_header_branch
      %11 = sbr.rel (%p9) target = $region8
    $region5: #{discriminator_forward.6} parent=1 // loop_body
      %s13 = ssub.s32 %s8, 1
      %s14 = ssub.s32 %s8, 2
      %s24 = sadd.s32 1, %s17
      %p25 = scmp.ge.s32.totalorder %s24, 2
      %s26 = scalar_select %p25, 0, %s24
      %s27 = sadd.s32 1, %s16
      %s28 = scalar_select %p25, %s27, %s16
      %p29 = scmp.ge.s32.totalorder %s28, 1
      %s30 = scalar_select %p29, 0, %s28
      %s31 = sadd.s32 1, %s15
      %s32 = scalar_select %p29, %s31, %s15
      %p33 = scmp.ge.s32.totalorder %s32, 1
      %s34 = scalar_select %p33, 0, %s32
      %s35 = ssub.s32 %s15, %s34
      %s36 = ssub.s32 %s17, %s26
      %s37 = sor.u32 %s35, %s36
      %p38 = scmp.eq.s32.totalorder %s37, 0
      %s40 = sadd.s32 %s39, 1
      %s41 = scalar_select %p38, %s39, %s40
      %p44 = pneg %p38
      %p45 = scmp.eq.s32.totalorder %s8, 1
      %p46 = por %p44, %p45
      %p47 = scmp.ne.s32.totalorder %s39, %s42
      %p48 = scmp.eq.s32.totalorder %s8, 0
      %p49 = por %p47, %p48
      %p50 = scmp.ne.s32.totalorder %s39, %s42
      %p51 = scmp.eq.s32.totalorder %s13, 1
      %p52 = por %p50, %p51
      %p53 = scmp.ne.s32.totalorder %s42, %s43
      %p54 = scmp.eq.s32.totalorder %s13, 0
      %p55 = por %p53, %p54
      %p56 = scmp.ne.s32.totalorder %s42, %s43
      %p57 = scmp.eq.s32.totalorder %s14, 1
      %p58 = por %p56, %p57
      %p60 = scmp.ne.s32.totalorder %s43, %s59
      %p61 = scmp.eq.s32.totalorder %s14, 0
      %p62 = por %p60, %p61
      %s63 = ssub.s32 %s17, %s26
      %s64 = ssub.s32 %s16, %s30
      %s65 = sor.u32 %s63, %s64
      %p66 = scmp.eq.s32.totalorder %s65, 0
      %s68 = sadd.s32 %s67, 1
      %s69 = scalar_select %p66, %s67, %s68
      %p72 = pneg %p66
      %p73 = scmp.eq.s32.totalorder %s8, 1
      %p74 = por %p72, %p73
      %p75 = scmp.ne.s32.totalorder %s67, %s70
      %p76 = scmp.eq.s32.totalorder %s8, 0
      %p77 = por %p75, %p76
      %p78 = scmp.ne.s32.totalorder %s67, %s70
      %p79 = scmp.eq.s32.totalorder %s13, 1
      %p80 = por %p78, %p79
      %p81 = scmp.ne.s32.totalorder %s70, %s71
      %p82 = scmp.eq.s32.totalorder %s13, 0
      %p83 = por %p81, %p82
      %p84 = scmp.ne.s32.totalorder %s70, %s71
      %p85 = scmp.eq.s32.totalorder %s14, 1
      %p86 = por %p84, %p85
      %p88 = scmp.ne.s32.totalorder %s71, %s87
      %p89 = scmp.eq.s32.totalorder %s14, 0
      %p90 = por %p88, %p89
      %s91 = ssub.s32 %s15, %s34
      %s92 = ssub.s32 %s16, %s30
      %s93 = sor.u32 %s91, %s92
      %p94 = scmp.eq.s32.totalorder %s93, 0
      %s96 = sadd.s32 %s95, 1
      %s97 = scalar_select %p94, %s95, %s96
      %p100 = pneg %p94
      %p101 = scmp.eq.s32.totalorder %s8, 1
      %p102 = por %p100, %p101
      %p103 = scmp.ne.s32.totalorder %s95, %s98
      %p104 = scmp.eq.s32.totalorder %s8, 0
      %p105 = por %p103, %p104
      %p106 = scmp.ne.s32.totalorder %s95, %s98
      %p107 = scmp.eq.s32.totalorder %s13, 1
      %p108 = por %p106, %p107
      %p109 = scmp.ne.s32.totalorder %s98, %s99
      %p110 = scmp.eq.s32.totalorder %s13, 0
      %p111 = por %p109, %p110
      %p112 = scmp.ne.s32.totalorder %s98, %s99
      %p113 = scmp.eq.s32.totalorder %s14, 1
      %p114 = por %p112, %p113
      %p116 = scmp.ne.s32.totalorder %s99, %s115
      %p117 = scmp.eq.s32.totalorder %s14, 0
      %p118 = por %p116, %p117
      %p119 = scmp.le.s32.totalorder 1, %s8
      %p120 = scmp.lt.s32.totalorder %s8, 3
      %p121 = pnand %p119, %p120
      %p122 = pneg %p121
      // Predicated region
      $region9: #{discriminator_forward.6} parent=5 // pred_check
        _
      $region10: #{discriminator_forward.6} parent=5 // pred_check_branch
        %124 = sbr.rel (%p121) target = $region12
      $region11: #{discriminator_forward.6} parent=5 // pred_region
        %s125 = ssub.s32 %s8, 1
      $region12: #{discriminator_forward.6} parent=5 // pred_fallthru
        _
      %p126 = scmp.lt.s32.totalorder %s8, 2
      // Predicated region
      $region13: #{discriminator_forward.6} parent=5 // pred_check
        %p127 = pneg %p126
      $region14: #{discriminator_forward.6} parent=5 // pred_check_branch
        %129 = sbr.rel (%p127) target = $region16
      $region15: #{discriminator_forward.6} parent=5 // pred_region
        // Predicated region
        $region17: #{discriminator_forward.6} parent=15 // pred_check
          %p130 = pneg %p49
        $region18: #{discriminator_forward.6} parent=15 // pred_check_branch
          %132 = sbr.rel (%p130) target = $region20
        $region19: #{discriminator_forward.6} parent=15 // pred_region
          %s133 = sand.u32 %s39, 1
          %s134 = sand.u32 %s39, 1
          %s135 = smul.addr %s134, 256
          %s136 = scalar_lea.vmem [#allocation3], %s135
          %s137 = smul.u32 16, %s15
          %s138 = smul.u32 4, %s17
          %s139 = smul.addr %s137, 8
          %s140 = sadd.s32 %s138, %s139
          %s141 = smul.addr %s140, 4
          %s142 = scalar_lea.vmem %s0, %s141
          // Predicated region
          $region21: #{discriminator_forward.6} parent=19 // pred_check
            _
          $region22: #{discriminator_forward.6} parent=19 // pred_check_branch
            %144 = sbr.rel (0) target = $region24
          $region23: #{discriminator_forward.6} parent=19 // pred_region
            // Predicated region
            $region25: #{discriminator_forward.6} parent=23 // pred_check
              _
            $region26: #{discriminator_forward.6} parent=23 // pred_check_branch
              %146 = sbr.rel (0) target = $region28
            $region27: #{discriminator_forward.6} parent=23 // pred_region
              loop: start=0, step=1, limit=1
              $region29: #{discriminator_forward.6} parent=27 // loop_pre_header
                _
              $region30: #{discriminator_forward.6} parent=27 // loop_header
                %s148 = sphi 0, %s152
                %p149 = scmp.ge.s32.totalorder %s148, 1
                %s153 = sphi %s142, %s142
                %s154 = sphi %s136, %s136
              $region31: #{discriminator_forward.6} parent=27 // loop_header_branch
                %151 = sbr.rel (%p149) target = $region35
              $region32: #{discriminator_forward.6} parent=27 // loop_body
                %v155 = vld [vmem:[%s153] sm:$0xff]
                %156 = vst [vmem:[%s154] sm:$0xff] %v155
                %v157 = vld [vmem:[%s153 + $0x8] sm:$0xff]
                %158 = vst [vmem:[%s154 + $0x8] sm:$0xff] %v157
                %v159 = vld [vmem:[%s153 + $0x20] sm:$0xff]
                %160 = vst [vmem:[%s154 + $0x10] sm:$0xff] %v159
                %v161 = vld [vmem:[%s153 + $0x28] sm:$0xff]
                %162 = vst [vmem:[%s154 + $0x18] sm:$0xff] %v161
                %v163 = vld [vmem:[%s153 + $0x40] sm:$0xff]
                %164 = vst [vmem:[%s154 + $0x20] sm:$0xff] %v163
                %v165 = vld [vmem:[%s153 + $0x48] sm:$0xff]
                %166 = vst [vmem:[%s154 + $0x28] sm:$0xff] %v165
                %v167 = vld [vmem:[%s153 + $0x60] sm:$0xff]
                %168 = vst [vmem:[%s154 + $0x30] sm:$0xff] %v167
                %v169 = vld [vmem:[%s153 + $0x68] sm:$0xff]
                %170 = vst [vmem:[%s154 + $0x38] sm:$0xff] %v169
                %v171 = vld [vmem:[%s153 + $0x80] sm:$0xff]
                %172 = vst [vmem:[%s154 + $0x40] sm:$0xff] %v171
                %v173 = vld [vmem:[%s153 + $0x88] sm:$0xff]
                %174 = vst [vmem:[%s154 + $0x48] sm:$0xff] %v173
                %v175 = vld [vmem:[%s153 + $0xa0] sm:$0xff]
                %176 = vst [vmem:[%s154 + $0x50] sm:$0xff] %v175
                %v177 = vld [vmem:[%s153 + $0xa8] sm:$0xff]
                %178 = vst [vmem:[%s154 + $0x58] sm:$0xff] %v177
                %v179 = vld [vmem:[%s153 + $0xc0] sm:$0xff]
                %180 = vst [vmem:[%s154 + $0x60] sm:$0xff] %v179
                %v181 = vld [vmem:[%s153 + $0xc8] sm:$0xff]
                %182 = vst [vmem:[%s154 + $0x68] sm:$0xff] %v181
                %v183 = vld [vmem:[%s153 + $0xe0] sm:$0xff]
                %184 = vst [vmem:[%s154 + $0x70] sm:$0xff] %v183
                %v185 = vld [vmem:[%s153 + $0xe8] sm:$0xff]
                %186 = vst [vmem:[%s154 + $0x78] sm:$0xff] %v185
                %v187 = vld [vmem:[%s153 + $0x100] sm:$0xff]
                %188 = vst [vmem:[%s154 + $0x80] sm:$0xff] %v187
                %v189 = vld [vmem:[%s153 + $0x108] sm:$0xff]
                %190 = vst [vmem:[%s154 + $0x88] sm:$0xff] %v189
                %v191 = vld [vmem:[%s153 + $0x120] sm:$0xff]
                %192 = vst [vmem:[%s154 + $0x90] sm:$0xff] %v191
                %v193 = vld [vmem:[%s153 + $0x128] sm:$0xff]
                %194 = vst [vmem:[%s154 + $0x98] sm:$0xff] %v193
                %v195 = vld [vmem:[%s153 + $0x140] sm:$0xff]
                %196 = vst [vmem:[%s154 + $0xa0] sm:$0xff] %v195
                %v197 = vld [vmem:[%s153 + $0x148] sm:$0xff]
                %198 = vst [vmem:[%s154 + $0xa8] sm:$0xff] %v197
                %v199 = vld [vmem:[%s153 + $0x160] sm:$0xff]
                %200 = vst [vmem:[%s154 + $0xb0] sm:$0xff] %v199
                %v201 = vld [vmem:[%s153 + $0x168] sm:$0xff]
                %202 = vst [vmem:[%s154 + $0xb8] sm:$0xff] %v201
                %v203 = vld [vmem:[%s153 + $0x180] sm:$0xff]
                %204 = vst [vmem:[%s154 + $0xc0] sm:$0xff] %v203
                %v205 = vld [vmem:[%s153 + $0x188] sm:$0xff]
                %206 = vst [vmem:[%s154 + $0xc8] sm:$0xff] %v205
                %v207 = vld [vmem:[%s153 + $0x1a0] sm:$0xff]
                %208 = vst [vmem:[%s154 + $0xd0] sm:$0xff] %v207
                %v209 = vld [vmem:[%s153 + $0x1a8] sm:$0xff]
                %210 = vst [vmem:[%s154 + $0xd8] sm:$0xff] %v209
                %v211 = vld [vmem:[%s153 + $0x1c0] sm:$0xff]
                %212 = vst [vmem:[%s154 + $0xe0] sm:$0xff] %v211
                %v213 = vld [vmem:[%s153 + $0x1c8] sm:$0xff]
                %214 = vst [vmem:[%s154 + $0xe8] sm:$0xff] %v213
                %v215 = vld [vmem:[%s153 + $0x1e0] sm:$0xff]
                %216 = vst [vmem:[%s154 + $0xf0] sm:$0xff] %v215
                %v217 = vld [vmem:[%s153 + $0x1e8] sm:$0xff]
                %218 = vst [vmem:[%s154 + $0xf8] sm:$0xff] %v217
              $region33: #{discriminator_forward.6} parent=27 // loop_footer
                %s152 = sadd.s32 1, %s148
              $region34: #{discriminator_forward.6} parent=27 // loop_footer_branch
                %147 = sbr.rel target = $region30
              $region35: #{discriminator_forward.6} parent=27 // loop_exit
                _
            $region28: #{discriminator_forward.6} parent=23 // pred_fallthru
              _
            // Predicated region
            $region36: #{discriminator_forward.6} parent=23 // pred_check
              _
            $region37: #{discriminator_forward.6} parent=23 // pred_check_branch
              %220 = sbr.rel target = $region39
            $region38: #{discriminator_forward.6} parent=23 // pred_region
              _
            $region39: #{discriminator_forward.6} parent=23 // pred_fallthru
              _
          $region24: #{discriminator_forward.6} parent=19 // pred_fallthru
            _
          %221 = vnop
        $region20: #{discriminator_forward.6} parent=15 // pred_fallthru
          _
        // Predicated region
        $region40: #{discriminator_forward.6} parent=15 // pred_check
          %p222 = pneg %p77
        $region41: #{discriminator_forward.6} parent=15 // pred_check_branch
          %224 = sbr.rel (%p222) target = $region43
        $region42: #{discriminator_forward.6} parent=15 // pred_region
          %s225 = smul.u32 64, %s17
          %p226 = scmp.lt.s32.totalorder %s225, 127
          %s227 = scalar_select %p226, %s225, 127
          %p228 = scmp.lt.s32.totalorder %s16, 0
          %s229 = scalar_select %p228, %s16, 0
          %s230 = sadd.s32 %s229, %s227
          %s231 = smul.addr %s230, 4
          %s232 = scalar_lea.vmem %s1, %s231
          %s233 = smul.u32 64, %s17
        $region43: #{discriminator_forward.6} parent=15 // pred_fallthru
          _
      $region16: #{discriminator_forward.6} parent=5 // pred_fallthru
        _
      %p234 = scmp.le.s32.totalorder 1, %s8
      %p235 = scmp.lt.s32.totalorder %s8, 3
      %p236 = pnand %p234, %p235
      %p237 = pneg %p236
      // Predicated region
      $region44: #{discriminator_forward.6} parent=5 // pred_check
        _
      $region45: #{discriminator_forward.6} parent=5 // pred_check_branch
        %239 = sbr.rel (%p236) target = $region47
      $region46: #{discriminator_forward.6} parent=5 // pred_region
        %s240 = ssub.s32 %s8, 1
        %s241 = sand.u32 %s42, 1
        %s242 = sand.u32 %s42, 1
        %s243 = smul.addr %s242, 256
        %s244 = scalar_lea.vmem [#allocation3], %s243
        // Predicated region
        $region48: #{discriminator_forward.6} parent=46 // pred_check
          %p245 = pneg %p55
        $region49: #{discriminator_forward.6} parent=46 // pred_check_branch
          %247 = sbr.rel (%p245) target = $region51
        $region50: #{discriminator_forward.6} parent=46 // pred_region
          _
        $region51: #{discriminator_forward.6} parent=46 // pred_fallthru
          _
        %s248 = sand.u32 %s42, 1
        %s249 = sand.u32 %s42, 1
        %s250 = smul.addr %s249, 256
        %s251 = scalar_lea.vmem [#allocation3], %s250
        %p252 = pneg %p55
        %p253 = pneg %p52
        %s254 = smul.u32 64, %s20
        %p255 = scmp.lt.s32.totalorder %s254, 127
        %s256 = scalar_select %p255, %s254, 127
        %p257 = scmp.lt.s32.totalorder %s19, 0
        %s258 = scalar_select %p257, %s19, 0
        %s259 = sadd.s32 %s258, %s256
        %s260 = smul.addr %s259, 4
        %s261 = scalar_lea.vmem %s1, %s260
        %p262 = pneg %p83
        %p263 = pneg %p80
        %p264 = pneg %p111
        %p265 = pneg %p108
        %s266 = smul.u32 16, %s18
        %p267 = scmp.lt.s32.totalorder %s266, 15
        %s268 = scalar_select %p267, %s266, 15
        %p269 = scmp.lt.s32.totalorder %s19, 0
        %s270 = scalar_select %p269, %s19, 0
        %s271 = sadd.s32 %s270, %s268
        %s272 = smul.addr %s271, 8
        %s273 = scalar_lea.vmem %s2, %s272
        %s274 = smul.u32 16, %s18
        %s275 = smul.u32 4, %s20
        %s276 = smul.u32 64, %s20
        %p277 = scmp.lt.s32.totalorder %s276, 127
        %s278 = scalar_select %p277, %s276, 127
        %p279 = scmp.lt.s32.totalorder %s19, 0
        %s280 = scalar_select %p279, %s19, 0
        %s281 = sadd.s32 %s280, %s278
        %s282 = smul.addr %s281, 4
        %s283 = scalar_lea.vmem %s1, %s282
        %s284 = smul.u32 64, %s20
        %s285 = smul.u32 16, %s18
        %p286 = scmp.lt.s32.totalorder %s285, 15
        %s287 = scalar_select %p286, %s285, 15
        %p288 = scmp.lt.s32.totalorder %s19, 0
        %s289 = scalar_select %p288, %s19, 0
        %s290 = sadd.s32 %s289, %s287
        %s291 = smul.addr %s290, 8
        %s292 = scalar_lea.vmem %s2, %s291
        %s293 = smul.u32 16, %s18
        %p295 = scmp.eq.s32.totalorder %s20, 0
        // Predicated region
        $region52: #{discriminator_forward.6} parent=46 // pred_check
          %p296 = pneg %p295
        $region53: #{discriminator_forward.6} parent=46 // pred_check_branch
          %298 = sbr.rel (%p296) target = $region55
        $region54: #{discriminator_forward.6} parent=46 // pred_region
          %299 = vst [vmem:[#allocation2] sm:$0xff] 0.0
          %300 = vst [vmem:[#allocation2 + $0x8] sm:$0xff] 0.0
          %301 = vst [vmem:[#allocation2 + $0x10] sm:$0xff] 0.0
          %302 = vst [vmem:[#allocation2 + $0x18] sm:$0xff] 0.0
          %303 = vst [vmem:[#allocation2 + $0x20] sm:$0xff] 0.0
          %304 = vst [vmem:[#allocation2 + $0x28] sm:$0xff] 0.0
          %305 = vst [vmem:[#allocation2 + $0x30] sm:$0xff] 0.0
          %306 = vst [vmem:[#allocation2 + $0x38] sm:$0xff] 0.0
          %307 = vst [vmem:[#allocation2 + $0x40] sm:$0xff] 0.0
          %308 = vst [vmem:[#allocation2 + $0x48] sm:$0xff] 0.0
          %309 = vst [vmem:[#allocation2 + $0x50] sm:$0xff] 0.0
          %310 = vst [vmem:[#allocation2 + $0x58] sm:$0xff] 0.0
          %311 = vst [vmem:[#allocation2 + $0x60] sm:$0xff] 0.0
          %312 = vst [vmem:[#allocation2 + $0x68] sm:$0xff] 0.0
          %313 = vst [vmem:[#allocation2 + $0x70] sm:$0xff] 0.0
          %314 = vst [vmem:[#allocation2 + $0x78] sm:$0xff] 0.0
        $region55: #{discriminator_forward.6} parent=46 // pred_fallthru
          _
        %v315 = vld [vmem:[#allocation2] sm:$0xff]
        %v316 = vld [vmem:[#allocation2 + $0x8] sm:$0xff]
        %v317 = vld [vmem:[#allocation2 + $0x10] sm:$0xff]
        %v318 = vld [vmem:[#allocation2 + $0x18] sm:$0xff]
        %v319 = vld [vmem:[#allocation2 + $0x20] sm:$0xff]
        %v320 = vld [vmem:[#allocation2 + $0x28] sm:$0xff]
        %v321 = vld [vmem:[#allocation2 + $0x30] sm:$0xff]
        %v322 = vld [vmem:[#allocation2 + $0x38] sm:$0xff]
        %v323 = vld [vmem:[#allocation2 + $0x40] sm:$0xff]
        %v324 = vld [vmem:[#allocation2 + $0x48] sm:$0xff]
        %v325 = vld [vmem:[#allocation2 + $0x50] sm:$0xff]
        %v326 = vld [vmem:[#allocation2 + $0x58] sm:$0xff]
        %v327 = vld [vmem:[#allocation2 + $0x60] sm:$0xff]
        %v328 = vld [vmem:[#allocation2 + $0x68] sm:$0xff]
        %v329 = vld [vmem:[#allocation2 + $0x70] sm:$0xff]
        %v330 = vld [vmem:[#allocation2 + $0x78] sm:$0xff]
        %v331 = vld [vmem:[%s244] sm:$0xff]
        %v332 = vld [vmem:[%s244 + $0x8] sm:$0xff]
        %v333 = vld [vmem:[%s244 + $0x10] sm:$0xff]
        %v334 = vld [vmem:[%s244 + $0x18] sm:$0xff]
        %v335 = vld [vmem:[%s244 + $0x20] sm:$0xff]
        %v336 = vld [vmem:[%s244 + $0x28] sm:$0xff]
        %v337 = vld [vmem:[%s244 + $0x30] sm:$0xff]
        %v338 = vld [vmem:[%s244 + $0x38] sm:$0xff]
        %v339 = vld [vmem:[%s244 + $0x40] sm:$0xff]
        %v340 = vld [vmem:[%s244 + $0x48] sm:$0xff]
        %v341 = vld [vmem:[%s244 + $0x50] sm:$0xff]
        %v342 = vld [vmem:[%s244 + $0x58] sm:$0xff]
        %v343 = vld [vmem:[%s244 + $0x60] sm:$0xff]
        %v344 = vld [vmem:[%s244 + $0x68] sm:$0xff]
        %v345 = vld [vmem:[%s244 + $0x70] sm:$0xff]
        %v346 = vld [vmem:[%s244 + $0x78] sm:$0xff]
        %v347 = vld [vmem:[%s244 + $0x80] sm:$0xff]
        %v348 = vld [vmem:[%s244 + $0x88] sm:$0xff]
        %v349 = vld [vmem:[%s244 + $0x90] sm:$0xff]
        %v350 = vld [vmem:[%s244 + $0x98] sm:$0xff]
        %v351 = vld [vmem:[%s244 + $0xa0] sm:$0xff]
        %v352 = vld [vmem:[%s244 + $0xa8] sm:$0xff]
        %v353 = vld [vmem:[%s244 + $0xb0] sm:$0xff]
        %v354 = vld [vmem:[%s244 + $0xb8] sm:$0xff]
        %v355 = vld [vmem:[%s244 + $0xc0] sm:$0xff]
        %v356 = vld [vmem:[%s244 + $0xc8] sm:$0xff]
        %v357 = vld [vmem:[%s244 + $0xd0] sm:$0xff]
        %v358 = vld [vmem:[%s244 + $0xd8] sm:$0xff]
        %v359 = vld [vmem:[%s244 + $0xe0] sm:$0xff]
        %v360 = vld [vmem:[%s244 + $0xe8] sm:$0xff]
        %v361 = vld [vmem:[%s244 + $0xf0] sm:$0xff]
        %v362 = vld [vmem:[%s244 + $0xf8] sm:$0xff]
        %v363 = vld [vmem:[%s283] sm:$0xf]
        %v364 = vld [vmem:[%s283 + $0x4] sm:$0xf]
        %v365 = vld [vmem:[%s283 + $0x8] sm:$0xf]
        %v366 = vld [vmem:[%s283 + $0xc] sm:$0xf]
        %v367 = vld [vmem:[%s283 + $0x10] sm:$0xf]
        %v368 = vld [vmem:[%s283 + $0x14] sm:$0xf]
        %v369 = vld [vmem:[%s283 + $0x18] sm:$0xf]
        %v370 = vld [vmem:[%s283 + $0x1c] sm:$0xf]
        %v371 = vld [vmem:[%s283 + $0x20] sm:$0xf]
        %v372 = vld [vmem:[%s283 + $0x24] sm:$0xf]
        %v373 = vld [vmem:[%s283 + $0x28] sm:$0xf]
        %v374 = vld [vmem:[%s283 + $0x2c] sm:$0xf]
        %v375 = vld [vmem:[%s283 + $0x30] sm:$0xf]
        %v376 = vld [vmem:[%s283 + $0x34] sm:$0xf]
        %v377 = vld [vmem:[%s283 + $0x38] sm:$0xf]
        %v378 = vld [vmem:[%s283 + $0x3c] sm:$0xf]
        %v379 = vld [vmem:[%s283 + $0x40] sm:$0xf]
        %v380 = vld [vmem:[%s283 + $0x44] sm:$0xf]
        %v381 = vld [vmem:[%s283 + $0x48] sm:$0xf]
        %v382 = vld [vmem:[%s283 + $0x4c] sm:$0xf]
        %v383 = vld [vmem:[%s283 + $0x50] sm:$0xf]
        %v384 = vld [vmem:[%s283 + $0x54] sm:$0xf]
        %v385 = vld [vmem:[%s283 + $0x58] sm:$0xf]
        %v386 = vld [vmem:[%s283 + $0x5c] sm:$0xf]
        %v387 = vld [vmem:[%s283 + $0x60] sm:$0xf]
        %v388 = vld [vmem:[%s283 + $0x64] sm:$0xf]
        %v389 = vld [vmem:[%s283 + $0x68] sm:$0xf]
        %v390 = vld [vmem:[%s283 + $0x6c] sm:$0xf]
        %v391 = vld [vmem:[%s283 + $0x70] sm:$0xf]
        %v392 = vld [vmem:[%s283 + $0x74] sm:$0xf]
        %v393 = vld [vmem:[%s283 + $0x78] sm:$0xf]
        %v394 = vld [vmem:[%s283 + $0x7c] sm:$0xf]
        %v395 = vld [vmem:[%s283 + $0x80] sm:$0xf]
        %v396 = vld [vmem:[%s283 + $0x84] sm:$0xf]
        %v397 = vld [vmem:[%s283 + $0x88] sm:$0xf]
        %v398 = vld [vmem:[%s283 + $0x8c] sm:$0xf]
        %v399 = vld [vmem:[%s283 + $0x90] sm:$0xf]
        %v400 = vld [vmem:[%s283 + $0x94] sm:$0xf]
        %v401 = vld [vmem:[%s283 + $0x98] sm:$0xf]
        %v402 = vld [vmem:[%s283 + $0x9c] sm:$0xf]
        %v403 = vld [vmem:[%s283 + $0xa0] sm:$0xf]
        %v404 = vld [vmem:[%s283 + $0xa4] sm:$0xf]
        %v405 = vld [vmem:[%s283 + $0xa8] sm:$0xf]
        %v406 = vld [vmem:[%s283 + $0xac] sm:$0xf]
        %v407 = vld [vmem:[%s283 + $0xb0] sm:$0xf]
        %v408 = vld [vmem:[%s283 + $0xb4] sm:$0xf]
        %v409 = vld [vmem:[%s283 + $0xb8] sm:$0xf]
        %v410 = vld [vmem:[%s283 + $0xbc] sm:$0xf]
        %v411 = vld [vmem:[%s283 + $0xc0] sm:$0xf]
        %v412 = vld [vmem:[%s283 + $0xc4] sm:$0xf]
        %v413 = vld [vmem:[%s283 + $0xc8] sm:$0xf]
        %v414 = vld [vmem:[%s283 + $0xcc] sm:$0xf]
        %v415 = vld [vmem:[%s283 + $0xd0] sm:$0xf]
        %v416 = vld [vmem:[%s283 + $0xd4] sm:$0xf]
        %v417 = vld [vmem:[%s283 + $0xd8] sm:$0xf]
        %v418 = vld [vmem:[%s283 + $0xdc] sm:$0xf]
        %v419 = vld [vmem:[%s283 + $0xe0] sm:$0xf]
        %v420 = vld [vmem:[%s283 + $0xe4] sm:$0xf]
        %v421 = vld [vmem:[%s283 + $0xe8] sm:$0xf]
        %v422 = vld [vmem:[%s283 + $0xec] sm:$0xf]
        %v423 = vld [vmem:[%s283 + $0xf0] sm:$0xf]
        %v424 = vld [vmem:[%s283 + $0xf4] sm:$0xf]
        %v425 = vld [vmem:[%s283 + $0xf8] sm:$0xf]
        %v426 = vld [vmem:[%s283 + $0xfc] sm:$0xf]
        %v459 = vunpack.c.l.b16 %v331
        %v460 = vunpack.c.h.b16 %v331
        %v461 = vunpack.c.l.b16 %v332
        %v462 = vunpack.c.h.b16 %v332
        %v463 = vunpack.c.l.b16 %v333
        %v464 = vunpack.c.h.b16 %v333
        %v465 = vunpack.c.l.b16 %v334
        %v466 = vunpack.c.h.b16 %v334
        %v467 = vunpack.c.l.b16 %v335
        %v468 = vunpack.c.h.b16 %v335
        %v469 = vunpack.c.l.b16 %v336
        %v470 = vunpack.c.h.b16 %v336
        %v471 = vunpack.c.l.b16 %v337
        %v472 = vunpack.c.h.b16 %v337
        %v473 = vunpack.c.l.b16 %v338
        %v474 = vunpack.c.h.b16 %v338
        %v475 = vunpack.c.l.b16 %v339
        %v476 = vunpack.c.h.b16 %v339
        %v477 = vunpack.c.l.b16 %v340
        %v478 = vunpack.c.h.b16 %v340
        %v479 = vunpack.c.l.b16 %v341
        %v480 = vunpack.c.h.b16 %v341
        %v481 = vunpack.c.l.b16 %v342
        %v482 = vunpack.c.h.b16 %v342
        %v483 = vunpack.c.l.b16 %v343
        %v484 = vunpack.c.h.b16 %v343
        %v485 = vunpack.c.l.b16 %v344
        %v486 = vunpack.c.h.b16 %v344
        %v487 = vunpack.c.l.b16 %v345
        %v488 = vunpack.c.h.b16 %v345
        %v489 = vunpack.c.l.b16 %v346
        %v490 = vunpack.c.h.b16 %v346
        %v491 = vunpack.c.l.b16 %v347
        %v492 = vunpack.c.h.b16 %v347
        %v493 = vunpack.c.l.b16 %v348
        %v494 = vunpack.c.h.b16 %v348
        %v495 = vunpack.c.l.b16 %v349
        %v496 = vunpack.c.h.b16 %v349
        %v497 = vunpack.c.l.b16 %v350
        %v498 = vunpack.c.h.b16 %v350
        %v499 = vunpack.c.l.b16 %v351
        %v500 = vunpack.c.h.b16 %v351
        %v501 = vunpack.c.l.b16 %v352
        %v502 = vunpack.c.h.b16 %v352
        %v503 = vunpack.c.l.b16 %v353
        %v504 = vunpack.c.h.b16 %v353
        %v505 = vunpack.c.l.b16 %v354
        %v506 = vunpack.c.h.b16 %v354
        %v507 = vunpack.c.l.b16 %v355
        %v508 = vunpack.c.h.b16 %v355
        %v509 = vunpack.c.l.b16 %v356
        %v510 = vunpack.c.h.b16 %v356
        %v511 = vunpack.c.l.b16 %v357
        %v512 = vunpack.c.h.b16 %v357
        %v513 = vunpack.c.l.b16 %v358
        %v514 = vunpack.c.h.b16 %v358
        %v515 = vunpack.c.l.b16 %v359
        %v516 = vunpack.c.h.b16 %v359
        %v517 = vunpack.c.l.b16 %v360
        %v518 = vunpack.c.h.b16 %v360
        %v519 = vunpack.c.l.b16 %v361
        %v520 = vunpack.c.h.b16 %v361
        %v521 = vunpack.c.l.b16 %v362
        %v522 = vunpack.c.h.b16 %v362
        %v523 = vpack.c.b16 %v463, %v459
        %v524 = vpack.c.b16 %v464, %v460
        %v525 = vpack.c.b16 %v465, %v461
        %v526 = vpack.c.b16 %v466, %v462
        %v527 = vpack.c.b16 %v471, %v467
        %v528 = vpack.c.b16 %v472, %v468
        %v529 = vpack.c.b16 %v473, %v469
        %v530 = vpack.c.b16 %v474, %v470
        %v531 = vpack.c.b16 %v479, %v475
        %v532 = vpack.c.b16 %v480, %v476
        %v533 = vpack.c.b16 %v481, %v477
        %v534 = vpack.c.b16 %v482, %v478
        %v535 = vpack.c.b16 %v487, %v483
        %v536 = vpack.c.b16 %v488, %v484
        %v537 = vpack.c.b16 %v489, %v485
        %v538 = vpack.c.b16 %v490, %v486
        %v539 = vpack.c.b16 %v495, %v491
        %v540 = vpack.c.b16 %v496, %v492
        %v541 = vpack.c.b16 %v497, %v493
        %v542 = vpack.c.b16 %v498, %v494
        %v543 = vpack.c.b16 %v503, %v499
        %v544 = vpack.c.b16 %v504, %v500
        %v545 = vpack.c.b16 %v505, %v501
        %v546 = vpack.c.b16 %v506, %v502
        %v547 = vpack.c.b16 %v511, %v507
        %v548 = vpack.c.b16 %v512, %v508
        %v549 = vpack.c.b16 %v513, %v509
        %v550 = vpack.c.b16 %v514, %v510
        %v551 = vpack.c.b16 %v519, %v515
        %v552 = vpack.c.b16 %v520, %v516
        %v553 = vpack.c.b16 %v521, %v517
        %v554 = vpack.c.b16 %v522, %v518
        %v651 = vunpack.c.l.b16 %v363
        %v652 = vunpack.c.l.b16 %v364
        %v653 = vunpack.c.l.b16 %v365
        %v654 = vunpack.c.l.b16 %v366
        %v655 = vunpack.c.l.b16 %v367
        %v656 = vunpack.c.l.b16 %v368
        %v657 = vunpack.c.l.b16 %v369
        %v658 = vunpack.c.l.b16 %v370
        %v659 = vunpack.c.l.b16 %v371
        %v660 = vunpack.c.l.b16 %v372
        %v661 = vunpack.c.l.b16 %v373
        %v662 = vunpack.c.l.b16 %v374
        %v663 = vunpack.c.l.b16 %v375
        %v664 = vunpack.c.l.b16 %v376
        %v665 = vunpack.c.l.b16 %v377
        %v666 = vunpack.c.l.b16 %v378
        %v667 = vunpack.c.l.b16 %v379
        %v668 = vunpack.c.l.b16 %v380
        %v669 = vunpack.c.l.b16 %v381
        %v670 = vunpack.c.l.b16 %v382
        %v671 = vunpack.c.l.b16 %v383
        %v672 = vunpack.c.l.b16 %v384
        %v673 = vunpack.c.l.b16 %v385
        %v674 = vunpack.c.l.b16 %v386
        %v675 = vunpack.c.l.b16 %v387
        %v676 = vunpack.c.l.b16 %v388
        %v677 = vunpack.c.l.b16 %v389
        %v678 = vunpack.c.l.b16 %v390
        %v679 = vunpack.c.l.b16 %v391
        %v680 = vunpack.c.l.b16 %v392
        %v681 = vunpack.c.l.b16 %v393
        %v682 = vunpack.c.l.b16 %v394
        %v683 = vunpack.c.l.b16 %v395
        %v684 = vunpack.c.l.b16 %v396
        %v685 = vunpack.c.l.b16 %v397
        %v686 = vunpack.c.l.b16 %v398
        %v687 = vunpack.c.l.b16 %v399
        %v688 = vunpack.c.l.b16 %v400
        %v689 = vunpack.c.l.b16 %v401
        %v690 = vunpack.c.l.b16 %v402
        %v691 = vunpack.c.l.b16 %v403
        %v692 = vunpack.c.l.b16 %v404
        %v693 = vunpack.c.l.b16 %v405
        %v694 = vunpack.c.l.b16 %v406
        %v695 = vunpack.c.l.b16 %v407
        %v696 = vunpack.c.l.b16 %v408
        %v697 = vunpack.c.l.b16 %v409
        %v698 = vunpack.c.l.b16 %v410
        %v699 = vunpack.c.l.b16 %v411
        %v700 = vunpack.c.l.b16 %v412
        %v701 = vunpack.c.l.b16 %v413
        %v702 = vunpack.c.l.b16 %v414
        %v703 = vunpack.c.l.b16 %v415
        %v704 = vunpack.c.l.b16 %v416
        %v705 = vunpack.c.l.b16 %v417
        %v706 = vunpack.c.l.b16 %v418
        %v707 = vunpack.c.l.b16 %v419
        %v708 = vunpack.c.l.b16 %v420
        %v709 = vunpack.c.l.b16 %v421
        %v710 = vunpack.c.l.b16 %v422
        %v711 = vunpack.c.l.b16 %v423
        %v712 = vunpack.c.l.b16 %v424
        %v713 = vunpack.c.l.b16 %v425
        %v714 = vunpack.c.l.b16 %v426
        %v715 = vpack.c.b16 %v652, %v651
        %v716 = vpack.c.b16 %v654, %v653
        %v717 = vpack.c.b16 %v656, %v655
        %v718 = vpack.c.b16 %v658, %v657
        %v719 = vpack.c.b16 %v660, %v659
        %v720 = vpack.c.b16 %v662, %v661
        %v721 = vpack.c.b16 %v664, %v663
        %v722 = vpack.c.b16 %v666, %v665
        %v723 = vpack.c.b16 %v668, %v667
        %v724 = vpack.c.b16 %v670, %v669
        %v725 = vpack.c.b16 %v672, %v671
        %v726 = vpack.c.b16 %v674, %v673
        %v727 = vpack.c.b16 %v676, %v675
        %v728 = vpack.c.b16 %v678, %v677
        %v729 = vpack.c.b16 %v680, %v679
        %v730 = vpack.c.b16 %v682, %v681
        %v731 = vpack.c.b16 %v684, %v683
        %v732 = vpack.c.b16 %v686, %v685
        %v733 = vpack.c.b16 %v688, %v687
        %v734 = vpack.c.b16 %v690, %v689
        %v735 = vpack.c.b16 %v692, %v691
        %v736 = vpack.c.b16 %v694, %v693
        %v737 = vpack.c.b16 %v696, %v695
        %v738 = vpack.c.b16 %v698, %v697
        %v739 = vpack.c.b16 %v700, %v699
        %v740 = vpack.c.b16 %v702, %v701
        %v741 = vpack.c.b16 %v704, %v703
        %v742 = vpack.c.b16 %v706, %v705
        %v743 = vpack.c.b16 %v708, %v707
        %v744 = vpack.c.b16 %v710, %v709
        %v745 = vpack.c.b16 %v712, %v711
        %v746 = vpack.c.b16 %v714, %v713
        %779 = vmatprep.subr.bf16.mxu0 0
        %780 = vmatpush1.bf16.msra.mxu0 %v715
        %781 = vmatprep.subr.bf16.mxu0 0
        %782 = vmatpush1.bf16.msra.mxu0 %v716
        %783 = vmatprep.subr.bf16.mxu0 0
        %784 = vmatpush1.bf16.msra.mxu0 %v717
        %785 = vmatprep.subr.bf16.mxu0 0
        %786 = vmatpush1.bf16.msra.mxu0 %v718
        %787 = vmatprep.subr.bf16.mxu0 0
        %788 = vmatpush1.bf16.msra.mxu0 %v719
        %789 = vmatprep.subr.bf16.mxu0 0
        %790 = vmatpush1.bf16.msra.mxu0 %v720
        %791 = vmatprep.subr.bf16.mxu0 0
        %792 = vmatpush1.bf16.msra.mxu0 %v721
        %793 = vmatprep.subr.bf16.mxu0 0
        %794 = vmatpush1.bf16.msra.mxu0 %v722
        %795 = vmatprep.subr.bf16.mxu0 0
        %796 = vmatpush1.bf16.msra.mxu0 %v723
        %797 = vmatprep.subr.bf16.mxu0 0
        %798 = vmatpush1.bf16.msra.mxu0 %v724
        %799 = vmatprep.subr.bf16.mxu0 0
        %800 = vmatpush1.bf16.msra.mxu0 %v725
        %801 = vmatprep.subr.bf16.mxu0 0
        %802 = vmatpush1.bf16.msra.mxu0 %v726
        %803 = vmatprep.subr.bf16.mxu0 0
        %804 = vmatpush1.bf16.msra.mxu0 %v727
        %805 = vmatprep.subr.bf16.mxu0 0
        %806 = vmatpush1.bf16.msra.mxu0 %v728
        %807 = vmatprep.subr.bf16.mxu0 0
        %808 = vmatpush1.bf16.msra.mxu0 %v729
        %809 = vmatprep.subr.bf16.mxu0 0
        %810 = vmatpush1.bf16.msra.mxu0 %v730
        %811 = vmatprep.mubr.bf16.mxu0 %v524
        %812 = vmatmul.mubr.bf16.gmra.mrb[0].mxu0 %v523
        %v813 = vpop.f32.mrb[0].mxu0
        %v814 = vadd.f32 0.0, %v813
        %v815 = vpop.f32.mrb[0].mxu0
        %v816 = vpop.f32.mrb[0].mxu0
        %v817 = vadd.f32 0.0, %v816
        %v818 = vpop.f32.mrb[0].mxu0
        %819 = vmatprep.mubr.bf16.mxu0 %v528
        %820 = vmatmul.mubr.bf16.gmra.mrb[0].mxu0 %v527
        %v821 = vpop.f32.mrb[0].mxu0
        %v822 = vadd.f32 0.0, %v821
        %v823 = vpop.f32.mrb[0].mxu0
        %v824 = vpop.f32.mrb[0].mxu0
        %v825 = vadd.f32 0.0, %v824
        %v826 = vpop.f32.mrb[0].mxu0
        %827 = vmatprep.mubr.bf16.mxu0 %v532
        %828 = vmatmul.mubr.bf16.gmra.mrb[0].mxu0 %v531
        %v829 = vpop.f32.mrb[0].mxu0
        %v830 = vadd.f32 0.0, %v829
        %v831 = vpop.f32.mrb[0].mxu0
        %v832 = vpop.f32.mrb[0].mxu0
        %v833 = vadd.f32 0.0, %v832
        %v834 = vpop.f32.mrb[0].mxu0
        %835 = vmatprep.mubr.bf16.mxu0 %v536
        %836 = vmatmul.mubr.bf16.gmra.mrb[0].mxu0 %v535
        %v837 = vpop.f32.mrb[0].mxu0
        %v838 = vadd.f32 0.0, %v837
        %v839 = vpop.f32.mrb[0].mxu0
        %v840 = vpop.f32.mrb[0].mxu0
        %v841 = vadd.f32 0.0, %v840
        %v842 = vpop.f32.mrb[0].mxu0
        %843 = vmatprep.mubr.bf16.mxu0 %v540
        %844 = vmatmul.mubr.bf16.gmra.mrb[0].mxu0 %v539
        %v845 = vpop.f32.mrb[0].mxu0
        %v846 = vadd.f32 0.0, %v845
        %v847 = vpop.f32.mrb[0].mxu0
        %v848 = vpop.f32.mrb[0].mxu0
        %v849 = vadd.f32 0.0, %v848
        %v850 = vpop.f32.mrb[0].mxu0
        %851 = vmatprep.mubr.bf16.mxu0 %v544
        %852 = vmatmul.mubr.bf16.gmra.mrb[0].mxu0 %v543
        %v853 = vpop.f32.mrb[0].mxu0
        %v854 = vadd.f32 0.0, %v853
        %v855 = vpop.f32.mrb[0].mxu0
        %v856 = vpop.f32.mrb[0].mxu0
        %v857 = vadd.f32 0.0, %v856
        %v858 = vpop.f32.mrb[0].mxu0
        %859 = vmatprep.mubr.bf16.mxu0 %v548
        %860 = vmatmul.mubr.bf16.gmra.mrb[0].mxu0 %v547
        %v861 = vpop.f32.mrb[0].mxu0
        %v862 = vadd.f32 0.0, %v861
        %v863 = vpop.f32.mrb[0].mxu0
        %v864 = vpop.f32.mrb[0].mxu0
        %v865 = vadd.f32 0.0, %v864
        %v866 = vpop.f32.mrb[0].mxu0
        %867 = vmatprep.mubr.bf16.mxu0 %v552
        %868 = vmatmul.mubr.bf16.gmra.mrb[0].mxu0 %v551
        %v869 = vpop.f32.mrb[0].mxu0
        %v870 = vadd.f32 0.0, %v869
        %v871 = vpop.f32.mrb[0].mxu0
        %v872 = vpop.f32.mrb[0].mxu0
        %v873 = vadd.f32 0.0, %v872
        %v874 = vpop.f32.mrb[0].mxu0
        %875 = vdwg.mxu0
        %876 = vmatprep.subr.bf16.mxu0 0
        %877 = vmatpush1.bf16.msra.mxu0 %v731
        %878 = vmatprep.subr.bf16.mxu0 0
        %879 = vmatpush1.bf16.msra.mxu0 %v732
        %880 = vmatprep.subr.bf16.mxu0 0
        %881 = vmatpush1.bf16.msra.mxu0 %v733
        %882 = vmatprep.subr.bf16.mxu0 0
        %883 = vmatpush1.bf16.msra.mxu0 %v734
        %884 = vmatprep.subr.bf16.mxu0 0
        %885 = vmatpush1.bf16.msra.mxu0 %v735
        %886 = vmatprep.subr.bf16.mxu0 0
        %887 = vmatpush1.bf16.msra.mxu0 %v736
        %888 = vmatprep.subr.bf16.mxu0 0
        %889 = vmatpush1.bf16.msra.mxu0 %v737
        %890 = vmatprep.subr.bf16.mxu0 0
        %891 = vmatpush1.bf16.msra.mxu0 %v738
        %892 = vmatprep.subr.bf16.mxu0 0
        %893 = vmatpush1.bf16.msra.mxu0 %v739
        %894 = vmatprep.subr.bf16.mxu0 0
        %895 = vmatpush1.bf16.msra.mxu0 %v740
        %896 = vmatprep.subr.bf16.mxu0 0
        %897 = vmatpush1.bf16.msra.mxu0 %v741
        %898 = vmatprep.subr.bf16.mxu0 0
        %899 = vmatpush1.bf16.msra.mxu0 %v742
        %900 = vmatprep.subr.bf16.mxu0 0
        %901 = vmatpush1.bf16.msra.mxu0 %v743
        %902 = vmatprep.subr.bf16.mxu0 0
        %903 = vmatpush1.bf16.msra.mxu0 %v744
        %904 = vmatprep.subr.bf16.mxu0 0
        %905 = vmatpush1.bf16.msra.mxu0 %v745
        %906 = vmatprep.subr.bf16.mxu0 0
        %907 = vmatpush1.bf16.msra.mxu0 %v746
        %908 = vmatprep.mubr.bf16.mxu0 %v526
        %909 = vmatmul.mubr.bf16.gmra.mrb[0].mxu0 %v525
        %v910 = vpop.f32.mrb[0].mxu0
        %v911 = vadd.f32 %v814, %v910
        %v912 = vpop.f32.mrb[0].mxu0
        %v913 = vpop.f32.mrb[0].mxu0
        %v914 = vadd.f32 %v817, %v913
        %v915 = vpop.f32.mrb[0].mxu0
        %916 = vmatprep.mubr.bf16.mxu0 %v530
        %917 = vmatmul.mubr.bf16.gmra.mrb[0].mxu0 %v529
        %v918 = vpop.f32.mrb[0].mxu0
        %v919 = vadd.f32 %v822, %v918
        %v920 = vpop.f32.mrb[0].mxu0
        %v921 = vpop.f32.mrb[0].mxu0
        %v922 = vadd.f32 %v825, %v921
        %v923 = vpop.f32.mrb[0].mxu0
        %924 = vmatprep.mubr.bf16.mxu0 %v534
        %925 = vmatmul.mubr.bf16.gmra.mrb[0].mxu0 %v533
        %v926 = vpop.f32.mrb[0].mxu0
        %v927 = vadd.f32 %v830, %v926
        %v928 = vpop.f32.mrb[0].mxu0
        %v929 = vpop.f32.mrb[0].mxu0
        %v930 = vadd.f32 %v833, %v929
        %v931 = vpop.f32.mrb[0].mxu0
        %932 = vmatprep.mubr.bf16.mxu0 %v538
        %933 = vmatmul.mubr.bf16.gmra.mrb[0].mxu0 %v537
        %v934 = vpop.f32.mrb[0].mxu0
        %v935 = vadd.f32 %v838, %v934
        %v936 = vpop.f32.mrb[0].mxu0
        %v937 = vpop.f32.mrb[0].mxu0
        %v938 = vadd.f32 %v841, %v937
        %v939 = vpop.f32.mrb[0].mxu0
        %940 = vmatprep.mubr.bf16.mxu0 %v542
        %941 = vmatmul.mubr.bf16.gmra.mrb[0].mxu0 %v541
        %v942 = vpop.f32.mrb[0].mxu0
        %v943 = vadd.f32 %v846, %v942
        %v944 = vpop.f32.mrb[0].mxu0
        %v945 = vpop.f32.mrb[0].mxu0
        %v946 = vadd.f32 %v849, %v945
        %v947 = vpop.f32.mrb[0].mxu0
        %948 = vmatprep.mubr.bf16.mxu0 %v546
        %949 = vmatmul.mubr.bf16.gmra.mrb[0].mxu0 %v545
        %v950 = vpop.f32.mrb[0].mxu0
        %v951 = vadd.f32 %v854, %v950
        %v952 = vpop.f32.mrb[0].mxu0
        %v953 = vpop.f32.mrb[0].mxu0
        %v954 = vadd.f32 %v857, %v953
        %v955 = vpop.f32.mrb[0].mxu0
        %956 = vmatprep.mubr.bf16.mxu0 %v550
        %957 = vmatmul.mubr.bf16.gmra.mrb[0].mxu0 %v549
        %v958 = vpop.f32.mrb[0].mxu0
        %v959 = vadd.f32 %v862, %v958
        %v960 = vpop.f32.mrb[0].mxu0
        %v961 = vpop.f32.mrb[0].mxu0
        %v962 = vadd.f32 %v865, %v961
        %v963 = vpop.f32.mrb[0].mxu0
        %964 = vmatprep.mubr.bf16.mxu0 %v554
        %965 = vmatmul.mubr.bf16.gmra.mrb[0].mxu0 %v553
        %v966 = vpop.f32.mrb[0].mxu0
        %v967 = vadd.f32 %v870, %v966
        %v968 = vpop.f32.mrb[0].mxu0
        %v969 = vpop.f32.mrb[0].mxu0
        %v970 = vadd.f32 %v873, %v969
        %v971 = vpop.f32.mrb[0].mxu0
        %972 = vdwg.mxu0
        %v973 = vadd.f32 %v315, %v911
        %v974 = vadd.f32 %v316, %v914
        %v975 = vadd.f32 %v317, %v919
        %v976 = vadd.f32 %v318, %v922
        %v977 = vadd.f32 %v319, %v927
        %v978 = vadd.f32 %v320, %v930
        %v979 = vadd.f32 %v321, %v935
        %v980 = vadd.f32 %v322, %v938
        %v981 = vadd.f32 %v323, %v943
        %v982 = vadd.f32 %v324, %v946
        %v983 = vadd.f32 %v325, %v951
        %v984 = vadd.f32 %v326, %v954
        %v985 = vadd.f32 %v327, %v959
        %v986 = vadd.f32 %v328, %v962
        %v987 = vadd.f32 %v329, %v967
        %v988 = vadd.f32 %v330, %v970
        %989 = vst [vmem:[#allocation2] sm:$0xff] %v973
        %990 = vst [vmem:[#allocation2 + $0x8] sm:$0xff] %v974
        %991 = vst [vmem:[#allocation2 + $0x10] sm:$0xff] %v975
        %992 = vst [vmem:[#allocation2 + $0x18] sm:$0xff] %v976
        %993 = vst [vmem:[#allocation2 + $0x20] sm:$0xff] %v977
        %994 = vst [vmem:[#allocation2 + $0x28] sm:$0xff] %v978
        %995 = vst [vmem:[#allocation2 + $0x30] sm:$0xff] %v979
        %996 = vst [vmem:[#allocation2 + $0x38] sm:$0xff] %v980
        %997 = vst [vmem:[#allocation2 + $0x40] sm:$0xff] %v981
        %998 = vst [vmem:[#allocation2 + $0x48] sm:$0xff] %v982
        %999 = vst [vmem:[#allocation2 + $0x50] sm:$0xff] %v983
        %1000 = vst [vmem:[#allocation2 + $0x58] sm:$0xff] %v984
        %1001 = vst [vmem:[#allocation2 + $0x60] sm:$0xff] %v985
        %1002 = vst [vmem:[#allocation2 + $0x68] sm:$0xff] %v986
        %1003 = vst [vmem:[#allocation2 + $0x70] sm:$0xff] %v987
        %1004 = vst [vmem:[#allocation2 + $0x78] sm:$0xff] %v988
        %p1005 = scmp.eq.s32.totalorder %s20, 1
        // Predicated region
        $region56: #{discriminator_forward.6} parent=46 // pred_check
          %p1006 = pneg %p1005
        $region57: #{discriminator_forward.6} parent=46 // pred_check_branch
          %1008 = sbr.rel (%p1006) target = $region59
        $region58: #{discriminator_forward.6} parent=46 // pred_region
          %v1009 = vld [vmem:[#allocation2] sm:$0xff]
          %v1010 = vld [vmem:[#allocation2 + $0x8] sm:$0xff]
          %v1011 = vld [vmem:[#allocation2 + $0x10] sm:$0xff]
          %v1012 = vld [vmem:[#allocation2 + $0x18] sm:$0xff]
          %v1013 = vld [vmem:[#allocation2 + $0x20] sm:$0xff]
          %v1014 = vld [vmem:[#allocation2 + $0x28] sm:$0xff]
          %v1015 = vld [vmem:[#allocation2 + $0x30] sm:$0xff]
          %v1016 = vld [vmem:[#allocation2 + $0x38] sm:$0xff]
          %v1017 = vld [vmem:[#allocation2 + $0x40] sm:$0xff]
          %v1018 = vld [vmem:[#allocation2 + $0x48] sm:$0xff]
          %v1019 = vld [vmem:[#allocation2 + $0x50] sm:$0xff]
          %v1020 = vld [vmem:[#allocation2 + $0x58] sm:$0xff]
          %v1021 = vld [vmem:[#allocation2 + $0x60] sm:$0xff]
          %v1022 = vld [vmem:[#allocation2 + $0x68] sm:$0xff]
          %v1023 = vld [vmem:[#allocation2 + $0x70] sm:$0xff]
          %v1024 = vld [vmem:[#allocation2 + $0x78] sm:$0xff]
          %vm1025 = vcmp.ge.f32.partialorder %v1009, 0.0
          %vm1026 = vcmp.ge.f32.partialorder %v1010, 0.0
          %vm1027 = vcmp.ge.f32.partialorder %v1011, 0.0
          %vm1028 = vcmp.ge.f32.partialorder %v1012, 0.0
          %vm1029 = vcmp.ge.f32.partialorder %v1013, 0.0
          %vm1030 = vcmp.ge.f32.partialorder %v1014, 0.0
          %vm1031 = vcmp.ge.f32.partialorder %v1015, 0.0
          %vm1032 = vcmp.ge.f32.partialorder %v1016, 0.0
          %vm1033 = vcmp.ge.f32.partialorder %v1017, 0.0
          %vm1034 = vcmp.ge.f32.partialorder %v1018, 0.0
          %vm1035 = vcmp.ge.f32.partialorder %v1019, 0.0
          %vm1036 = vcmp.ge.f32.partialorder %v1020, 0.0
          %vm1037 = vcmp.ge.f32.partialorder %v1021, 0.0
          %vm1038 = vcmp.ge.f32.partialorder %v1022, 0.0
          %vm1039 = vcmp.ge.f32.partialorder %v1023, 0.0
          %vm1040 = vcmp.ge.f32.partialorder %v1024, 0.0
          %v1041 = vmul.f32 %v1009, 0.2
          %v1042 = vmul.f32 %v1010, 0.2
          %v1043 = vmul.f32 %v1011, 0.2
          %v1044 = vmul.f32 %v1012, 0.2
          %v1045 = vmul.f32 %v1013, 0.2
          %v1046 = vmul.f32 %v1014, 0.2
          %v1047 = vmul.f32 %v1015, 0.2
          %v1048 = vmul.f32 %v1016, 0.2
          %v1049 = vmul.f32 %v1017, 0.2
          %v1050 = vmul.f32 %v1018, 0.2
          %v1051 = vmul.f32 %v1019, 0.2
          %v1052 = vmul.f32 %v1020, 0.2
          %v1053 = vmul.f32 %v1021, 0.2
          %v1054 = vmul.f32 %v1022, 0.2
          %v1055 = vmul.f32 %v1023, 0.2
          %v1056 = vmul.f32 %v1024, 0.2
          %v1057 = vsel %vm1025, %v1009, %v1041
          %v1058 = vsel %vm1026, %v1010, %v1042
          %v1059 = vsel %vm1027, %v1011, %v1043
          %v1060 = vsel %vm1028, %v1012, %v1044
          %v1061 = vsel %vm1029, %v1013, %v1045
          %v1062 = vsel %vm1030, %v1014, %v1046
          %v1063 = vsel %vm1031, %v1015, %v1047
          %v1064 = vsel %vm1032, %v1016, %v1048
          %v1065 = vsel %vm1033, %v1017, %v1049
          %v1066 = vsel %vm1034, %v1018, %v1050
          %v1067 = vsel %vm1035, %v1019, %v1051
          %v1068 = vsel %vm1036, %v1020, %v1052
          %v1069 = vsel %vm1037, %v1021, %v1053
          %v1070 = vsel %vm1038, %v1022, %v1054
          %v1071 = vsel %vm1039, %v1023, %v1055
          %v1072 = vsel %vm1040, %v1024, %v1056
          %1073 = vst [vmem:[%s292] sm:$0xff] %v1057
          %1074 = vst [vmem:[%s292 + $0x8] sm:$0xff] %v1058
          %1075 = vst [vmem:[%s292 + $0x10] sm:$0xff] %v1059
          %1076 = vst [vmem:[%s292 + $0x18] sm:$0xff] %v1060
          %1077 = vst [vmem:[%s292 + $0x20] sm:$0xff] %v1061
          %1078 = vst [vmem:[%s292 + $0x28] sm:$0xff] %v1062
          %1079 = vst [vmem:[%s292 + $0x30] sm:$0xff] %v1063
          %1080 = vst [vmem:[%s292 + $0x38] sm:$0xff] %v1064
          %1081 = vst [vmem:[%s292 + $0x40] sm:$0xff] %v1065
          %1082 = vst [vmem:[%s292 + $0x48] sm:$0xff] %v1066
          %1083 = vst [vmem:[%s292 + $0x50] sm:$0xff] %v1067
          %1084 = vst [vmem:[%s292 + $0x58] sm:$0xff] %v1068
          %1085 = vst [vmem:[%s292 + $0x60] sm:$0xff] %v1069
          %1086 = vst [vmem:[%s292 + $0x68] sm:$0xff] %v1070
          %1087 = vst [vmem:[%s292 + $0x70] sm:$0xff] %v1071
          %1088 = vst [vmem:[%s292 + $0x78] sm:$0xff] %v1072
        $region59: #{discriminator_forward.6} parent=46 // pred_fallthru
          _
        %s1089 = smul.u32 16, %s18
        %p1090 = scmp.lt.s32.totalorder %s1089, 15
        %s1091 = scalar_select %p1090, %s1089, 15
        %p1092 = scmp.lt.s32.totalorder %s19, 0
        %s1093 = scalar_select %p1092, %s19, 0
        %s1094 = sadd.s32 %s1093, %s1091
        %s1095 = smul.addr %s1094, 8
        %s1096 = scalar_lea.vmem %s2, %s1095
        // Predicated region
        $region60: #{discriminator_forward.6} parent=46 // pred_check
          %p1097 = pneg %p108
        $region61: #{discriminator_forward.6} parent=46 // pred_check_branch
          %1099 = sbr.rel (%p1097) target = $region63
        $region62: #{discriminator_forward.6} parent=46 // pred_region
          %s1100 = smul.u32 16, %s18
        $region63: #{discriminator_forward.6} parent=46 // pred_fallthru
          _
        // Predicated region
        $region64: #{discriminator_forward.6} parent=46 // pred_check
          %p1101 = pneg %p108
        $region65: #{discriminator_forward.6} parent=46 // pred_check_branch
          %1103 = sbr.rel (%p1101) target = $region67
        $region66: #{discriminator_forward.6} parent=46 // pred_region
          %s1104 = smul.u32 16, %s18
          %p1105 = scmp.lt.s32.totalorder %s1104, 15
          %s1106 = scalar_select %p1105, %s1104, 15
          %p1107 = scmp.lt.s32.totalorder %s19, 0
          %s1108 = scalar_select %p1107, %s19, 0
          %s1109 = sadd.s32 %s1108, %s1106
          %s1110 = smul.addr %s1109, 8
          %s1111 = scalar_lea.vmem %s2, %s1110
        $region67: #{discriminator_forward.6} parent=46 // pred_fallthru
          _
      $region47: #{discriminator_forward.6} parent=5 // pred_fallthru
        _
      %p1112 = scmp.le.s32.totalorder 2, %s8
      // Predicated region
      $region68: #{discriminator_forward.6} parent=5 // pred_check
        %p1113 = pneg %p1112
      $region69: #{discriminator_forward.6} parent=5 // pred_check_branch
        %1115 = sbr.rel (%p1113) target = $region71
      $region70: #{discriminator_forward.6} parent=5 // pred_region
        %s1116 = ssub.s32 %s8, 2
      $region71: #{discriminator_forward.6} parent=5 // pred_fallthru
        _
    $region6: #{discriminator_forward.6} parent=1 // loop_footer
      %s12 = sadd.s32 1, %s8
    $region7: #{discriminator_forward.6} parent=1 // loop_footer_branch
      %7 = sbr.rel target = $region3
    $region8: #{discriminator_forward.6} parent=1 // loop_exit
      _

// kernel: discriminator_forward.7
$region0: #{discriminator_forward.7}
  #allocation0 [shape = 'u32[]', space=smem, size = 0x4, offset = 0x4, fixed_abs, tag = 'smem constant byte address 0x4 - core index']
  #allocation1 [shape = 'u32[144,128]{1,0:T(1,128)}', space=vmem, size = 0x12000, scoped, tag = 'internal scratch']
  #allocation2 [shape = 'f32[32,256]{1,0:T(8,128)}', space=vmem, size = 0x8000, scoped, tag = 'scratch operand']
  %s0 = inlined_call_operand.vmem [shape: bf16[32,2048], index: 0, kind: input, shape index: {}]
  %s1 = inlined_call_operand.vmem [shape: bf16[2048,256], index: 1, kind: input, shape index: {}]
  %s2 = inlined_call_operand.vmem [shape: f32[32,256], index: 2, kind: output, shape index: {}]
  %s3 = sld [smem:[#allocation0]]
  $region72: #{discriminator_forward.7} parent=0
    _
  %s5 = ssub.s32 1, %s3
  %s6 = scalar_select 0, %s5, %s3
  $region1: #{discriminator_forward.7} parent=0
    #allocation3 [shape = 'u8[65536]{0}', space=vmem, size = 0x10000, scoped, tag = 'input window, operand 0']
    loop: start=0, step=1, limit=6
    $region2: #{discriminator_forward.7} parent=1 // loop_pre_header
      _
    $region3: #{discriminator_forward.7} parent=1 // loop_header
      %s8 = sphi 0, %s12
      %p9 = scmp.ge.s32.totalorder %s8, 6
      %s15 = sphi 0, %s34
      %s16 = sphi 0, %s30
      %s17 = sphi 0, %s26
      %s18 = sphi 0, %s15
      %s19 = sphi 0, %s16
      %s20 = sphi 0, %s17
      %s21 = sphi 0, %s18
      %s22 = sphi 0, %s19
      %s23 = sphi 0, %s20
      %s39 = sphi 0, %s41
      %s42 = sphi 0, %s39
      %s43 = sphi 0, %s42
      %s59 = sphi 0, %s43
      %s67 = sphi 0, %s69
      %s70 = sphi 0, %s67
      %s71 = sphi 0, %s70
      %s87 = sphi 0, %s71
      %s95 = sphi 0, %s97
      %s98 = sphi 0, %s95
      %s99 = sphi 0, %s98
      %s115 = sphi 0, %s99
    $region4: #{discriminator_forward.7} parent=1 // loop_header_branch
      %11 = sbr.rel (%p9) target = $region8
    $region5: #{discriminator_forward.7} parent=1 // loop_body
      %s13 = ssub.s32 %s8, 1
      %s14 = ssub.s32 %s8, 2
      %s24 = sadd.s32 1, %s17
      %p25 = scmp.ge.s32.totalorder %s24, 4
      %s26 = scalar_select %p25, 0, %s24
      %s27 = sadd.s32 1, %s16
      %s28 = scalar_select %p25, %s27, %s16
      %p29 = scmp.ge.s32.totalorder %s28, 1
      %s30 = scalar_select %p29, 0, %s28
      %s31 = sadd.s32 1, %s15
      %s32 = scalar_select %p29, %s31, %s15
      %p33 = scmp.ge.s32.totalorder %s32, 1
      %s34 = scalar_select %p33, 0, %s32
      %s35 = ssub.s32 %s15, %s34
      %s36 = ssub.s32 %s17, %s26
      %s37 = sor.u32 %s35, %s36
      %p38 = scmp.eq.s32.totalorder %s37, 0
      %s40 = sadd.s32 %s39, 1
      %s41 = scalar_select %p38, %s39, %s40
      %p44 = pneg %p38
      %p45 = scmp.eq.s32.totalorder %s8, 3
      %p46 = por %p44, %p45
      %p47 = scmp.ne.s32.totalorder %s39, %s42
      %p48 = scmp.eq.s32.totalorder %s8, 0
      %p49 = por %p47, %p48
      %p50 = scmp.ne.s32.totalorder %s39, %s42
      %p51 = scmp.eq.s32.totalorder %s13, 3
      %p52 = por %p50, %p51
      %p53 = scmp.ne.s32.totalorder %s42, %s43
      %p54 = scmp.eq.s32.totalorder %s13, 0
      %p55 = por %p53, %p54
      %p56 = scmp.ne.s32.totalorder %s42, %s43
      %p57 = scmp.eq.s32.totalorder %s14, 3
      %p58 = por %p56, %p57
      %p60 = scmp.ne.s32.totalorder %s43, %s59
      %p61 = scmp.eq.s32.totalorder %s14, 0
      %p62 = por %p60, %p61
      %s63 = ssub.s32 %s17, %s26
      %s64 = ssub.s32 %s16, %s30
      %s65 = sor.u32 %s63, %s64
      %p66 = scmp.eq.s32.totalorder %s65, 0
      %s68 = sadd.s32 %s67, 1
      %s69 = scalar_select %p66, %s67, %s68
      %p72 = pneg %p66
      %p73 = scmp.eq.s32.totalorder %s8, 3
      %p74 = por %p72, %p73
      %p75 = scmp.ne.s32.totalorder %s67, %s70
      %p76 = scmp.eq.s32.totalorder %s8, 0
      %p77 = por %p75, %p76
      %p78 = scmp.ne.s32.totalorder %s67, %s70
      %p79 = scmp.eq.s32.totalorder %s13, 3
      %p80 = por %p78, %p79
      %p81 = scmp.ne.s32.totalorder %s70, %s71
      %p82 = scmp.eq.s32.totalorder %s13, 0
      %p83 = por %p81, %p82
      %p84 = scmp.ne.s32.totalorder %s70, %s71
      %p85 = scmp.eq.s32.totalorder %s14, 3
      %p86 = por %p84, %p85
      %p88 = scmp.ne.s32.totalorder %s71, %s87
      %p89 = scmp.eq.s32.totalorder %s14, 0
      %p90 = por %p88, %p89
      %s91 = ssub.s32 %s15, %s34
      %s92 = ssub.s32 %s16, %s30
      %s93 = sor.u32 %s91, %s92
      %p94 = scmp.eq.s32.totalorder %s93, 0
      %s96 = sadd.s32 %s95, 1
      %s97 = scalar_select %p94, %s95, %s96
      %p100 = pneg %p94
      %p101 = scmp.eq.s32.totalorder %s8, 3
      %p102 = por %p100, %p101
      %p103 = scmp.ne.s32.totalorder %s95, %s98
      %p104 = scmp.eq.s32.totalorder %s8, 0
      %p105 = por %p103, %p104
      %p106 = scmp.ne.s32.totalorder %s95, %s98
      %p107 = scmp.eq.s32.totalorder %s13, 3
      %p108 = por %p106, %p107
      %p109 = scmp.ne.s32.totalorder %s98, %s99
      %p110 = scmp.eq.s32.totalorder %s13, 0
      %p111 = por %p109, %p110
      %p112 = scmp.ne.s32.totalorder %s98, %s99
      %p113 = scmp.eq.s32.totalorder %s14, 3
      %p114 = por %p112, %p113
      %p116 = scmp.ne.s32.totalorder %s99, %s115
      %p117 = scmp.eq.s32.totalorder %s14, 0
      %p118 = por %p116, %p117
      %p119 = scmp.le.s32.totalorder 1, %s8
      %p120 = scmp.lt.s32.totalorder %s8, 5
      %p121 = pnand %p119, %p120
      %p122 = pneg %p121
      // Predicated region
      $region9: #{discriminator_forward.7} parent=5 // pred_check
        _
      $region10: #{discriminator_forward.7} parent=5 // pred_check_branch
        %124 = sbr.rel (%p121) target = $region12
      $region11: #{discriminator_forward.7} parent=5 // pred_region
        %s125 = ssub.s32 %s8, 1
      $region12: #{discriminator_forward.7} parent=5 // pred_fallthru
        _
      %p126 = scmp.lt.s32.totalorder %s8, 4
      // Predicated region
      $region13: #{discriminator_forward.7} parent=5 // pred_check
        %p127 = pneg %p126
      $region14: #{discriminator_forward.7} parent=5 // pred_check_branch
        %129 = sbr.rel (%p127) target = $region16
      $region15: #{discriminator_forward.7} parent=5 // pred_region
        // Predicated region
        $region17: #{discriminator_forward.7} parent=15 // pred_check
          %p130 = pneg %p49
        $region18: #{discriminator_forward.7} parent=15 // pred_check_branch
          %132 = sbr.rel (%p130) target = $region20
        $region19: #{discriminator_forward.7} parent=15 // pred_region
          %s133 = sand.u32 %s39, 1
          %s134 = sand.u32 %s39, 1
          %s135 = smul.addr %s134, 64
          %s136 = scalar_lea.vmem [#allocation3], %s135
          %s137 = smul.u32 4, %s15
          %s138 = smul.u32 4, %s17
          %s139 = smul.addr %s137, 16
          %s140 = sadd.s32 %s138, %s139
          %s141 = smul.addr %s140, 4
          %s142 = scalar_lea.vmem %s0, %s141
          // Predicated region
          $region21: #{discriminator_forward.7} parent=19 // pred_check
            _
          $region22: #{discriminator_forward.7} parent=19 // pred_check_branch
            %144 = sbr.rel (0) target = $region24
          $region23: #{discriminator_forward.7} parent=19 // pred_region
            // Predicated region
            $region25: #{discriminator_forward.7} parent=23 // pred_check
              _
            $region26: #{discriminator_forward.7} parent=23 // pred_check_branch
              %146 = sbr.rel (0) target = $region28
            $region27: #{discriminator_forward.7} parent=23 // pred_region
              loop: start=0, step=1, limit=1
              $region29: #{discriminator_forward.7} parent=27 // loop_pre_header
                _
              $region30: #{discriminator_forward.7} parent=27 // loop_header
                %s148 = sphi 0, %s152
                %p149 = scmp.ge.s32.totalorder %s148, 1
                %s153 = sphi %s142, %s142
                %s154 = sphi %s136, %s136
              $region31: #{discriminator_forward.7} parent=27 // loop_header_branch
                %151 = sbr.rel (%p149) target = $region35
              $region32: #{discriminator_forward.7} parent=27 // loop_body
                %v155 = vld [vmem:[%s153] sm:$0xff]
                %156 = vst [vmem:[%s154] sm:$0xff] %v155
                %v157 = vld [vmem:[%s153 + $0x8] sm:$0xff]
                %158 = vst [vmem:[%s154 + $0x8] sm:$0xff] %v157
                %v159 = vld [vmem:[%s153 + $0x40] sm:$0xff]
                %160 = vst [vmem:[%s154 + $0x10] sm:$0xff] %v159
                %v161 = vld [vmem:[%s153 + $0x48] sm:$0xff]
                %162 = vst [vmem:[%s154 + $0x18] sm:$0xff] %v161
                %v163 = vld [vmem:[%s153 + $0x80] sm:$0xff]
                %164 = vst [vmem:[%s154 + $0x20] sm:$0xff] %v163
                %v165 = vld [vmem:[%s153 + $0x88] sm:$0xff]
                %166 = vst [vmem:[%s154 + $0x28] sm:$0xff] %v165
                %v167 = vld [vmem:[%s153 + $0xc0] sm:$0xff]
                %168 = vst [vmem:[%s154 + $0x30] sm:$0xff] %v167
                %v169 = vld [vmem:[%s153 + $0xc8] sm:$0xff]
                %170 = vst [vmem:[%s154 + $0x38] sm:$0xff] %v169
              $region33: #{discriminator_forward.7} parent=27 // loop_footer
                %s152 = sadd.s32 1, %s148
              $region34: #{discriminator_forward.7} parent=27 // loop_footer_branch
                %147 = sbr.rel target = $region30
              $region35: #{discriminator_forward.7} parent=27 // loop_exit
                _
            $region28: #{discriminator_forward.7} parent=23 // pred_fallthru
              _
            // Predicated region
            $region36: #{discriminator_forward.7} parent=23 // pred_check
              _
            $region37: #{discriminator_forward.7} parent=23 // pred_check_branch
              %172 = sbr.rel target = $region39
            $region38: #{discriminator_forward.7} parent=23 // pred_region
              _
            $region39: #{discriminator_forward.7} parent=23 // pred_fallthru
              _
          $region24: #{discriminator_forward.7} parent=19 // pred_fallthru
            _
          %173 = vnop
        $region20: #{discriminator_forward.7} parent=15 // pred_fallthru
          _
        // Predicated region
        $region40: #{discriminator_forward.7} parent=15 // pred_check
          %p174 = pneg %p77
        $region41: #{discriminator_forward.7} parent=15 // pred_check_branch
          %176 = sbr.rel (%p174) target = $region43
        $region42: #{discriminator_forward.7} parent=15 // pred_region
          %s177 = smul.u32 64, %s17
          %s178 = smul.u32 2, %s16
          %p179 = scmp.lt.s32.totalorder %s177, 255
          %s180 = scalar_select %p179, %s177, 255
          %p181 = scmp.lt.s32.totalorder %s178, 1
          %s182 = scalar_select %p181, %s178, 1
          %s183 = smul.addr %s180, 2
          %s184 = sadd.s32 %s182, %s183
          %s185 = smul.addr %s184, 4
          %s186 = scalar_lea.vmem %s1, %s185
          %s187 = smul.u32 64, %s17
          %s188 = smul.u32 2, %s16
        $region43: #{discriminator_forward.7} parent=15 // pred_fallthru
          _
      $region16: #{discriminator_forward.7} parent=5 // pred_fallthru
        _
      %p189 = scmp.le.s32.totalorder 1, %s8
      %p190 = scmp.lt.s32.totalorder %s8, 5
      %p191 = pnand %p189, %p190
      %p192 = pneg %p191
      // Predicated region
      $region44: #{discriminator_forward.7} parent=5 // pred_check
        _
      $region45: #{discriminator_forward.7} parent=5 // pred_check_branch
        %194 = sbr.rel (%p191) target = $region47
      $region46: #{discriminator_forward.7} parent=5 // pred_region
        %s195 = ssub.s32 %s8, 1
        %s196 = sand.u32 %s42, 1
        %s197 = sand.u32 %s42, 1
        %s198 = smul.addr %s197, 64
        %s199 = scalar_lea.vmem [#allocation3], %s198
        // Predicated region
        $region48: #{discriminator_forward.7} parent=46 // pred_check
          %p200 = pneg %p55
        $region49: #{discriminator_forward.7} parent=46 // pred_check_branch
          %202 = sbr.rel (%p200) target = $region51
        $region50: #{discriminator_forward.7} parent=46 // pred_region
          _
        $region51: #{discriminator_forward.7} parent=46 // pred_fallthru
          _
        %s203 = sand.u32 %s42, 1
        %s204 = sand.u32 %s42, 1
        %s205 = smul.addr %s204, 64
        %s206 = scalar_lea.vmem [#allocation3], %s205
        %p207 = pneg %p55
        %p208 = pneg %p52
        %s209 = smul.u32 64, %s20
        %s210 = smul.u32 2, %s19
        %p211 = scmp.lt.s32.totalorder %s209, 255
        %s212 = scalar_select %p211, %s209, 255
        %p213 = scmp.lt.s32.totalorder %s210, 1
        %s214 = scalar_select %p213, %s210, 1
        %s215 = smul.addr %s212, 2
        %s216 = sadd.s32 %s214, %s215
        %s217 = smul.addr %s216, 4
        %s218 = scalar_lea.vmem %s1, %s217
        %p219 = pneg %p83
        %p220 = pneg %p80
        %p221 = pneg %p111
        %p222 = pneg %p108
        %s223 = smul.u32 4, %s18
        %s224 = smul.u32 2, %s19
        %p225 = scmp.lt.s32.totalorder %s223, 3
        %s226 = scalar_select %p225, %s223, 3
        %p227 = scmp.lt.s32.totalorder %s224, 1
        %s228 = scalar_select %p227, %s224, 1
        %s229 = smul.addr %s226, 2
        %s230 = sadd.s32 %s228, %s229
        %s231 = smul.addr %s230, 8
        %s232 = scalar_lea.vmem %s2, %s231
        %s233 = smul.u32 4, %s18
        %s234 = smul.u32 4, %s20
        %s235 = smul.u32 64, %s20
        %s236 = smul.u32 2, %s19
        %p237 = scmp.lt.s32.totalorder %s235, 255
        %s238 = scalar_select %p237, %s235, 255
        %p239 = scmp.lt.s32.totalorder %s236, 1
        %s240 = scalar_select %p239, %s236, 1
        %s241 = smul.addr %s238, 2
        %s242 = sadd.s32 %s240, %s241
        %s243 = smul.addr %s242, 4
        %s244 = scalar_lea.vmem %s1, %s243
        %s245 = smul.u32 64, %s20
        %s246 = smul.u32 2, %s19
        %s247 = smul.u32 4, %s18
        %s248 = smul.u32 2, %s19
        %p249 = scmp.lt.s32.totalorder %s247, 3
        %s250 = scalar_select %p249, %s247, 3
        %p251 = scmp.lt.s32.totalorder %s248, 1
        %s252 = scalar_select %p251, %s248, 1
        %s253 = smul.addr %s250, 2
        %s254 = sadd.s32 %s252, %s253
        %s255 = smul.addr %s254, 8
        %s256 = scalar_lea.vmem %s2, %s255
        %s257 = smul.u32 4, %s18
        %s258 = smul.u32 2, %s19
        %p259 = scmp.eq.s32.totalorder %s20, 0
        // Predicated region
        $region52: #{discriminator_forward.7} parent=46 // pred_check
          %p260 = pneg %p259
        $region53: #{discriminator_forward.7} parent=46 // pred_check_branch
          %262 = sbr.rel (%p260) target = $region55
        $region54: #{discriminator_forward.7} parent=46 // pred_region
          %263 = vst [vmem:[#allocation2] sm:$0xff] 0.0
          %264 = vst [vmem:[#allocation2 + $0x8] sm:$0xff] 0.0
          %265 = vst [vmem:[#allocation2 + $0x10] sm:$0xff] 0.0
          %266 = vst [vmem:[#allocation2 + $0x18] sm:$0xff] 0.0
          %267 = vst [vmem:[#allocation2 + $0x20] sm:$0xff] 0.0
          %268 = vst [vmem:[#allocation2 + $0x28] sm:$0xff] 0.0
          %269 = vst [vmem:[#allocation2 + $0x30] sm:$0xff] 0.0
          %270 = vst [vmem:[#allocation2 + $0x38] sm:$0xff] 0.0
        $region55: #{discriminator_forward.7} parent=46 // pred_fallthru
          _
        %v271 = vld [vmem:[#allocation2] sm:$0xff]
        %v272 = vld [vmem:[#allocation2 + $0x8] sm:$0xff]
        %v273 = vld [vmem:[#allocation2 + $0x10] sm:$0xff]
        %v274 = vld [vmem:[#allocation2 + $0x18] sm:$0xff]
        %v275 = vld [vmem:[#allocation2 + $0x20] sm:$0xff]
        %v276 = vld [vmem:[#allocation2 + $0x28] sm:$0xff]
        %v277 = vld [vmem:[#allocation2 + $0x30] sm:$0xff]
        %v278 = vld [vmem:[#allocation2 + $0x38] sm:$0xff]
        %v279 = vld [vmem:[%s199] sm:$0xff]
        %v280 = vld [vmem:[%s199 + $0x8] sm:$0xff]
        %v281 = vld [vmem:[%s199 + $0x10] sm:$0xff]
        %v282 = vld [vmem:[%s199 + $0x18] sm:$0xff]
        %v283 = vld [vmem:[%s199 + $0x20] sm:$0xff]
        %v284 = vld [vmem:[%s199 + $0x28] sm:$0xff]
        %v285 = vld [vmem:[%s199 + $0x30] sm:$0xff]
        %v286 = vld [vmem:[%s199 + $0x38] sm:$0xff]
        %v287 = vld [vmem:[%s244] sm:$0xff]
        %v288 = vld [vmem:[%s244 + $0x8] sm:$0xff]
        %v289 = vld [vmem:[%s244 + $0x10] sm:$0xff]
        %v290 = vld [vmem:[%s244 + $0x18] sm:$0xff]
        %v291 = vld [vmem:[%s244 + $0x20] sm:$0xff]
        %v292 = vld [vmem:[%s244 + $0x28] sm:$0xff]
        %v293 = vld [vmem:[%s244 + $0x30] sm:$0xff]
        %v294 = vld [vmem:[%s244 + $0x38] sm:$0xff]
        %v295 = vld [vmem:[%s244 + $0x40] sm:$0xff]
        %v296 = vld [vmem:[%s244 + $0x48] sm:$0xff]
        %v297 = vld [vmem:[%s244 + $0x50] sm:$0xff]
        %v298 = vld [vmem:[%s244 + $0x58] sm:$0xff]
        %v299 = vld [vmem:[%s244 + $0x60] sm:$0xff]
        %v300 = vld [vmem:[%s244 + $0x68] sm:$0xff]
        %v301 = vld [vmem:[%s244 + $0x70] sm:$0xff]
        %v302 = vld [vmem:[%s244 + $0x78] sm:$0xff]
        %v303 = vld [vmem:[%s244 + $0x80] sm:$0xff]
        %v304 = vld [vmem:[%s244 + $0x88] sm:$0xff]
        %v305 = vld [vmem:[%s244 + $0x90] sm:$0xff]
        %v306 = vld [vmem:[%s244 + $0x98] sm:$0xff]
        %v307 = vld [vmem:[%s244 + $0xa0] sm:$0xff]
        %v308 = vld [vmem:[%s244 + $0xa8] sm:$0xff]
        %v309 = vld [vmem:[%s244 + $0xb0] sm:$0xff]
        %v310 = vld [vmem:[%s244 + $0xb8] sm:$0xff]
        %v311 = vld [vmem:[%s244 + $0xc0] sm:$0xff]
        %v312 = vld [vmem:[%s244 + $0xc8] sm:$0xff]
        %v313 = vld [vmem:[%s244 + $0xd0] sm:$0xff]
        %v314 = vld [vmem:[%s244 + $0xd8] sm:$0xff]
        %v315 = vld [vmem:[%s244 + $0xe0] sm:$0xff]
        %v316 = vld [vmem:[%s244 + $0xe8] sm:$0xff]
        %v317 = vld [vmem:[%s244 + $0xf0] sm:$0xff]
        %v318 = vld [vmem:[%s244 + $0xf8] sm:$0xff]
        %v319 = vld [vmem:[%s244 + $0x100] sm:$0xff]
        %v320 = vld [vmem:[%s244 + $0x108] sm:$0xff]
        %v321 = vld [vmem:[%s244 + $0x110] sm:$0xff]
        %v322 = vld [vmem:[%s244 + $0x118] sm:$0xff]
        %v323 = vld [vmem:[%s244 + $0x120] sm:$0xff]
        %v324 = vld [vmem:[%s244 + $0x128] sm:$0xff]
        %v325 = vld [vmem:[%s244 + $0x130] sm:$0xff]
        %v326 = vld [vmem:[%s244 + $0x138] sm:$0xff]
        %v327 = vld [vmem:[%s244 + $0x140] sm:$0xff]
        %v328 = vld [vmem:[%s244 + $0x148] sm:$0xff]
        %v329 = vld [vmem:[%s244 + $0x150] sm:$0xff]
        %v330 = vld [vmem:[%s244 + $0x158] sm:$0xff]
        %v331 = vld [vmem:[%s244 + $0x160] sm:$0xff]
        %v332 = vld [vmem:[%s244 + $0x168] sm:$0xff]
        %v333 = vld [vmem:[%s244 + $0x170] sm:$0xff]
        %v334 = vld [vmem:[%s244 + $0x178] sm:$0xff]
        %v335 = vld [vmem:[%s244 + $0x180] sm:$0xff]
        %v336 = vld [vmem:[%s244 + $0x188] sm:$0xff]
        %v337 = vld [vmem:[%s244 + $0x190] sm:$0xff]
        %v338 = vld [vmem:[%s244 + $0x198] sm:$0xff]
        %v339 = vld [vmem:[%s244 + $0x1a0] sm:$0xff]
        %v340 = vld [vmem:[%s244 + $0x1a8] sm:$0xff]
        %v341 = vld [vmem:[%s244 + $0x1b0] sm:$0xff]
        %v342 = vld [vmem:[%s244 + $0x1b8] sm:$0xff]
        %v343 = vld [vmem:[%s244 + $0x1c0] sm:$0xff]
        %v344 = vld [vmem:[%s244 + $0x1c8] sm:$0xff]
        %v345 = vld [vmem:[%s244 + $0x1d0] sm:$0xff]
        %v346 = vld [vmem:[%s244 + $0x1d8] sm:$0xff]
        %v347 = vld [vmem:[%s244 + $0x1e0] sm:$0xff]
        %v348 = vld [vmem:[%s244 + $0x1e8] sm:$0xff]
        %v349 = vld [vmem:[%s244 + $0x1f0] sm:$0xff]
        %v350 = vld [vmem:[%s244 + $0x1f8] sm:$0xff]
        %v359 = vunpack.c.l.b16 %v279
        %v360 = vunpack.c.h.b16 %v279
        %v361 = vunpack.c.l.b16 %v280
        %v362 = vunpack.c.h.b16 %v280
        %v363 = vunpack.c.l.b16 %v281
        %v364 = vunpack.c.h.b16 %v281
        %v365 = vunpack.c.l.b16 %v282
        %v366 = vunpack.c.h.b16 %v282
        %v367 = vunpack.c.l.b16 %v283
        %v368 = vunpack.c.h.b16 %v283
        %v369 = vunpack.c.l.b16 %v284
        %v370 = vunpack.c.h.b16 %v284
        %v371 = vunpack.c.l.b16 %v285
        %v372 = vunpack.c.h.b16 %v285
        %v373 = vunpack.c.l.b16 %v286
        %v374 = vunpack.c.h.b16 %v286
        %v375 = vpack.c.b16 %v363, %v359
        %v376 = vpack.c.b16 %v364, %v360
        %v377 = vpack.c.b16 %v365, %v361
        %v378 = vpack.c.b16 %v366, %v362
        %v379 = vpack.c.b16 %v371, %v367
        %v380 = vpack.c.b16 %v372, %v368
        %v381 = vpack.c.b16 %v373, %v369
        %v382 = vpack.c.b16 %v374, %v370
        %v455 = vunpack.c.l.b16 %v287
        %v456 = vunpack.c.h.b16 %v287
        %v457 = vunpack.c.l.b16 %v288
        %v458 = vunpack.c.h.b16 %v288
        %v459 = vunpack.c.l.b16 %v289
        %v460 = vunpack.c.h.b16 %v289
        %v461 = vunpack.c.l.b16 %v290
        %v462 = vunpack.c.h.b16 %v290
        %v463 = vunpack.c.l.b16 %v291
        %v464 = vunpack.c.h.b16 %v291
        %v465 = vunpack.c.l.b16 %v292
        %v466 = vunpack.c.h.b16 %v292
        %v467 = vunpack.c.l.b16 %v293
        %v468 = vunpack.c.h.b16 %v293
        %v469 = vunpack.c.l.b16 %v294
        %v470 = vunpack.c.h.b16 %v294
        %v471 = vunpack.c.l.b16 %v295
        %v472 = vunpack.c.h.b16 %v295
        %v473 = vunpack.c.l.b16 %v296
        %v474 = vunpack.c.h.b16 %v296
        %v475 = vunpack.c.l.b16 %v297
        %v476 = vunpack.c.h.b16 %v297
        %v477 = vunpack.c.l.b16 %v298
        %v478 = vunpack.c.h.b16 %v298
        %v479 = vunpack.c.l.b16 %v299
        %v480 = vunpack.c.h.b16 %v299
        %v481 = vunpack.c.l.b16 %v300
        %v482 = vunpack.c.h.b16 %v300
        %v483 = vunpack.c.l.b16 %v301
        %v484 = vunpack.c.h.b16 %v301
        %v485 = vunpack.c.l.b16 %v302
        %v486 = vunpack.c.h.b16 %v302
        %v487 = vunpack.c.l.b16 %v303
        %v488 = vunpack.c.h.b16 %v303
        %v489 = vunpack.c.l.b16 %v304
        %v490 = vunpack.c.h.b16 %v304
        %v491 = vunpack.c.l.b16 %v305
        %v492 = vunpack.c.h.b16 %v305
        %v493 = vunpack.c.l.b16 %v306
        %v494 = vunpack.c.h.b16 %v306
        %v495 = vunpack.c.l.b16 %v307
        %v496 = vunpack.c.h.b16 %v307
        %v497 = vunpack.c.l.b16 %v308
        %v498 = vunpack.c.h.b16 %v308
        %v499 = vunpack.c.l.b16 %v309
        %v500 = vunpack.c.h.b16 %v309
        %v501 = vunpack.c.l.b16 %v310
        %v502 = vunpack.c.h.b16 %v310
        %v503 = vunpack.c.l.b16 %v311
        %v504 = vunpack.c.h.b16 %v311
        %v505 = vunpack.c.l.b16 %v312
        %v506 = vunpack.c.h.b16 %v312
        %v507 = vunpack.c.l.b16 %v313
        %v508 = vunpack.c.h.b16 %v313
        %v509 = vunpack.c.l.b16 %v314
        %v510 = vunpack.c.h.b16 %v314
        %v511 = vunpack.c.l.b16 %v315
        %v512 = vunpack.c.h.b16 %v315
        %v513 = vunpack.c.l.b16 %v316
        %v514 = vunpack.c.h.b16 %v316
        %v515 = vunpack.c.l.b16 %v317
        %v516 = vunpack.c.h.b16 %v317
        %v517 = vunpack.c.l.b16 %v318
        %v518 = vunpack.c.h.b16 %v318
        %v519 = vunpack.c.l.b16 %v319
        %v520 = vunpack.c.h.b16 %v319
        %v521 = vunpack.c.l.b16 %v320
        %v522 = vunpack.c.h.b16 %v320
        %v523 = vunpack.c.l.b16 %v321
        %v524 = vunpack.c.h.b16 %v321
        %v525 = vunpack.c.l.b16 %v322
        %v526 = vunpack.c.h.b16 %v322
        %v527 = vunpack.c.l.b16 %v323
        %v528 = vunpack.c.h.b16 %v323
        %v529 = vunpack.c.l.b16 %v324
        %v530 = vunpack.c.h.b16 %v324
        %v531 = vunpack.c.l.b16 %v325
        %v532 = vunpack.c.h.b16 %v325
        %v533 = vunpack.c.l.b16 %v326
        %v534 = vunpack.c.h.b16 %v326
        %v535 = vunpack.c.l.b16 %v327
        %v536 = vunpack.c.h.b16 %v327
        %v537 = vunpack.c.l.b16 %v328
        %v538 = vunpack.c.h.b16 %v328
        %v539 = vunpack.c.l.b16 %v329
        %v540 = vunpack.c.h.b16 %v329
        %v541 = vunpack.c.l.b16 %v330
        %v542 = vunpack.c.h.b16 %v330
        %v543 = vunpack.c.l.b16 %v331
        %v544 = vunpack.c.h.b16 %v331
        %v545 = vunpack.c.l.b16 %v332
        %v546 = vunpack.c.h.b16 %v332
        %v547 = vunpack.c.l.b16 %v333
        %v548 = vunpack.c.h.b16 %v333
        %v549 = vunpack.c.l.b16 %v334
        %v550 = vunpack.c.h.b16 %v334
        %v551 = vunpack.c.l.b16 %v335
        %v552 = vunpack.c.h.b16 %v335
        %v553 = vunpack.c.l.b16 %v336
        %v554 = vunpack.c.h.b16 %v336
        %v555 = vunpack.c.l.b16 %v337
        %v556 = vunpack.c.h.b16 %v337
        %v557 = vunpack.c.l.b16 %v338
        %v558 = vunpack.c.h.b16 %v338
        %v559 = vunpack.c.l.b16 %v339
        %v560 = vunpack.c.h.b16 %v339
        %v561 = vunpack.c.l.b16 %v340
        %v562 = vunpack.c.h.b16 %v340
        %v563 = vunpack.c.l.b16 %v341
        %v564 = vunpack.c.h.b16 %v341
        %v565 = vunpack.c.l.b16 %v342
        %v566 = vunpack.c.h.b16 %v342
        %v567 = vunpack.c.l.b16 %v343
        %v568 = vunpack.c.h.b16 %v343
        %v569 = vunpack.c.l.b16 %v344
        %v570 = vunpack.c.h.b16 %v344
        %v571 = vunpack.c.l.b16 %v345
        %v572 = vunpack.c.h.b16 %v345
        %v573 = vunpack.c.l.b16 %v346
        %v574 = vunpack.c.h.b16 %v346
        %v575 = vunpack.c.l.b16 %v347
        %v576 = vunpack.c.h.b16 %v347
        %v577 = vunpack.c.l.b16 %v348
        %v578 = vunpack.c.h.b16 %v348
        %v579 = vunpack.c.l.b16 %v349
        %v580 = vunpack.c.h.b16 %v349
        %v581 = vunpack.c.l.b16 %v350
        %v582 = vunpack.c.h.b16 %v350
        %v583 = vpack.c.b16 %v457, %v455
        %v584 = vpack.c.b16 %v458, %v456
        %v585 = vpack.c.b16 %v461, %v459
        %v586 = vpack.c.b16 %v462, %v460
        %v587 = vpack.c.b16 %v465, %v463
        %v588 = vpack.c.b16 %v466, %v464
        %v589 = vpack.c.b16 %v469, %v467
        %v590 = vpack.c.b16 %v470, %v468
        %v591 = vpack.c.b16 %v473, %v471
        %v592 = vpack.c.b16 %v474, %v472
        %v593 = vpack.c.b16 %v477, %v475
        %v594 = vpack.c.b16 %v478, %v476
        %v595 = vpack.c.b16 %v481, %v479
        %v596 = vpack.c.b16 %v482, %v480
        %v597 = vpack.c.b16 %v485, %v483
        %v598 = vpack.c.b16 %v486, %v484
        %v599 = vpack.c.b16 %v489, %v487
        %v600 = vpack.c.b16 %v490, %v488
        %v601 = vpack.c.b16 %v493, %v491
        %v602 = vpack.c.b16 %v494, %v492
        %v603 = vpack.c.b16 %v497, %v495
        %v604 = vpack.c.b16 %v498, %v496
        %v605 = vpack.c.b16 %v501, %v499
        %v606 = vpack.c.b16 %v502, %v500
        %v607 = vpack.c.b16 %v505, %v503
        %v608 = vpack.c.b16 %v506, %v504
        %v609 = vpack.c.b16 %v509, %v507
        %v610 = vpack.c.b16 %v510, %v508
        %v611 = vpack.c.b16 %v513, %v511
        %v612 = vpack.c.b16 %v514, %v512
        %v613 = vpack.c.b16 %v517, %v515
        %v614 = vpack.c.b16 %v518, %v516
        %v615 = vpack.c.b16 %v521, %v519
        %v616 = vpack.c.b16 %v522, %v520
        %v617 = vpack.c.b16 %v525, %v523
        %v618 = vpack.c.b16 %v526, %v524
        %v619 = vpack.c.b16 %v529, %v527
        %v620 = vpack.c.b16 %v530, %v528
        %v621 = vpack.c.b16 %v533, %v531
        %v622 = vpack.c.b16 %v534, %v532
        %v623 = vpack.c.b16 %v537, %v535
        %v624 = vpack.c.b16 %v538, %v536
        %v625 = vpack.c.b16 %v541, %v539
        %v626 = vpack.c.b16 %v542, %v540
        %v627 = vpack.c.b16 %v545, %v543
        %v628 = vpack.c.b16 %v546, %v544
        %v629 = vpack.c.b16 %v549, %v547
        %v630 = vpack.c.b16 %v550, %v548
        %v631 = vpack.c.b16 %v553, %v551
        %v632 = vpack.c.b16 %v554, %v552
        %v633 = vpack.c.b16 %v557, %v555
        %v634 = vpack.c.b16 %v558, %v556
        %v635 = vpack.c.b16 %v561, %v559
        %v636 = vpack.c.b16 %v562, %v560
        %v637 = vpack.c.b16 %v565, %v563
        %v638 = vpack.c.b16 %v566, %v564
        %v639 = vpack.c.b16 %v569, %v567
        %v640 = vpack.c.b16 %v570, %v568
        %v641 = vpack.c.b16 %v573, %v571
        %v642 = vpack.c.b16 %v574, %v572
        %v643 = vpack.c.b16 %v577, %v575
        %v644 = vpack.c.b16 %v578, %v576
        %v645 = vpack.c.b16 %v581, %v579
        %v646 = vpack.c.b16 %v582, %v580
        %711 = vmatprep.subr.bf16.mxu0 %v584
        %712 = vmatpush1.bf16.msra.mxu0 %v583
        %713 = vmatprep.subr.bf16.mxu0 %v586
        %714 = vmatpush1.bf16.msra.mxu0 %v585
        %715 = vmatprep.subr.bf16.mxu0 %v588
        %716 = vmatpush1.bf16.msra.mxu0 %v587
        %717 = vmatprep.subr.bf16.mxu0 %v590
        %718 = vmatpush1.bf16.msra.mxu0 %v589
        %719 = vmatprep.subr.bf16.mxu0 %v592
        %720 = vmatpush1.bf16.msra.mxu0 %v591
        %721 = vmatprep.subr.bf16.mxu0 %v594
        %722 = vmatpush1.bf16.msra.mxu0 %v593
        %723 = vmatprep.subr.bf16.mxu0 %v596
        %724 = vmatpush1.bf16.msra.mxu0 %v595
        %725 = vmatprep.subr.bf16.mxu0 %v598
        %726 = vmatpush1.bf16.msra.mxu0 %v597
        %727 = vmatprep.subr.bf16.mxu0 %v600
        %728 = vmatpush1.bf16.msra.mxu0 %v599
        %729 = vmatprep.subr.bf16.mxu0 %v602
        %730 = vmatpush1.bf16.msra.mxu0 %v601
        %731 = vmatprep.subr.bf16.mxu0 %v604
        %732 = vmatpush1.bf16.msra.mxu0 %v603
        %733 = vmatprep.subr.bf16.mxu0 %v606
        %734 = vmatpush1.bf16.msra.mxu0 %v605
        %735 = vmatprep.subr.bf16.mxu0 %v608
        %736 = vmatpush1.bf16.msra.mxu0 %v607
        %737 = vmatprep.subr.bf16.mxu0 %v610
        %738 = vmatpush1.bf16.msra.mxu0 %v609
        %739 = vmatprep.subr.bf16.mxu0 %v612
        %740 = vmatpush1.bf16.msra.mxu0 %v611
        %741 = vmatprep.subr.bf16.mxu0 %v614
        %742 = vmatpush1.bf16.msra.mxu0 %v613
        %743 = vmatprep.mubr.bf16.mxu0 %v376
        %744 = vmatmul.mubr.bf16.gmra.mrb[0].mxu0 %v375
        %v745 = vpop.f32.mrb[0].mxu0
        %v746 = vadd.f32 0.0, %v745
        %v747 = vpop.f32.mrb[0].mxu0
        %v748 = vadd.f32 0.0, %v747
        %v749 = vpop.f32.mrb[0].mxu0
        %v750 = vadd.f32 0.0, %v749
        %v751 = vpop.f32.mrb[0].mxu0
        %v752 = vadd.f32 0.0, %v751
        %753 = vmatprep.mubr.bf16.mxu0 %v380
        %754 = vmatmul.mubr.bf16.gmra.mrb[0].mxu0 %v379
        %v755 = vpop.f32.mrb[0].mxu0
        %v756 = vadd.f32 0.0, %v755
        %v757 = vpop.f32.mrb[0].mxu0
        %v758 = vadd.f32 0.0, %v757
        %v759 = vpop.f32.mrb[0].mxu0
        %v760 = vadd.f32 0.0, %v759
        %v761 = vpop.f32.mrb[0].mxu0
        %v762 = vadd.f32 0.0, %v761
        %763 = vdwg.mxu0
        %764 = vmatprep.subr.bf16.mxu0 %v616
        %765 = vmatpush1.bf16.msra.mxu0 %v615
        %766 = vmatprep.subr.bf16.mxu0 %v618
        %767 = vmatpush1.bf16.msra.mxu0 %v617
        %768 = vmatprep.subr.bf16.mxu0 %v620
        %769 = vmatpush1.bf16.msra.mxu0 %v619
        %770 = vmatprep.subr.bf16.mxu0 %v622
        %771 = vmatpush1.bf16.msra.mxu0 %v621
        %772 = vmatprep.subr.bf16.mxu0 %v624
        %773 = vmatpush1.bf16.msra.mxu0 %v623
        %774 = vmatprep.subr.bf16.mxu0 %v626
        %775 = vmatpush1.bf16.msra.mxu0 %v625
        %776 = vmatprep.subr.bf16.mxu0 %v628
        %777 = vmatpush1.bf16.msra.mxu0 %v627
        %778 = vmatprep.subr.bf16.mxu0 %v630
        %779 = vmatpush1.bf16.msra.mxu0 %v629
        %780 = vmatprep.subr.bf16.mxu0 %v632
        %781 = vmatpush1.bf16.msra.mxu0 %v631
        %782 = vmatprep.subr.bf16.mxu0 %v634
        %783 = vmatpush1.bf16.msra.mxu0 %v633
        %784 = vmatprep.subr.bf16.mxu0 %v636
        %785 = vmatpush1.bf16.msra.mxu0 %v635
        %786 = vmatprep.subr.bf16.mxu0 %v638
        %787 = vmatpush1.bf16.msra.mxu0 %v637
        %788 = vmatprep.subr.bf16.mxu0 %v640
        %789 = vmatpush1.bf16.msra.mxu0 %v639
        %790 = vmatprep.subr.bf16.mxu0 %v642
        %791 = vmatpush1.bf16.msra.mxu0 %v641
        %792 = vmatprep.subr.bf16.mxu0 %v644
        %793 = vmatpush1.bf16.msra.mxu0 %v643
        %794 = vmatprep.subr.bf16.mxu0 %v646
        %795 = vmatpush1.bf16.msra.mxu0 %v645
        %796 = vmatprep.mubr.bf16.mxu0 %v378
        %797 = vmatmul.mubr.bf16.gmra.mrb[0].mxu0 %v377
        %v798 = vpop.f32.mrb[0].mxu0
        %v799 = vadd.f32 %v746, %v798
        %v800 = vpop.f32.mrb[0].mxu0
        %v801 = vadd.f32 %v748, %v800
        %v802 = vpop.f32.mrb[0].mxu0
        %v803 = vadd.f32 %v750, %v802
        %v804 = vpop.f32.mrb[0].mxu0
        %v805 = vadd.f32 %v752, %v804
        %806 = vmatprep.mubr.bf16.mxu0 %v382
        %807 = vmatmul.mubr.bf16.gmra.mrb[0].mxu0 %v381
        %v808 = vpop.f32.mrb[0].mxu0
        %v809 = vadd.f32 %v756, %v808
        %v810 = vpop.f32.mrb[0].mxu0
        %v811 = vadd.f32 %v758, %v810
        %v812 = vpop.f32.mrb[0].mxu0
        %v813 = vadd.f32 %v760, %v812
        %v814 = vpop.f32.mrb[0].mxu0
        %v815 = vadd.f32 %v762, %v814
        %816 = vdwg.mxu0
        %v817 = vadd.f32 %v271, %v799
        %v818 = vadd.f32 %v272, %v801
        %v819 = vadd.f32 %v273, %v803
        %v820 = vadd.f32 %v274, %v805
        %v821 = vadd.f32 %v275, %v809
        %v822 = vadd.f32 %v276, %v811
        %v823 = vadd.f32 %v277, %v813
        %v824 = vadd.f32 %v278, %v815
        %825 = vst [vmem:[#allocation2] sm:$0xff] %v817
        %826 = vst [vmem:[#allocation2 + $0x8] sm:$0xff] %v818
        %827 = vst [vmem:[#allocation2 + $0x10] sm:$0xff] %v819
        %828 = vst [vmem:[#allocation2 + $0x18] sm:$0xff] %v820
        %829 = vst [vmem:[#allocation2 + $0x20] sm:$0xff] %v821
        %830 = vst [vmem:[#allocation2 + $0x28] sm:$0xff] %v822
        %831 = vst [vmem:[#allocation2 + $0x30] sm:$0xff] %v823
        %832 = vst [vmem:[#allocation2 + $0x38] sm:$0xff] %v824
        %p833 = scmp.eq.s32.totalorder %s20, 3
        // Predicated region
        $region56: #{discriminator_forward.7} parent=46 // pred_check
          %p834 = pneg %p833
        $region57: #{discriminator_forward.7} parent=46 // pred_check_branch
          %836 = sbr.rel (%p834) target = $region59
        $region58: #{discriminator_forward.7} parent=46 // pred_region
          %v837 = vld [vmem:[#allocation2] sm:$0xff]
          %v838 = vld [vmem:[#allocation2 + $0x8] sm:$0xff]
          %v839 = vld [vmem:[#allocation2 + $0x10] sm:$0xff]
          %v840 = vld [vmem:[#allocation2 + $0x18] sm:$0xff]
          %v841 = vld [vmem:[#allocation2 + $0x20] sm:$0xff]
          %v842 = vld [vmem:[#allocation2 + $0x28] sm:$0xff]
          %v843 = vld [vmem:[#allocation2 + $0x30] sm:$0xff]
          %v844 = vld [vmem:[#allocation2 + $0x38] sm:$0xff]
          %vm845 = vcmp.ge.f32.partialorder %v837, 0.0
          %vm846 = vcmp.ge.f32.partialorder %v838, 0.0
          %vm847 = vcmp.ge.f32.partialorder %v839, 0.0
          %vm848 = vcmp.ge.f32.partialorder %v840, 0.0
          %vm849 = vcmp.ge.f32.partialorder %v841, 0.0
          %vm850 = vcmp.ge.f32.partialorder %v842, 0.0
          %vm851 = vcmp.ge.f32.partialorder %v843, 0.0
          %vm852 = vcmp.ge.f32.partialorder %v844, 0.0
          %v853 = vmul.f32 %v837, 0.2
          %v854 = vmul.f32 %v838, 0.2
          %v855 = vmul.f32 %v839, 0.2
          %v856 = vmul.f32 %v840, 0.2
          %v857 = vmul.f32 %v841, 0.2
          %v858 = vmul.f32 %v842, 0.2
          %v859 = vmul.f32 %v843, 0.2
          %v860 = vmul.f32 %v844, 0.2
          %v861 = vsel %vm845, %v837, %v853
          %v862 = vsel %vm846, %v838, %v854
          %v863 = vsel %vm847, %v839, %v855
          %v864 = vsel %vm848, %v840, %v856
          %v865 = vsel %vm849, %v841, %v857
          %v866 = vsel %vm850, %v842, %v858
          %v867 = vsel %vm851, %v843, %v859
          %v868 = vsel %vm852, %v844, %v860
          %869 = vst [vmem:[%s256] sm:$0xff] %v861
          %870 = vst [vmem:[%s256 + $0x8] sm:$0xff] %v862
          %871 = vst [vmem:[%s256 + $0x10] sm:$0xff] %v863
          %872 = vst [vmem:[%s256 + $0x18] sm:$0xff] %v864
          %873 = vst [vmem:[%s256 + $0x20] sm:$0xff] %v865
          %874 = vst [vmem:[%s256 + $0x28] sm:$0xff] %v866
          %875 = vst [vmem:[%s256 + $0x30] sm:$0xff] %v867
          %876 = vst [vmem:[%s256 + $0x38] sm:$0xff] %v868
        $region59: #{discriminator_forward.7} parent=46 // pred_fallthru
          _
        %s877 = smul.u32 4, %s18
        %s878 = smul.u32 2, %s19
        %p879 = scmp.lt.s32.totalorder %s877, 3
        %s880 = scalar_select %p879, %s877, 3
        %p881 = scmp.lt.s32.totalorder %s878, 1
        %s882 = scalar_select %p881, %s878, 1
        %s883 = smul.addr %s880, 2
        %s884 = sadd.s32 %s882, %s883
        %s885 = smul.addr %s884, 8
        %s886 = scalar_lea.vmem %s2, %s885
        // Predicated region
        $region60: #{discriminator_forward.7} parent=46 // pred_check
          %p887 = pneg %p108
        $region61: #{discriminator_forward.7} parent=46 // pred_check_branch
          %889 = sbr.rel (%p887) target = $region63
        $region62: #{discriminator_forward.7} parent=46 // pred_region
          %s890 = smul.u32 4, %s18
          %s891 = smul.u32 2, %s19
        $region63: #{discriminator_forward.7} parent=46 // pred_fallthru
          _
        // Predicated region
        $region64: #{discriminator_forward.7} parent=46 // pred_check
          %p892 = pneg %p108
        $region65: #{discriminator_forward.7} parent=46 // pred_check_branch
          %894 = sbr.rel (%p892) target = $region67
        $region66: #{discriminator_forward.7} parent=46 // pred_region
          %s895 = smul.u32 4, %s18
          %s896 = smul.u32 2, %s19
          %p897 = scmp.lt.s32.totalorder %s895, 3
          %s898 = scalar_select %p897, %s895, 3
          %p899 = scmp.lt.s32.totalorder %s896, 1
          %s900 = scalar_select %p899, %s896, 1
          %s901 = smul.addr %s898, 2
          %s902 = sadd.s32 %s900, %s901
          %s903 = smul.addr %s902, 8
          %s904 = scalar_lea.vmem %s2, %s903
        $region67: #{discriminator_forward.7} parent=46 // pred_fallthru
          _
      $region47: #{discriminator_forward.7} parent=5 // pred_fallthru
        _
      %p905 = scmp.le.s32.totalorder 2, %s8
      // Predicated region
      $region68: #{discriminator_forward.7} parent=5 // pred_check
        %p906 = pneg %p905
      $region69: #{discriminator_forward.7} parent=5 // pred_check_branch
        %908 = sbr.rel (%p906) target = $region71
      $region70: #{discriminator_forward.7} parent=5 // pred_region
        %s909 = ssub.s32 %s8, 2
      $region71: #{discriminator_forward.7} parent=5 // pred_fallthru
        _
    $region6: #{discriminator_forward.7} parent=1 // loop_footer
      %s12 = sadd.s32 1, %s8
    $region7: #{discriminator_forward.7} parent=1 // loop_footer_branch
      %7 = sbr.rel target = $region3
    $region8: #{discriminator_forward.7} parent=1 // loop_exit
      _

// kernel: discriminator_forward.8
$region0: #{discriminator_forward.8}
  #allocation0 [shape = 'u32[]', space=smem, size = 0x4, offset = 0x4, fixed_abs, tag = 'smem constant byte address 0x4 - core index']
  #allocation1 [shape = 'u32[144,128]{1,0:T(1,128)}', space=vmem, size = 0x12000, scoped, tag = 'internal scratch']
  #allocation2 [shape = 'f32[24,256]{1,0:T(8,128)}', space=vmem, size = 0x6000, scoped, tag = 'scratch operand']
  %s0 = inlined_call_operand.vmem [shape: bf16[24,4096], index: 0, kind: input, shape index: {}]
  %s1 = inlined_call_operand.vmem [shape: bf16[4096,512], index: 1, kind: input, shape index: {}]
  %s2 = inlined_call_operand.vmem [shape: f32[24,512], index: 2, kind: output, shape index: {}]
  %s3 = sld [smem:[#allocation0]]
  $region129: #{discriminator_forward.8} parent=0
    _
  %s5 = ssub.s32 1, %s3
  %s6 = scalar_select 0, %s5, %s3
  $region1: #{discriminator_forward.8} parent=0
    #allocation3 [shape = 'u8[49152]{0}', space=vmem, size = 0xc000, scoped, tag = 'input window, operand 0']
    #allocation4 [shape = 'u8[524288]{0}', space=vmem, size = 0x80000, scoped, tag = 'input window, operand 1']
    #allocation5 [shape = 'u8[49152]{0}', space=vmem, size = 0xc000, scoped, tag = 'output window, operand 0']
    loop: start=0, step=1, limit=18
    $region2: #{discriminator_forward.8} parent=1 // loop_pre_header
      _
    $region3: #{discriminator_forward.8} parent=1 // loop_header
      %s8 = sphi 0, %s12
      %p9 = scmp.ge.s32.totalorder %s8, 18
      %s15 = sphi 0, %s34
      %s16 = sphi 0, %s30
      %s17 = sphi 0, %s26
      %s18 = sphi 0, %s15
      %s19 = sphi 0, %s16
      %s20 = sphi 0, %s17
      %s21 = sphi 0, %s18
      %s22 = sphi 0, %s19
      %s23 = sphi 0, %s20
      %s39 = sphi 0, %s41
      %s42 = sphi 0, %s39
      %s43 = sphi 0, %s42
      %s59 = sphi 0, %s43
      %s67 = sphi 0, %s69
      %s70 = sphi 0, %s67
      %s71 = sphi 0, %s70
      %s87 = sphi 0, %s71
      %s95 = sphi 0, %s97
      %s98 = sphi 0, %s95
      %s99 = sphi 0, %s98
      %s115 = sphi 0, %s99
    $region4: #{discriminator_forward.8} parent=1 // loop_header_branch
      %11 = sbr.rel (%p9) target = $region8
    $region5: #{discriminator_forward.8} parent=1 // loop_body
      %s13 = ssub.s32 %s8, 1
      %s14 = ssub.s32 %s8, 2
      %s24 = sadd.s32 1, %s17
      %p25 = scmp.ge.s32.totalorder %s24, 8
      %s26 = scalar_select %p25, 0, %s24
      %s27 = sadd.s32 1, %s16
      %s28 = scalar_select %p25, %s27, %s16
      %p29 = scmp.ge.s32.totalorder %s28, 2
      %s30 = scalar_select %p29, 0, %s28
      %s31 = sadd.s32 1, %s15
      %s32 = scalar_select %p29, %s31, %s15
      %p33 = scmp.ge.s32.totalorder %s32, 1
      %s34 = scalar_select %p33, 0, %s32
      %s35 = ssub.s32 %s15, %s34
      %s36 = ssub.s32 %s17, %s26
      %s37 = sor.u32 %s35, %s36
      %p38 = scmp.eq.s32.totalorder %s37, 0
      %s40 = sadd.s32 %s39, 1
      %s41 = scalar_select %p38, %s39, %s40
      %p44 = pneg %p38
      %p45 = scmp.eq.s32.totalorder %s8, 15
      %p46 = por %p44, %p45
      %p47 = scmp.ne.s32.totalorder %s39, %s42
      %p48 = scmp.eq.s32.totalorder %s8, 0
      %p49 = por %p47, %p48
      %p50 = scmp.ne.s32.totalorder %s39, %s42
      %p51 = scmp.eq.s32.totalorder %s13, 15
      %p52 = por %p50, %p51
      %p53 = scmp.ne.s32.totalorder %s42, %s43
      %p54 = scmp.eq.s32.totalorder %s13, 0
      %p55 = por %p53, %p54
      %p56 = scmp.ne.s32.totalorder %s42, %s43
      %p57 = scmp.eq.s32.totalorder %s14, 15
      %p58 = por %p56, %p57
      %p60 = scmp.ne.s32.totalorder %s43, %s59
      %p61 = scmp.eq.s32.totalorder %s14, 0
      %p62 = por %p60, %p61
      %s63 = ssub.s32 %s17, %s26
      %s64 = ssub.s32 %s16, %s30
      %s65 = sor.u32 %s63, %s64
      %p66 = scmp.eq.s32.totalorder %s65, 0
      %s68 = sadd.s32 %s67, 1
      %s69 = scalar_select %p66, %s67, %s68
      %p72 = pneg %p66
      %p73 = scmp.eq.s32.totalorder %s8, 15
      %p74 = por %p72, %p73
      %p75 = scmp.ne.s32.totalorder %s67, %s70
      %p76 = scmp.eq.s32.totalorder %s8, 0
      %p77 = por %p75, %p76
      %p78 = scmp.ne.s32.totalorder %s67, %s70
      %p79 = scmp.eq.s32.totalorder %s13, 15
      %p80 = por %p78, %p79
      %p81 = scmp.ne.s32.totalorder %s70, %s71
      %p82 = scmp.eq.s32.totalorder %s13, 0
      %p83 = por %p81, %p82
      %p84 = scmp.ne.s32.totalorder %s70, %s71
      %p85 = scmp.eq.s32.totalorder %s14, 15
      %p86 = por %p84, %p85
      %p88 = scmp.ne.s32.totalorder %s71, %s87
      %p89 = scmp.eq.s32.totalorder %s14, 0
      %p90 = por %p88, %p89
      %s91 = ssub.s32 %s15, %s34
      %s92 = ssub.s32 %s16, %s30
      %s93 = sor.u32 %s91, %s92
      %p94 = scmp.eq.s32.totalorder %s93, 0
      %s96 = sadd.s32 %s95, 1
      %s97 = scalar_select %p94, %s95, %s96
      %p100 = pneg %p94
      %p101 = scmp.eq.s32.totalorder %s8, 15
      %p102 = por %p100, %p101
      %p103 = scmp.ne.s32.totalorder %s95, %s98
      %p104 = scmp.eq.s32.totalorder %s8, 0
      %p105 = por %p103, %p104
      %p106 = scmp.ne.s32.totalorder %s95, %s98
      %p107 = scmp.eq.s32.totalorder %s13, 15
      %p108 = por %p106, %p107
      %p109 = scmp.ne.s32.totalorder %s98, %s99
      %p110 = scmp.eq.s32.totalorder %s13, 0
      %p111 = por %p109, %p110
      %p112 = scmp.ne.s32.totalorder %s98, %s99
      %p113 = scmp.eq.s32.totalorder %s14, 15
      %p114 = por %p112, %p113
      %p116 = scmp.ne.s32.totalorder %s99, %s115
      %p117 = scmp.eq.s32.totalorder %s14, 0
      %p118 = por %p116, %p117
      %p119 = scmp.le.s32.totalorder 1, %s8
      %p120 = scmp.lt.s32.totalorder %s8, 17
      %p121 = pnand %p119, %p120
      %p122 = pneg %p121
      // Predicated region
      $region9: #{discriminator_forward.8} parent=5 // pred_check
        _
      $region10: #{discriminator_forward.8} parent=5 // pred_check_branch
        %124 = sbr.rel (%p121) target = $region12
      $region11: #{discriminator_forward.8} parent=5 // pred_region
        %s125 = ssub.s32 %s8, 1
      $region12: #{discriminator_forward.8} parent=5 // pred_fallthru
        _
      %p126 = scmp.lt.s32.totalorder %s8, 16
      // Predicated region
      $region13: #{discriminator_forward.8} parent=5 // pred_check
        %p127 = pneg %p126
      $region14: #{discriminator_forward.8} parent=5 // pred_check_branch
        %129 = sbr.rel (%p127) target = $region16
      $region15: #{discriminator_forward.8} parent=5 // pred_region
        // Predicated region
        $region17: #{discriminator_forward.8} parent=15 // pred_check
          %p130 = pneg %p49
        $region18: #{discriminator_forward.8} parent=15 // pred_check_branch
          %132 = sbr.rel (%p130) target = $region20
        $region19: #{discriminator_forward.8} parent=15 // pred_region
          %s133 = sand.u32 %s39, 1
          %s134 = sand.u32 %s39, 1
          %s135 = smul.addr %s134, 48
          %s136 = scalar_lea.vmem [#allocation3], %s135
          %s137 = smul.u32 3, %s15
          %s138 = smul.u32 4, %s17
          %s139 = smul.addr %s137, 32
          %s140 = sadd.s32 %s138, %s139
          %s141 = smul.addr %s140, 4
          %s142 = scalar_lea.vmem %s0, %s141
          // Predicated region
          $region21: #{discriminator_forward.8} parent=19 // pred_check
            _
          $region22: #{discriminator_forward.8} parent=19 // pred_check_branch
            %144 = sbr.rel (0) target = $region24
          $region23: #{discriminator_forward.8} parent=19 // pred_region
            // Predicated region
            $region25: #{discriminator_forward.8} parent=23 // pred_check
              _
            $region26: #{discriminator_forward.8} parent=23 // pred_check_branch
              %146 = sbr.rel (0) target = $region28
            $region27: #{discriminator_forward.8} parent=23 // pred_region
              loop: start=0, step=1, limit=1
              $region29: #{discriminator_forward.8} parent=27 // loop_pre_header
                _
              $region30: #{discriminator_forward.8} parent=27 // loop_header
                %s148 = sphi 0, %s152
                %p149 = scmp.ge.s32.totalorder %s148, 1
                %s153 = sphi %s142, %s142
                %s154 = sphi %s136, %s136
              $region31: #{discriminator_forward.8} parent=27 // loop_header_branch
                %151 = sbr.rel (%p149) target = $region35
              $region32: #{discriminator_forward.8} parent=27 // loop_body
                %v155 = vld [vmem:[%s153] sm:$0xff]
                %156 = vst [vmem:[%s154] sm:$0xff] %v155
                %v157 = vld [vmem:[%s153 + $0x8] sm:$0xff]
                %158 = vst [vmem:[%s154 + $0x8] sm:$0xff] %v157
                %v159 = vld [vmem:[%s153 + $0x80] sm:$0xff]
                %160 = vst [vmem:[%s154 + $0x10] sm:$0xff] %v159
                %v161 = vld [vmem:[%s153 + $0x88] sm:$0xff]
                %162 = vst [vmem:[%s154 + $0x18] sm:$0xff] %v161
                %v163 = vld [vmem:[%s153 + $0x100] sm:$0xff]
                %164 = vst [vmem:[%s154 + $0x20] sm:$0xff] %v163
                %v165 = vld [vmem:[%s153 + $0x108] sm:$0xff]
                %166 = vst [vmem:[%s154 + $0x28] sm:$0xff] %v165
              $region33: #{discriminator_forward.8} parent=27 // loop_footer
                %s152 = sadd.s32 1, %s148
              $region34: #{discriminator_forward.8} parent=27 // loop_footer_branch
                %147 = sbr.rel target = $region30
              $region35: #{discriminator_forward.8} parent=27 // loop_exit
                _
            $region28: #{discriminator_forward.8} parent=23 // pred_fallthru
              _
            // Predicated region
            $region36: #{discriminator_forward.8} parent=23 // pred_check
              _
            $region37: #{discriminator_forward.8} parent=23 // pred_check_branch
              %168 = sbr.rel target = $region39
            $region38: #{discriminator_forward.8} parent=23 // pred_region
              _
            $region39: #{discriminator_forward.8} parent=23 // pred_fallthru
              _
          $region24: #{discriminator_forward.8} parent=19 // pred_fallthru
            _
          %169 = vnop
        $region20: #{discriminator_forward.8} parent=15 // pred_fallthru
          _
        // Predicated region
        $region40: #{discriminator_forward.8} parent=15 // pred_check
          %p170 = pneg %p77
        $region41: #{discriminator_forward.8} parent=15 // pred_check_branch
          %172 = sbr.rel (%p170) target = $region43
        $region42: #{discriminator_forward.8} parent=15 // pred_region
          %s173 = sand.u32 %s67, 1
          %s174 = sand.u32 %s67, 1
          %s175 = smul.addr %s174, 512
          %s176 = scalar_lea.vmem [#allocation4], %s175
          %s177 = smul.u32 64, %s17
          %s178 = smul.u32 2, %s16
          %s179 = smul.addr %s177, 4
          %s180 = sadd.s32 %s178, %s179
          %s181 = smul.addr %s180, 4
          %s182 = scalar_lea.vmem %s1, %s181
          // Predicated region
          $region44: #{discriminator_forward.8} parent=42 // pred_check
            _
          $region45: #{discriminator_forward.8} parent=42 // pred_check_branch
            %184 = sbr.rel (0) target = $region47
          $region46: #{discriminator_forward.8} parent=42 // pred_region
            // Predicated region
            $region48: #{discriminator_forward.8} parent=46 // pred_check
              _
            $region49: #{discriminator_forward.8} parent=46 // pred_check_branch
              %186 = sbr.rel (0) target = $region51
            $region50: #{discriminator_forward.8} parent=46 // pred_region
              // Predicated region
              $region63: #{discriminator_forward.8} parent=50 // pred_check
                _
              $region64: #{discriminator_forward.8} parent=50 // pred_check_branch
                %327 = sbr.rel (0) target = $region66
              $region65: #{discriminator_forward.8} parent=50 // pred_region
                loop: start=0, step=1, limit=1
                $region67: #{discriminator_forward.8} parent=65 // loop_pre_header
                  _
                $region68: #{discriminator_forward.8} parent=65 // loop_header
                  %s329 = sphi 0, %s333
                  %p330 = scmp.ge.s32.totalorder %s329, 1
                  %s334 = sphi %s182, %s182
                  %s335 = sphi %s176, %s176
                $region69: #{discriminator_forward.8} parent=65 // loop_header_branch
                  %332 = sbr.rel (%p330) target = $region73
                $region70: #{discriminator_forward.8} parent=65 // loop_body
                  %v336 = vld [vmem:[%s334] sm:$0xff]
                  %337 = vst [vmem:[%s335] sm:$0xff] %v336
                  %v338 = vld [vmem:[%s334 + $0x10] sm:$0xff]
                  %339 = vst [vmem:[%s335 + $0x8] sm:$0xff] %v338
                  %v340 = vld [vmem:[%s334 + $0x20] sm:$0xff]
                  %341 = vst [vmem:[%s335 + $0x10] sm:$0xff] %v340
                  %v342 = vld [vmem:[%s334 + $0x30] sm:$0xff]
                  %343 = vst [vmem:[%s335 + $0x18] sm:$0xff] %v342
                  %v344 = vld [vmem:[%s334 + $0x40] sm:$0xff]
                  %345 = vst [vmem:[%s335 + $0x20] sm:$0xff] %v344
                  %v346 = vld [vmem:[%s334 + $0x50] sm:$0xff]
                  %347 = vst [vmem:[%s335 + $0x28] sm:$0xff] %v346
                  %v348 = vld [vmem:[%s334 + $0x60] sm:$0xff]
                  %349 = vst [vmem:[%s335 + $0x30] sm:$0xff] %v348
                  %v350 = vld [vmem:[%s334 + $0x70] sm:$0xff]
                  %351 = vst [vmem:[%s335 + $0x38] sm:$0xff] %v350
                  %v352 = vld [vmem:[%s334 + $0x80] sm:$0xff]
                  %353 = vst [vmem:[%s335 + $0x40] sm:$0xff] %v352
                  %v354 = vld [vmem:[%s334 + $0x90] sm:$0xff]
                  %355 = vst [vmem:[%s335 + $0x48] sm:$0xff] %v354
                  %v356 = vld [vmem:[%s334 + $0xa0] sm:$0xff]
                  %357 = vst [vmem:[%s335 + $0x50] sm:$0xff] %v356
                  %v358 = vld [vmem:[%s334 + $0xb0] sm:$0xff]
                  %359 = vst [vmem:[%s335 + $0x58] sm:$0xff] %v358
                  %v360 = vld [vmem:[%s334 + $0xc0] sm:$0xff]
                  %361 = vst [vmem:[%s335 + $0x60] sm:$0xff] %v360
                  %v362 = vld [vmem:[%s334 + $0xd0] sm:$0xff]
                  %363 = vst [vmem:[%s335 + $0x68] sm:$0xff] %v362
                  %v364 = vld [vmem:[%s334 + $0xe0] sm:$0xff]
                  %365 = vst [vmem:[%s335 + $0x70] sm:$0xff] %v364
                  %v366 = vld [vmem:[%s334 + $0xf0] sm:$0xff]
                  %367 = vst [vmem:[%s335 + $0x78] sm:$0xff] %v366
                  %v368 = vld [vmem:[%s334 + $0x100] sm:$0xff]
                  %369 = vst [vmem:[%s335 + $0x80] sm:$0xff] %v368
                  %v370 = vld [vmem:[%s334 + $0x110] sm:$0xff]
                  %371 = vst [vmem:[%s335 + $0x88] sm:$0xff] %v370
                  %v372 = vld [vmem:[%s334 + $0x120] sm:$0xff]
                  %373 = vst [vmem:[%s335 + $0x90] sm:$0xff] %v372
                  %v374 = vld [vmem:[%s334 + $0x130] sm:$0xff]
                  %375 = vst [vmem:[%s335 + $0x98] sm:$0xff] %v374
                  %v376 = vld [vmem:[%s334 + $0x140] sm:$0xff]
                  %377 = vst [vmem:[%s335 + $0xa0] sm:$0xff] %v376
                  %v378 = vld [vmem:[%s334 + $0x150] sm:$0xff]
                  %379 = vst [vmem:[%s335 + $0xa8] sm:$0xff] %v378
                  %v380 = vld [vmem:[%s334 + $0x160] sm:$0xff]
                  %381 = vst [vmem:[%s335 + $0xb0] sm:$0xff] %v380
                  %v382 = vld [vmem:[%s334 + $0x170] sm:$0xff]
                  %383 = vst [vmem:[%s335 + $0xb8] sm:$0xff] %v382
                  %v384 = vld [vmem:[%s334 + $0x180] sm:$0xff]
                  %385 = vst [vmem:[%s335 + $0xc0] sm:$0xff] %v384
                  %v386 = vld [vmem:[%s334 + $0x190] sm:$0xff]
                  %387 = vst [vmem:[%s335 + $0xc8] sm:$0xff] %v386
                  %v388 = vld [vmem:[%s334 + $0x1a0] sm:$0xff]
                  %389 = vst [vmem:[%s335 + $0xd0] sm:$0xff] %v388
                  %v390 = vld [vmem:[%s334 + $0x1b0] sm:$0xff]
                  %391 = vst [vmem:[%s335 + $0xd8] sm:$0xff] %v390
                  %v392 = vld [vmem:[%s334 + $0x1c0] sm:$0xff]
                  %393 = vst [vmem:[%s335 + $0xe0] sm:$0xff] %v392
                  %v394 = vld [vmem:[%s334 + $0x1d0] sm:$0xff]
                  %395 = vst [vmem:[%s335 + $0xe8] sm:$0xff] %v394
                  %v396 = vld [vmem:[%s334 + $0x1e0] sm:$0xff]
                  %397 = vst [vmem:[%s335 + $0xf0] sm:$0xff] %v396
                  %v398 = vld [vmem:[%s334 + $0x1f0] sm:$0xff]
                  %399 = vst [vmem:[%s335 + $0xf8] sm:$0xff] %v398
                  %v400 = vld [vmem:[%s334 + $0x200] sm:$0xff]
                  %401 = vst [vmem:[%s335 + $0x100] sm:$0xff] %v400
                  %v402 = vld [vmem:[%s334 + $0x210] sm:$0xff]
                  %403 = vst [vmem:[%s335 + $0x108] sm:$0xff] %v402
                  %v404 = vld [vmem:[%s334 + $0x220] sm:$0xff]
                  %405 = vst [vmem:[%s335 + $0x110] sm:$0xff] %v404
                  %v406 = vld [vmem:[%s334 + $0x230] sm:$0xff]
                  %407 = vst [vmem:[%s335 + $0x118] sm:$0xff] %v406
                  %v408 = vld [vmem:[%s334 + $0x240] sm:$0xff]
                  %409 = vst [vmem:[%s335 + $0x120] sm:$0xff] %v408
                  %v410 = vld [vmem:[%s334 + $0x250] sm:$0xff]
                  %411 = vst [vmem:[%s335 + $0x128] sm:$0xff] %v410
                  %v412 = vld [vmem:[%s334 + $0x260] sm:$0xff]
                  %413 = vst [vmem:[%s335 + $0x130] sm:$0xff] %v412
                  %v414 = vld [vmem:[%s334 + $0x270] sm:$0xff]
                  %415 = vst [vmem:[%s335 + $0x138] sm:$0xff] %v414
                  %v416 = vld [vmem:[%s334 + $0x280] sm:$0xff]
                  %417 = vst [vmem:[%s335 + $0x140] sm:$0xff] %v416
                  %v418 = vld [vmem:[%s334 + $0x290] sm:$0xff]
                  %419 = vst [vmem:[%s335 + $0x148] sm:$0xff] %v418
                  %v420 = vld [vmem:[%s334 + $0x2a0] sm:$0xff]
                  %421 = vst [vmem:[%s335 + $0x150] sm:$0xff] %v420
                  %v422 = vld [vmem:[%s334 + $0x2b0] sm:$0xff]
                  %423 = vst [vmem:[%s335 + $0x158] sm:$0xff] %v422
                  %v424 = vld [vmem:[%s334 + $0x2c0] sm:$0xff]
                  %425 = vst [vmem:[%s335 + $0x160] sm:$0xff] %v424
                  %v426 = vld [vmem:[%s334 + $0x2d0] sm:$0xff]
                  %427 = vst [vmem:[%s335 + $0x168] sm:$0xff] %v426
                  %v428 = vld [vmem:[%s334 + $0x2e0] sm:$0xff]
                  %429 = vst [vmem:[%s335 + $0x170] sm:$0xff] %v428
                  %v430 = vld [vmem:[%s334 + $0x2f0] sm:$0xff]
                  %431 = vst [vmem:[%s335 + $0x178] sm:$0xff] %v430
                  %v432 = vld [vmem:[%s334 + $0x300] sm:$0xff]
                  %433 = vst [vmem:[%s335 + $0x180] sm:$0xff] %v432
                  %v434 = vld [vmem:[%s334 + $0x310] sm:$0xff]
                  %435 = vst [vmem:[%s335 + $0x188] sm:$0xff] %v434
                  %v436 = vld [vmem:[%s334 + $0x320] sm:$0xff]
                  %437 = vst [vmem:[%s335 + $0x190] sm:$0xff] %v436
                  %v438 = vld [vmem:[%s334 + $0x330] sm:$0xff]
                  %439 = vst [vmem:[%s335 + $0x198] sm:$0xff] %v438
                  %v440 = vld [vmem:[%s334 + $0x340] sm:$0xff]
                  %441 = vst [vmem:[%s335 + $0x1a0] sm:$0xff] %v440
                  %v442 = vld [vmem:[%s334 + $0x350] sm:$0xff]
                  %443 = vst [vmem:[%s335 + $0x1a8] sm:$0xff] %v442
                  %v444 = vld [vmem:[%s334 + $0x360] sm:$0xff]
                  %445 = vst [vmem:[%s335 + $0x1b0] sm:$0xff] %v444
                  %v446 = vld [vmem:[%s334 + $0x370] sm:$0xff]
                  %447 = vst [vmem:[%s335 + $0x1b8] sm:$0xff] %v446
                  %v448 = vld [vmem:[%s334 + $0x380] sm:$0xff]
                  %449 = vst [vmem:[%s335 + $0x1c0] sm:$0xff] %v448
                  %v450 = vld [vmem:[%s334 + $0x390] sm:$0xff]
                  %451 = vst [vmem:[%s335 + $0x1c8] sm:$0xff] %v450
                  %v452 = vld [vmem:[%s334 + $0x3a0] sm:$0xff]
                  %453 = vst [vmem:[%s335 + $0x1d0] sm:$0xff] %v452
                  %v454 = vld [vmem:[%s334 + $0x3b0] sm:$0xff]
                  %455 = vst [vmem:[%s335 + $0x1d8] sm:$0xff] %v454
                  %v456 = vld [vmem:[%s334 + $0x3c0] sm:$0xff]
                  %457 = vst [vmem:[%s335 + $0x1e0] sm:$0xff] %v456
                  %v458 = vld [vmem:[%s334 + $0x3d0] sm:$0xff]
                  %459 = vst [vmem:[%s335 + $0x1e8] sm:$0xff] %v458
                  %v460 = vld [vmem:[%s334 + $0x3e0] sm:$0xff]
                  %461 = vst [vmem:[%s335 + $0x1f0] sm:$0xff] %v460
                  %v462 = vld [vmem:[%s334 + $0x3f0] sm:$0xff]
                  %463 = vst [vmem:[%s335 + $0x1f8] sm:$0xff] %v462
                $region71: #{discriminator_forward.8} parent=65 // loop_footer
                  %s333 = sadd.s32 1, %s329
                $region72: #{discriminator_forward.8} parent=65 // loop_footer_branch
                  %328 = sbr.rel target = $region68
                $region73: #{discriminator_forward.8} parent=65 // loop_exit
                  _
              $region66: #{discriminator_forward.8} parent=50 // pred_fallthru
                _
              // Predicated region
              $region74: #{discriminator_forward.8} parent=50 // pred_check
                _
              $region75: #{discriminator_forward.8} parent=50 // pred_check_branch
                %465 = sbr.rel target = $region77
              $region76: #{discriminator_forward.8} parent=50 // pred_region
                _
              $region77: #{discriminator_forward.8} parent=50 // pred_fallthru
                _
            $region51: #{discriminator_forward.8} parent=46 // pred_fallthru
              _
            // Predicated region
            $region52: #{discriminator_forward.8} parent=46 // pred_check
              _
            $region53: #{discriminator_forward.8} parent=46 // pred_check_branch
              %188 = sbr.rel target = $region55
            $region54: #{discriminator_forward.8} parent=46 // pred_region
              loop: start=0, step=1, limit=1
              $region56: #{discriminator_forward.8} parent=54 // loop_pre_header
                _
              $region57: #{discriminator_forward.8} parent=54 // loop_header
                %s191 = sphi 0, %s195
                %p192 = scmp.ge.s32.totalorder %s191, 1
                %s196 = sphi %s182, %s182
                %s197 = sphi %s176, %s176
              $region58: #{discriminator_forward.8} parent=54 // loop_header_branch
                %194 = sbr.rel (%p192) target = $region62
              $region59: #{discriminator_forward.8} parent=54 // loop_body
                %v198 = vld [vmem:[%s196] sm:$0xff]
                %199 = vst [vmem:[%s197] sm:$0xff] %v198
                %v200 = vld [vmem:[%s196 + $0x10] sm:$0xff]
                %201 = vst [vmem:[%s197 + $0x8] sm:$0xff] %v200
                %v202 = vld [vmem:[%s196 + $0x20] sm:$0xff]
                %203 = vst [vmem:[%s197 + $0x10] sm:$0xff] %v202
                %v204 = vld [vmem:[%s196 + $0x30] sm:$0xff]
                %205 = vst [vmem:[%s197 + $0x18] sm:$0xff] %v204
                %v206 = vld [vmem:[%s196 + $0x40] sm:$0xff]
                %207 = vst [vmem:[%s197 + $0x20] sm:$0xff] %v206
                %v208 = vld [vmem:[%s196 + $0x50] sm:$0xff]
                %209 = vst [vmem:[%s197 + $0x28] sm:$0xff] %v208
                %v210 = vld [vmem:[%s196 + $0x60] sm:$0xff]
                %211 = vst [vmem:[%s197 + $0x30] sm:$0xff] %v210
                %v212 = vld [vmem:[%s196 + $0x70] sm:$0xff]
                %213 = vst [vmem:[%s197 + $0x38] sm:$0xff] %v212
                %v214 = vld [vmem:[%s196 + $0x80] sm:$0xff]
                %215 = vst [vmem:[%s197 + $0x40] sm:$0xff] %v214
                %v216 = vld [vmem:[%s196 + $0x90] sm:$0xff]
                %217 = vst [vmem:[%s197 + $0x48] sm:$0xff] %v216
                %v218 = vld [vmem:[%s196 + $0xa0] sm:$0xff]
                %219 = vst [vmem:[%s197 + $0x50] sm:$0xff] %v218
                %v220 = vld [vmem:[%s196 + $0xb0] sm:$0xff]
                %221 = vst [vmem:[%s197 + $0x58] sm:$0xff] %v220
                %v222 = vld [vmem:[%s196 + $0xc0] sm:$0xff]
                %223 = vst [vmem:[%s197 + $0x60] sm:$0xff] %v222
                %v224 = vld [vmem:[%s196 + $0xd0] sm:$0xff]
                %225 = vst [vmem:[%s197 + $0x68] sm:$0xff] %v224
                %v226 = vld [vmem:[%s196 + $0xe0] sm:$0xff]
                %227 = vst [vmem:[%s197 + $0x70] sm:$0xff] %v226
                %v228 = vld [vmem:[%s196 + $0xf0] sm:$0xff]
                %229 = vst [vmem:[%s197 + $0x78] sm:$0xff] %v228
                %v230 = vld [vmem:[%s196 + $0x100] sm:$0xff]
                %231 = vst [vmem:[%s197 + $0x80] sm:$0xff] %v230
                %v232 = vld [vmem:[%s196 + $0x110] sm:$0xff]
                %233 = vst [vmem:[%s197 + $0x88] sm:$0xff] %v232
                %v234 = vld [vmem:[%s196 + $0x120] sm:$0xff]
                %235 = vst [vmem:[%s197 + $0x90] sm:$0xff] %v234
                %v236 = vld [vmem:[%s196 + $0x130] sm:$0xff]
                %237 = vst [vmem:[%s197 + $0x98] sm:$0xff] %v236
                %v238 = vld [vmem:[%s196 + $0x140] sm:$0xff]
                %239 = vst [vmem:[%s197 + $0xa0] sm:$0xff] %v238
                %v240 = vld [vmem:[%s196 + $0x150] sm:$0xff]
                %241 = vst [vmem:[%s197 + $0xa8] sm:$0xff] %v240
                %v242 = vld [vmem:[%s196 + $0x160] sm:$0xff]
                %243 = vst [vmem:[%s197 + $0xb0] sm:$0xff] %v242
                %v244 = vld [vmem:[%s196 + $0x170] sm:$0xff]
                %245 = vst [vmem:[%s197 + $0xb8] sm:$0xff] %v244
                %v246 = vld [vmem:[%s196 + $0x180] sm:$0xff]
                %247 = vst [vmem:[%s197 + $0xc0] sm:$0xff] %v246
                %v248 = vld [vmem:[%s196 + $0x190] sm:$0xff]
                %249 = vst [vmem:[%s197 + $0xc8] sm:$0xff] %v248
                %v250 = vld [vmem:[%s196 + $0x1a0] sm:$0xff]
                %251 = vst [vmem:[%s197 + $0xd0] sm:$0xff] %v250
                %v252 = vld [vmem:[%s196 + $0x1b0] sm:$0xff]
                %253 = vst [vmem:[%s197 + $0xd8] sm:$0xff] %v252
                %v254 = vld [vmem:[%s196 + $0x1c0] sm:$0xff]
                %255 = vst [vmem:[%s197 + $0xe0] sm:$0xff] %v254
                %v256 = vld [vmem:[%s196 + $0x1d0] sm:$0xff]
                %257 = vst [vmem:[%s197 + $0xe8] sm:$0xff] %v256
                %v258 = vld [vmem:[%s196 + $0x1e0] sm:$0xff]
                %259 = vst [vmem:[%s197 + $0xf0] sm:$0xff] %v258
                %v260 = vld [vmem:[%s196 + $0x1f0] sm:$0xff]
                %261 = vst [vmem:[%s197 + $0xf8] sm:$0xff] %v260
                %v262 = vld [vmem:[%s196 + $0x200] sm:$0xff]
                %263 = vst [vmem:[%s197 + $0x100] sm:$0xff] %v262
                %v264 = vld [vmem:[%s196 + $0x210] sm:$0xff]
                %265 = vst [vmem:[%s197 + $0x108] sm:$0xff] %v264
                %v266 = vld [vmem:[%s196 + $0x220] sm:$0xff]
                %267 = vst [vmem:[%s197 + $0x110] sm:$0xff] %v266
                %v268 = vld [vmem:[%s196 + $0x230] sm:$0xff]
                %269 = vst [vmem:[%s197 + $0x118] sm:$0xff] %v268
                %v270 = vld [vmem:[%s196 + $0x240] sm:$0xff]
                %271 = vst [vmem:[%s197 + $0x120] sm:$0xff] %v270
                %v272 = vld [vmem:[%s196 + $0x250] sm:$0xff]
                %273 = vst [vmem:[%s197 + $0x128] sm:$0xff] %v272
                %v274 = vld [vmem:[%s196 + $0x260] sm:$0xff]
                %275 = vst [vmem:[%s197 + $0x130] sm:$0xff] %v274
                %v276 = vld [vmem:[%s196 + $0x270] sm:$0xff]
                %277 = vst [vmem:[%s197 + $0x138] sm:$0xff] %v276
                %v278 = vld [vmem:[%s196 + $0x280] sm:$0xff]
                %279 = vst [vmem:[%s197 + $0x140] sm:$0xff] %v278
                %v280 = vld [vmem:[%s196 + $0x290] sm:$0xff]
                %281 = vst [vmem:[%s197 + $0x148] sm:$0xff] %v280
                %v282 = vld [vmem:[%s196 + $0x2a0] sm:$0xff]
                %283 = vst [vmem:[%s197 + $0x150] sm:$0xff] %v282
                %v284 = vld [vmem:[%s196 + $0x2b0] sm:$0xff]
                %285 = vst [vmem:[%s197 + $0x158] sm:$0xff] %v284
                %v286 = vld [vmem:[%s196 + $0x2c0] sm:$0xff]
                %287 = vst [vmem:[%s197 + $0x160] sm:$0xff] %v286
                %v288 = vld [vmem:[%s196 + $0x2d0] sm:$0xff]
                %289 = vst [vmem:[%s197 + $0x168] sm:$0xff] %v288
                %v290 = vld [vmem:[%s196 + $0x2e0] sm:$0xff]
                %291 = vst [vmem:[%s197 + $0x170] sm:$0xff] %v290
                %v292 = vld [vmem:[%s196 + $0x2f0] sm:$0xff]
                %293 = vst [vmem:[%s197 + $0x178] sm:$0xff] %v292
                %v294 = vld [vmem:[%s196 + $0x300] sm:$0xff]
                %295 = vst [vmem:[%s197 + $0x180] sm:$0xff] %v294
                %v296 = vld [vmem:[%s196 + $0x310] sm:$0xff]
                %297 = vst [vmem:[%s197 + $0x188] sm:$0xff] %v296
                %v298 = vld [vmem:[%s196 + $0x320] sm:$0xff]
                %299 = vst [vmem:[%s197 + $0x190] sm:$0xff] %v298
                %v300 = vld [vmem:[%s196 + $0x330] sm:$0xff]
                %301 = vst [vmem:[%s197 + $0x198] sm:$0xff] %v300
                %v302 = vld [vmem:[%s196 + $0x340] sm:$0xff]
                %303 = vst [vmem:[%s197 + $0x1a0] sm:$0xff] %v302
                %v304 = vld [vmem:[%s196 + $0x350] sm:$0xff]
                %305 = vst [vmem:[%s197 + $0x1a8] sm:$0xff] %v304
                %v306 = vld [vmem:[%s196 + $0x360] sm:$0xff]
                %307 = vst [vmem:[%s197 + $0x1b0] sm:$0xff] %v306
                %v308 = vld [vmem:[%s196 + $0x370] sm:$0xff]
                %309 = vst [vmem:[%s197 + $0x1b8] sm:$0xff] %v308
                %v310 = vld [vmem:[%s196 + $0x380] sm:$0xff]
                %311 = vst [vmem:[%s197 + $0x1c0] sm:$0xff] %v310
                %v312 = vld [vmem:[%s196 + $0x390] sm:$0xff]
                %313 = vst [vmem:[%s197 + $0x1c8] sm:$0xff] %v312
                %v314 = vld [vmem:[%s196 + $0x3a0] sm:$0xff]
                %315 = vst [vmem:[%s197 + $0x1d0] sm:$0xff] %v314
                %v316 = vld [vmem:[%s196 + $0x3b0] sm:$0xff]
                %317 = vst [vmem:[%s197 + $0x1d8] sm:$0xff] %v316
                %v318 = vld [vmem:[%s196 + $0x3c0] sm:$0xff]
                %319 = vst [vmem:[%s197 + $0x1e0] sm:$0xff] %v318
                %v320 = vld [vmem:[%s196 + $0x3d0] sm:$0xff]
                %321 = vst [vmem:[%s197 + $0x1e8] sm:$0xff] %v320
                %v322 = vld [vmem:[%s196 + $0x3e0] sm:$0xff]
                %323 = vst [vmem:[%s197 + $0x1f0] sm:$0xff] %v322
                %v324 = vld [vmem:[%s196 + $0x3f0] sm:$0xff]
                %325 = vst [vmem:[%s197 + $0x1f8] sm:$0xff] %v324
              $region60: #{discriminator_forward.8} parent=54 // loop_footer
                %s195 = sadd.s32 1, %s191
              $region61: #{discriminator_forward.8} parent=54 // loop_footer_branch
                %190 = sbr.rel target = $region57
              $region62: #{discriminator_forward.8} parent=54 // loop_exit
                _
            $region55: #{discriminator_forward.8} parent=46 // pred_fallthru
              _
          $region47: #{discriminator_forward.8} parent=42 // pred_fallthru
            _
          %466 = vnop
        $region43: #{discriminator_forward.8} parent=15 // pred_fallthru
          _
      $region16: #{discriminator_forward.8} parent=5 // pred_fallthru
        _
      %p467 = scmp.le.s32.totalorder 1, %s8
      %p468 = scmp.lt.s32.totalorder %s8, 17
      %p469 = pnand %p467, %p468
      %p470 = pneg %p469
      // Predicated region
      $region78: #{discriminator_forward.8} parent=5 // pred_check
        _
      $region79: #{discriminator_forward.8} parent=5 // pred_check_branch
        %472 = sbr.rel (%p469) target = $region81
      $region80: #{discriminator_forward.8} parent=5 // pred_region
        %s473 = ssub.s32 %s8, 1
        %s474 = sand.u32 %s42, 1
        %s475 = sand.u32 %s42, 1
        %s476 = smul.addr %s475, 48
        %s477 = scalar_lea.vmem [#allocation3], %s476
        // Predicated region
        $region82: #{discriminator_forward.8} parent=80 // pred_check
          %p478 = pneg %p55
        $region83: #{discriminator_forward.8} parent=80 // pred_check_branch
          %480 = sbr.rel (%p478) target = $region85
        $region84: #{discriminator_forward.8} parent=80 // pred_region
          _
        $region85: #{discriminator_forward.8} parent=80 // pred_fallthru
          _
        %s481 = sand.u32 %s70, 1
        %s482 = sand.u32 %s70, 1
        %s483 = smul.addr %s482, 512
        %s484 = scalar_lea.vmem [#allocation4], %s483
        // Predicated region
        $region86: #{discriminator_forward.8} parent=80 // pred_check
          %p485 = pneg %p83
        $region87: #{discriminator_forward.8} parent=80 // pred_check_branch
          %487 = sbr.rel (%p485) target = $region89
        $region88: #{discriminator_forward.8} parent=80 // pred_region
          _
        $region89: #{discriminator_forward.8} parent=80 // pred_fallthru
          _
        %s488 = sand.u32 %s42, 1
        %s489 = sand.u32 %s42, 1
        %s490 = smul.addr %s489, 48
        %s491 = scalar_lea.vmem [#allocation3], %s490
        %p492 = pneg %p55
        %p493 = pneg %p52
        %s494 = sand.u32 %s70, 1
        %s495 = sand.u32 %s70, 1
        %s496 = smul.addr %s495, 512
        %s497 = scalar_lea.vmem [#allocation4], %s496
        %p498 = pneg %p83
        %p499 = pneg %p80
        %p500 = pneg %p111
        %p501 = pneg %p108
        %s502 = sand.u32 %s98, 1
        %s503 = sand.u32 %s98, 1
        %s504 = smul.addr %s503, 48
        %s505 = scalar_lea.vmem [#allocation5], %s504
        %s506 = smul.u32 3, %s18
        %s507 = smul.u32 4, %s20
        %s508 = smul.u32 64, %s20
        %s509 = smul.u32 2, %s19
        %s510 = smul.u32 3, %s18
        %s511 = smul.u32 2, %s19
        %p512 = scmp.eq.s32.totalorder %s20, 0
        // Predicated region
        $region90: #{discriminator_forward.8} parent=80 // pred_check
          %p513 = pneg %p512
        $region91: #{discriminator_forward.8} parent=80 // pred_check_branch
          %515 = sbr.rel (%p513) target = $region93
        $region92: #{discriminator_forward.8} parent=80 // pred_region
          %516 = vst [vmem:[#allocation2] sm:$0xff] 0.0
          %517 = vst [vmem:[#allocation2 + $0x8] sm:$0xff] 0.0
          %518 = vst [vmem:[#allocation2 + $0x10] sm:$0xff] 0.0
          %519 = vst [vmem:[#allocation2 + $0x18] sm:$0xff] 0.0
          %520 = vst [vmem:[#allocation2 + $0x20] sm:$0xff] 0.0
          %521 = vst [vmem:[#allocation2 + $0x28] sm:$0xff] 0.0
        $region93: #{discriminator_forward.8} parent=80 // pred_fallthru
          _
        %v522 = vld [vmem:[#allocation2] sm:$0xff]
        %v523 = vld [vmem:[#allocation2 + $0x8] sm:$0xff]
        %v524 = vld [vmem:[#allocation2 + $0x10] sm:$0xff]
        %v525 = vld [vmem:[#allocation2 + $0x18] sm:$0xff]
        %v526 = vld [vmem:[#allocation2 + $0x20] sm:$0xff]
        %v527 = vld [vmem:[#allocation2 + $0x28] sm:$0xff]
        %v528 = vld [vmem:[%s477] sm:$0xff]
        %v529 = vld [vmem:[%s477 + $0x8] sm:$0xff]
        %v530 = vld [vmem:[%s477 + $0x10] sm:$0xff]
        %v531 = vld [vmem:[%s477 + $0x18] sm:$0xff]
        %v532 = vld [vmem:[%s477 + $0x20] sm:$0xff]
        %v533 = vld [vmem:[%s477 + $0x28] sm:$0xff]
        %v534 = vld [vmem:[%s484] sm:$0xff]
        %v535 = vld [vmem:[%s484 + $0x8] sm:$0xff]
        %v536 = vld [vmem:[%s484 + $0x10] sm:$0xff]
        %v537 = vld [vmem:[%s484 + $0x18] sm:$0xff]
        %v538 = vld [vmem:[%s484 + $0x20] sm:$0xff]
        %v539 = vld [vmem:[%s484 + $0x28] sm:$0xff]
        %v540 = vld [vmem:[%s484 + $0x30] sm:$0xff]
        %v541 = vld [vmem:[%s484 + $0x38] sm:$0xff]
        %v542 = vld [vmem:[%s484 + $0x40] sm:$0xff]
        %v543 = vld [vmem:[%s484 + $0x48] sm:$0xff]
        %v544 = vld [vmem:[%s484 + $0x50] sm:$0xff]
        %v545 = vld [vmem:[%s484 + $0x58] sm:$0xff]
        %v546 = vld [vmem:[%s484 + $0x60] sm:$0xff]
        %v547 = vld [vmem:[%s484 + $0x68] sm:$0xff]
        %v548 = vld [vmem:[%s484 + $0x70] sm:$0xff]
        %v549 = vld [vmem:[%s484 + $0x78] sm:$0xff]
        %v550 = vld [vmem:[%s484 + $0x80] sm:$0xff]
        %v551 = vld [vmem:[%s484 + $0x88] sm:$0xff]
        %v552 = vld [vmem:[%s484 + $0x90] sm:$0xff]
        %v553 = vld [vmem:[%s484 + $0x98] sm:$0xff]
        %v554 = vld [vmem:[%s484 + $0xa0] sm:$0xff]
        %v555 = vld [vmem:[%s484 + $0xa8] sm:$0xff]
        %v556 = vld [vmem:[%s484 + $0xb0] sm:$0xff]
        %v557 = vld [vmem:[%s484 + $0xb8] sm:$0xff]
        %v558 = vld [vmem:[%s484 + $0xc0] sm:$0xff]
        %v559 = vld [vmem:[%s484 + $0xc8] sm:$0xff]
        %v560 = vld [vmem:[%s484 + $0xd0] sm:$0xff]
        %v561 = vld [vmem:[%s484 + $0xd8] sm:$0xff]
        %v562 = vld [vmem:[%s484 + $0xe0] sm:$0xff]
        %v563 = vld [vmem:[%s484 + $0xe8] sm:$0xff]
        %v564 = vld [vmem:[%s484 + $0xf0] sm:$0xff]
        %v565 = vld [vmem:[%s484 + $0xf8] sm:$0xff]
        %v566 = vld [vmem:[%s484 + $0x100] sm:$0xff]
        %v567 = vld [vmem:[%s484 + $0x108] sm:$0xff]
        %v568 = vld [vmem:[%s484 + $0x110] sm:$0xff]
        %v569 = vld [vmem:[%s484 + $0x118] sm:$0xff]
        %v570 = vld [vmem:[%s484 + $0x120] sm:$0xff]
        %v571 = vld [vmem:[%s484 + $0x128] sm:$0xff]
        %v572 = vld [vmem:[%s484 + $0x130] sm:$0xff]
        %v573 = vld [vmem:[%s484 + $0x138] sm:$0xff]
        %v574 = vld [vmem:[%s484 + $0x140] sm:$0xff]
        %v575 = vld [vmem:[%s484 + $0x148] sm:$0xff]
        %v576 = vld [vmem:[%s484 + $0x150] sm:$0xff]
        %v577 = vld [vmem:[%s484 + $0x158] sm:$0xff]
        %v578 = vld [vmem:[%s484 + $0x160] sm:$0xff]
        %v579 = vld [vmem:[%s484 + $0x168] sm:$0xff]
        %v580 = vld [vmem:[%s484 + $0x170] sm:$0xff]
        %v581 = vld [vmem:[%s484 + $0x178] sm:$0xff]
        %v582 = vld [vmem:[%s484 + $0x180] sm:$0xff]
        %v583 = vld [vmem:[%s484 + $0x188] sm:$0xff]
        %v584 = vld [vmem:[%s484 + $0x190] sm:$0xff]
        %v585 = vld [vmem:[%s484 + $0x198] sm:$0xff]
        %v586 = vld [vmem:[%s484 + $0x1a0] sm:$0xff]
        %v587 = vld [vmem:[%s484 + $0x1a8] sm:$0xff]
        %v588 = vld [vmem:[%s484 + $0x1b0] sm:$0xff]
        %v589 = vld [vmem:[%s484 + $0x1b8] sm:$0xff]
        %v590 = vld [vmem:[%s484 + $0x1c0] sm:$0xff]
        %v591 = vld [vmem:[%s484 + $0x1c8] sm:$0xff]
        %v592 = vld [vmem:[%s484 + $0x1d0] sm:$0xff]
        %v593 = vld [vmem:[%s484 + $0x1d8] sm:$0xff]
        %v594 = vld [vmem:[%s484 + $0x1e0] sm:$0xff]
        %v595 = vld [vmem:[%s484 + $0x1e8] sm:$0xff]
        %v596 = vld [vmem:[%s484 + $0x1f0] sm:$0xff]
        %v597 = vld [vmem:[%s484 + $0x1f8] sm:$0xff]
        %v604 = vunpack.c.l.b16 %v528
        %v605 = vunpack.c.h.b16 %v528
        %v606 = vunpack.c.l.b16 %v529
        %v607 = vunpack.c.h.b16 %v529
        %v608 = vunpack.c.l.b16 %v530
        %v609 = vunpack.c.h.b16 %v530
        %v610 = vunpack.c.l.b16 %v531
        %v611 = vunpack.c.h.b16 %v531
        %v612 = vunpack.c.l.b16 %v532
        %v613 = vunpack.c.h.b16 %v532
        %v614 = vunpack.c.l.b16 %v533
        %v615 = vunpack.c.h.b16 %v533
        %v616 = vpack.c.b16 %v608, %v604
        %v617 = vpack.c.b16 %v609, %v605
        %v618 = vpack.c.b16 %v610, %v606
        %v619 = vpack.c.b16 %v611, %v607
        %v620 = vpack.c.b16 %v612, %v612
        %v621 = vpack.c.b16 %v613, %v613
        %v622 = vpack.c.b16 %v614, %v614
        %v623 = vpack.c.b16 %v615, %v615
        %v696 = vunpack.c.l.b16 %v534
        %v697 = vunpack.c.h.b16 %v534
        %v698 = vunpack.c.l.b16 %v535
        %v699 = vunpack.c.h.b16 %v535
        %v700 = vunpack.c.l.b16 %v536
        %v701 = vunpack.c.h.b16 %v536
        %v702 = vunpack.c.l.b16 %v537
        %v703 = vunpack.c.h.b16 %v537
        %v704 = vunpack.c.l.b16 %v538
        %v705 = vunpack.c.h.b16 %v538
        %v706 = vunpack.c.l.b16 %v539
        %v707 = vunpack.c.h.b16 %v539
        %v708 = vunpack.c.l.b16 %v540
        %v709 = vunpack.c.h.b16 %v540
        %v710 = vunpack.c.l.b16 %v541
        %v711 = vunpack.c.h.b16 %v541
        %v712 = vunpack.c.l.b16 %v542
        %v713 = vunpack.c.h.b16 %v542
        %v714 = vunpack.c.l.b16 %v543
        %v715 = vunpack.c.h.b16 %v543
        %v716 = vunpack.c.l.b16 %v544
        %v717 = vunpack.c.h.b16 %v544
        %v718 = vunpack.c.l.b16 %v545
        %v719 = vunpack.c.h.b16 %v545
        %v720 = vunpack.c.l.b16 %v546
        %v721 = vunpack.c.h.b16 %v546
        %v722 = vunpack.c.l.b16 %v547
        %v723 = vunpack.c.h.b16 %v547
        %v724 = vunpack.c.l.b16 %v548
        %v725 = vunpack.c.h.b16 %v548
        %v726 = vunpack.c.l.b16 %v549
        %v727 = vunpack.c.h.b16 %v549
        %v728 = vunpack.c.l.b16 %v550
        %v729 = vunpack.c.h.b16 %v550
        %v730 = vunpack.c.l.b16 %v551
        %v731 = vunpack.c.h.b16 %v551
        %v732 = vunpack.c.l.b16 %v552
        %v733 = vunpack.c.h.b16 %v552
        %v734 = vunpack.c.l.b16 %v553
        %v735 = vunpack.c.h.b16 %v553
        %v736 = vunpack.c.l.b16 %v554
        %v737 = vunpack.c.h.b16 %v554
        %v738 = vunpack.c.l.b16 %v555
        %v739 = vunpack.c.h.b16 %v555
        %v740 = vunpack.c.l.b16 %v556
        %v741 = vunpack.c.h.b16 %v556
        %v742 = vunpack.c.l.b16 %v557
        %v743 = vunpack.c.h.b16 %v557
        %v744 = vunpack.c.l.b16 %v558
        %v745 = vunpack.c.h.b16 %v558
        %v746 = vunpack.c.l.b16 %v559
        %v747 = vunpack.c.h.b16 %v559
        %v748 = vunpack.c.l.b16 %v560
        %v749 = vunpack.c.h.b16 %v560
        %v750 = vunpack.c.l.b16 %v561
        %v751 = vunpack.c.h.b16 %v561
        %v752 = vunpack.c.l.b16 %v562
        %v753 = vunpack.c.h.b16 %v562
        %v754 = vunpack.c.l.b16 %v563
        %v755 = vunpack.c.h.b16 %v563
        %v756 = vunpack.c.l.b16 %v564
        %v757 = vunpack.c.h.b16 %v564
        %v758 = vunpack.c.l.b16 %v565
        %v759 = vunpack.c.h.b16 %v565
        %v760 = vunpack.c.l.b16 %v566
        %v761 = vunpack.c.h.b16 %v566
        %v762 = vunpack.c.l.b16 %v567
        %v763 = vunpack.c.h.b16 %v567
        %v764 = vunpack.c.l.b16 %v568
        %v765 = vunpack.c.h.b16 %v568
        %v766 = vunpack.c.l.b16 %v569
        %v767 = vunpack.c.h.b16 %v569
        %v768 = vunpack.c.l.b16 %v570
        %v769 = vunpack.c.h.b16 %v570
        %v770 = vunpack.c.l.b16 %v571
        %v771 = vunpack.c.h.b16 %v571
        %v772 = vunpack.c.l.b16 %v572
        %v773 = vunpack.c.h.b16 %v572
        %v774 = vunpack.c.l.b16 %v573
        %v775 = vunpack.c.h.b16 %v573
        %v776 = vunpack.c.l.b16 %v574
        %v777 = vunpack.c.h.b16 %v574
        %v778 = vunpack.c.l.b16 %v575
        %v779 = vunpack.c.h.b16 %v575
        %v780 = vunpack.c.l.b16 %v576
        %v781 = vunpack.c.h.b16 %v576
        %v782 = vunpack.c.l.b16 %v577
        %v783 = vunpack.c.h.b16 %v577
        %v784 = vunpack.c.l.b16 %v578
        %v785 = vunpack.c.h.b16 %v578
        %v786 = vunpack.c.l.b16 %v579
        %v787 = vunpack.c.h.b16 %v579
        %v788 = vunpack.c.l.b16 %v580
        %v789 = vunpack.c.h.b16 %v580
        %v790 = vunpack.c.l.b16 %v581
        %v791 = vunpack.c.h.b16 %v581
        %v792 = vunpack.c.l.b16 %v582
        %v793 = vunpack.c.h.b16 %v582
        %v794 = vunpack.c.l.b16 %v583
        %v795 = vunpack.c.h.b16 %v583
        %v796 = vunpack.c.l.b16 %v584
        %v797 = vunpack.c.h.b16 %v584
        %v798 = vunpack.c.l.b16 %v585
        %v799 = vunpack.c.h.b16 %v585
        %v800 = vunpack.c.l.b16 %v586
        %v801 = vunpack.c.h.b16 %v586
        %v802 = vunpack.c.l.b16 %v587
        %v803 = vunpack.c.h.b16 %v587
        %v804 = vunpack.c.l.b16 %v588
        %v805 = vunpack.c.h.b16 %v588
        %v806 = vunpack.c.l.b16 %v589
        %v807 = vunpack.c.h.b16 %v589
        %v808 = vunpack.c.l.b16 %v590
        %v809 = vunpack.c.h.b16 %v590
        %v810 = vunpack.c.l.b16 %v591
        %v811 = vunpack.c.h.b16 %v591
        %v812 = vunpack.c.l.b16 %v592
        %v813 = vunpack.c.h.b16 %v592
        %v814 = vunpack.c.l.b16 %v593
        %v815 = vunpack.c.h.b16 %v593
        %v816 = vunpack.c.l.b16 %v594
        %v817 = vunpack.c.h.b16 %v594
        %v818 = vunpack.c.l.b16 %v595
        %v819 = vunpack.c.h.b16 %v595
        %v820 = vunpack.c.l.b16 %v596
        %v821 = vunpack.c.h.b16 %v596
        %v822 = vunpack.c.l.b16 %v597
        %v823 = vunpack.c.h.b16 %v597
        %v824 = vpack.c.b16 %v698, %v696
        %v825 = vpack.c.b16 %v699, %v697
        %v826 = vpack.c.b16 %v702, %v700
        %v827 = vpack.c.b16 %v703, %v701
        %v828 = vpack.c.b16 %v706, %v704
        %v829 = vpack.c.b16 %v707, %v705
        %v830 = vpack.c.b16 %v710, %v708
        %v831 = vpack.c.b16 %v711, %v709
        %v832 = vpack.c.b16 %v714, %v712
        %v833 = vpack.c.b16 %v715, %v713
        %v834 = vpack.c.b16 %v718, %v716
        %v835 = vpack.c.b16 %v719, %v717
        %v836 = vpack.c.b16 %v722, %v720
        %v837 = vpack.c.b16 %v723, %v721
        %v838 = vpack.c.b16 %v726, %v724
        %v839 = vpack.c.b16 %v727, %v725
        %v840 = vpack.c.b16 %v730, %v728
        %v841 = vpack.c.b16 %v731, %v729
        %v842 = vpack.c.b16 %v734, %v732
        %v843 = vpack.c.b16 %v735, %v733
        %v844 = vpack.c.b16 %v738, %v736
        %v845 = vpack.c.b16 %v739, %v737
        %v846 = vpack.c.b16 %v742, %v740
        %v847 = vpack.c.b16 %v743, %v741
        %v848 = vpack.c.b16 %v746, %v744
        %v849 = vpack.c.b16 %v747, %v745
        %v850 = vpack.c.b16 %v750, %v748
        %v851 = vpack.c.b16 %v751, %v749
        %v852 = vpack.c.b16 %v754, %v752
        %v853 = vpack.c.b16 %v755, %v753
        %v854 = vpack.c.b16 %v758, %v756
        %v855 = vpack.c.b16 %v759, %v757
        %v856 = vpack.c.b16 %v762, %v760
        %v857 = vpack.c.b16 %v763, %v761
        %v858 = vpack.c.b16 %v766, %v764
        %v859 = vpack.c.b16 %v767, %v765
        %v860 = vpack.c.b16 %v770, %v768
        %v861 = vpack.c.b16 %v771, %v769
        %v862 = vpack.c.b16 %v774, %v772
        %v863 = vpack.c.b16 %v775, %v773
        %v864 = vpack.c.b16 %v778, %v776
        %v865 = vpack.c.b16 %v779, %v777
        %v866 = vpack.c.b16 %v782, %v780
        %v867 = vpack.c.b16 %v783, %v781
        %v868 = vpack.c.b16 %v786, %v784
        %v869 = vpack.c.b16 %v787, %v785
        %v870 = vpack.c.b16 %v790, %v788
        %v871 = vpack.c.b16 %v791, %v789
        %v872 = vpack.c.b16 %v794, %v792
        %v873 = vpack.c.b16 %v795, %v793
        %v874 = vpack.c.b16 %v798, %v796
        %v875 = vpack.c.b16 %v799, %v797
        %v876 = vpack.c.b16 %v802, %v800
        %v877 = vpack.c.b16 %v803, %v801
        %v878 = vpack.c.b16 %v806, %v804
        %v879 = vpack.c.b16 %v807, %v805
        %v880 = vpack.c.b16 %v810, %v808
        %v881 = vpack.c.b16 %v811, %v809
        %v882 = vpack.c.b16 %v814, %v812
        %v883 = vpack.c.b16 %v815, %v813
        %v884 = vpack.c.b16 %v818, %v816
        %v885 = vpack.c.b16 %v819, %v817
        %v886 = vpack.c.b16 %v822, %v820
        %v887 = vpack.c.b16 %v823, %v821
        %952 = vmatprep.subr.bf16.mxu0 %v825
        %953 = vmatpush1.bf16.msra.mxu0 %v824
        %954 = vmatprep.subr.bf16.mxu0 %v827
        %955 = vmatpush1.bf16.msra.mxu0 %v826
        %956 = vmatprep.subr.bf16.mxu0 %v829
        %957 = vmatpush1.bf16.msra.mxu0 %v828
        %958 = vmatprep.subr.bf16.mxu0 %v831
        %959 = vmatpush1.bf16.msra.mxu0 %v830
        %960 = vmatprep.subr.bf16.mxu0 %v833
        %961 = vmatpush1.bf16.msra.mxu0 %v832
        %962 = vmatprep.subr.bf16.mxu0 %v835
        %963 = vmatpush1.bf16.msra.mxu0 %v834
        %964 = vmatprep.subr.bf16.mxu0 %v837
        %965 = vmatpush1.bf16.msra.mxu0 %v836
        %966 = vmatprep.subr.bf16.mxu0 %v839
        %967 = vmatpush1.bf16.msra.mxu0 %v838
        %968 = vmatprep.subr.bf16.mxu0 %v841
        %969 = vmatpush1.bf16.msra.mxu0 %v840
        %970 = vmatprep.subr.bf16.mxu0 %v843
        %971 = vmatpush1.bf16.msra.mxu0 %v842
        %972 = vmatprep.subr.bf16.mxu0 %v845
        %973 = vmatpush1.bf16.msra.mxu0 %v844
        %974 = vmatprep.subr.bf16.mxu0 %v847
        %975 = vmatpush1.bf16.msra.mxu0 %v846
        %976 = vmatprep.subr.bf16.mxu0 %v849
        %977 = vmatpush1.bf16.msra.mxu0 %v848
        %978 = vmatprep.subr.bf16.mxu0 %v851
        %979 = vmatpush1.bf16.msra.mxu0 %v850
        %980 = vmatprep.subr.bf16.mxu0 %v853
        %981 = vmatpush1.bf16.msra.mxu0 %v852
        %982 = vmatprep.subr.bf16.mxu0 %v855
        %983 = vmatpush1.bf16.msra.mxu0 %v854
        %984 = vmatprep.mubr.bf16.mxu0 %v617
        %985 = vmatmul.mubr.bf16.gmra.mrb[0].mxu0 %v616
        %v986 = vpop.f32.mrb[0].mxu0
        %v987 = vadd.f32 0.0, %v986
        %v988 = vpop.f32.mrb[0].mxu0
        %v989 = vadd.f32 0.0, %v988
        %v990 = vpop.f32.mrb[0].mxu0
        %v991 = vadd.f32 0.0, %v990
        %v992 = vpop.f32.mrb[0].mxu0
        %v993 = vadd.f32 0.0, %v992
        %994 = vmatprep.mubr.bf16.mxu0 %v621
        %995 = vmatmul.mubr.bf16.gmra.mrb[0].mxu0 %v620
        %v996 = vpop.f32.mrb[0].mxu0
        %v997 = vadd.f32 0.0, %v996
        %v998 = vpop.f32.mrb[0].mxu0
        %v999 = vadd.f32 0.0, %v998
        %v1000 = vpop.f32.mrb[0].mxu0
        %v1001 = vpop.f32.mrb[0].mxu0
        %1002 = vdwg.mxu0
        %1003 = vmatprep.subr.bf16.mxu0 %v857
        %1004 = vmatpush1.bf16.msra.mxu0 %v856
        %1005 = vmatprep.subr.bf16.mxu0 %v859
        %1006 = vmatpush1.bf16.msra.mxu0 %v858
        %1007 = vmatprep.subr.bf16.mxu0 %v861
        %1008 = vmatpush1.bf16.msra.mxu0 %v860
        %1009 = vmatprep.subr.bf16.mxu0 %v863
        %1010 = vmatpush1.bf16.msra.mxu0 %v862
        %1011 = vmatprep.subr.bf16.mxu0 %v865
        %1012 = vmatpush1.bf16.msra.mxu0 %v864
        %1013 = vmatprep.subr.bf16.mxu0 %v867
        %1014 = vmatpush1.bf16.msra.mxu0 %v866
        %1015 = vmatprep.subr.bf16.mxu0 %v869
        %1016 = vmatpush1.bf16.msra.mxu0 %v868
        %1017 = vmatprep.subr.bf16.mxu0 %v871
        %1018 = vmatpush1.bf16.msra.mxu0 %v870
        %1019 = vmatprep.subr.bf16.mxu0 %v873
        %1020 = vmatpush1.bf16.msra.mxu0 %v872
        %1021 = vmatprep.subr.bf16.mxu0 %v875
        %1022 = vmatpush1.bf16.msra.mxu0 %v874
        %1023 = vmatprep.subr.bf16.mxu0 %v877
        %1024 = vmatpush1.bf16.msra.mxu0 %v876
        %1025 = vmatprep.subr.bf16.mxu0 %v879
        %1026 = vmatpush1.bf16.msra.mxu0 %v878
        %1027 = vmatprep.subr.bf16.mxu0 %v881
        %1028 = vmatpush1.bf16.msra.mxu0 %v880
        %1029 = vmatprep.subr.bf16.mxu0 %v883
        %1030 = vmatpush1.bf16.msra.mxu0 %v882
        %1031 = vmatprep.subr.bf16.mxu0 %v885
        %1032 = vmatpush1.bf16.msra.mxu0 %v884
        %1033 = vmatprep.subr.bf16.mxu0 %v887
        %1034 = vmatpush1.bf16.msra.mxu0 %v886
        %1035 = vmatprep.mubr.bf16.mxu0 %v619
        %1036 = vmatmul.mubr.bf16.gmra.mrb[0].mxu0 %v618
        %v1037 = vpop.f32.mrb[0].mxu0
        %v1038 = vadd.f32 %v987, %v1037
        %v1039 = vpop.f32.mrb[0].mxu0
        %v1040 = vadd.f32 %v989, %v1039
        %v1041 = vpop.f32.mrb[0].mxu0
        %v1042 = vadd.f32 %v991, %v1041
        %v1043 = vpop.f32.mrb[0].mxu0
        %v1044 = vadd.f32 %v993, %v1043
        %1045 = vmatprep.mubr.bf16.mxu0 %v623
        %1046 = vmatmul.mubr.bf16.gmra.mrb[0].mxu0 %v622
        %v1047 = vpop.f32.mrb[0].mxu0
        %v1048 = vadd.f32 %v997, %v1047
        %v1049 = vpop.f32.mrb[0].mxu0
        %v1050 = vadd.f32 %v999, %v1049
        %v1051 = vpop.f32.mrb[0].mxu0
        %v1052 = vpop.f32.mrb[0].mxu0
        %1053 = vdwg.mxu0
        %v1054 = vadd.f32 %v522, %v1038
        %v1055 = vadd.f32 %v523, %v1040
        %v1056 = vadd.f32 %v524, %v1042
        %v1057 = vadd.f32 %v525, %v1044
        %v1058 = vadd.f32 %v526, %v1048
        %v1059 = vadd.f32 %v527, %v1050
        %1060 = vst [vmem:[#allocation2] sm:$0xff] %v1054
        %1061 = vst [vmem:[#allocation2 + $0x8] sm:$0xff] %v1055
        %1062 = vst [vmem:[#allocation2 + $0x10] sm:$0xff] %v1056
        %1063 = vst [vmem:[#allocation2 + $0x18] sm:$0xff] %v1057
        %1064 = vst [vmem:[#allocation2 + $0x20] sm:$0xff] %v1058
        %1065 = vst [vmem:[#allocation2 + $0x28] sm:$0xff] %v1059
        %p1066 = scmp.eq.s32.totalorder %s20, 7
        // Predicated region
        $region94: #{discriminator_forward.8} parent=80 // pred_check
          %p1067 = pneg %p1066
        $region95: #{discriminator_forward.8} parent=80 // pred_check_branch
          %1069 = sbr.rel (%p1067) target = $region97
        $region96: #{discriminator_forward.8} parent=80 // pred_region
          %v1070 = vld [vmem:[#allocation2] sm:$0xff]
          %v1071 = vld [vmem:[#allocation2 + $0x8] sm:$0xff]
          %v1072 = vld [vmem:[#allocation2 + $0x10] sm:$0xff]
          %v1073 = vld [vmem:[#allocation2 + $0x18] sm:$0xff]
          %v1074 = vld [vmem:[#allocation2 + $0x20] sm:$0xff]
          %v1075 = vld [vmem:[#allocation2 + $0x28] sm:$0xff]
          %vm1076 = vcmp.ge.f32.partialorder %v1070, 0.0
          %vm1077 = vcmp.ge.f32.partialorder %v1071, 0.0
          %vm1078 = vcmp.ge.f32.partialorder %v1072, 0.0
          %vm1079 = vcmp.ge.f32.partialorder %v1073, 0.0
          %vm1080 = vcmp.ge.f32.partialorder %v1074, 0.0
          %vm1081 = vcmp.ge.f32.partialorder %v1075, 0.0
          %v1082 = vmul.f32 %v1070, 0.2
          %v1083 = vmul.f32 %v1071, 0.2
          %v1084 = vmul.f32 %v1072, 0.2
          %v1085 = vmul.f32 %v1073, 0.2
          %v1086 = vmul.f32 %v1074, 0.2
          %v1087 = vmul.f32 %v1075, 0.2
          %v1088 = vsel %vm1076, %v1070, %v1082
          %v1089 = vsel %vm1077, %v1071, %v1083
          %v1090 = vsel %vm1078, %v1072, %v1084
          %v1091 = vsel %vm1079, %v1073, %v1085
          %v1092 = vsel %vm1080, %v1074, %v1086
          %v1093 = vsel %vm1081, %v1075, %v1087
          %1094 = vst [vmem:[%s505] sm:$0xff] %v1088
          %1095 = vst [vmem:[%s505 + $0x8] sm:$0xff] %v1089
          %1096 = vst [vmem:[%s505 + $0x10] sm:$0xff] %v1090
          %1097 = vst [vmem:[%s505 + $0x18] sm:$0xff] %v1091
          %1098 = vst [vmem:[%s505 + $0x20] sm:$0xff] %v1092
          %1099 = vst [vmem:[%s505 + $0x28] sm:$0xff] %v1093
        $region97: #{discriminator_forward.8} parent=80 // pred_fallthru
          _
        %s1100 = sand.u32 %s98, 1
        %s1101 = sand.u32 %s98, 1
        %s1102 = smul.addr %s1101, 48
        %s1103 = scalar_lea.vmem [#allocation5], %s1102
        // Predicated region
        $region98: #{discriminator_forward.8} parent=80 // pred_check
          %p1104 = pneg %p108
        $region99: #{discriminator_forward.8} parent=80 // pred_check_branch
          %1106 = sbr.rel (%p1104) target = $region101
        $region100: #{discriminator_forward.8} parent=80 // pred_region
          %s1107 = smul.u32 3, %s18
          %s1108 = smul.u32 2, %s19
          %s1109 = smul.addr %s1107, 4
          %s1110 = sadd.s32 %s1108, %s1109
          %s1111 = smul.addr %s1110, 8
          %s1112 = scalar_lea.vmem %s2, %s1111
          // Predicated region
          $region102: #{discriminator_forward.8} parent=100 // pred_check
            _
          $region103: #{discriminator_forward.8} parent=100 // pred_check_branch
            %1114 = sbr.rel (0) target = $region105
          $region104: #{discriminator_forward.8} parent=100 // pred_region
            // Predicated region
            $region106: #{discriminator_forward.8} parent=104 // pred_check
              _
            $region107: #{discriminator_forward.8} parent=104 // pred_check_branch
              %1116 = sbr.rel (0) target = $region109
            $region108: #{discriminator_forward.8} parent=104 // pred_region
              loop: start=0, step=1, limit=1
              $region110: #{discriminator_forward.8} parent=108 // loop_pre_header
                _
              $region111: #{discriminator_forward.8} parent=108 // loop_header
                %s1118 = sphi 0, %s1122
                %p1119 = scmp.ge.s32.totalorder %s1118, 1
                %s1123 = sphi %s1103, %s1103
                %s1124 = sphi %s1112, %s1112
              $region112: #{discriminator_forward.8} parent=108 // loop_header_branch
                %1121 = sbr.rel (%p1119) target = $region116
              $region113: #{discriminator_forward.8} parent=108 // loop_body
                %v1125 = vld [vmem:[%s1123] sm:$0xff]
                %1126 = vst [vmem:[%s1124] sm:$0xff] %v1125
                %v1127 = vld [vmem:[%s1123 + $0x8] sm:$0xff]
                %1128 = vst [vmem:[%s1124 + $0x8] sm:$0xff] %v1127
                %v1129 = vld [vmem:[%s1123 + $0x10] sm:$0xff]
                %1130 = vst [vmem:[%s1124 + $0x20] sm:$0xff] %v1129
                %v1131 = vld [vmem:[%s1123 + $0x18] sm:$0xff]
                %1132 = vst [vmem:[%s1124 + $0x28] sm:$0xff] %v1131
                %v1133 = vld [vmem:[%s1123 + $0x20] sm:$0xff]
                %1134 = vst [vmem:[%s1124 + $0x40] sm:$0xff] %v1133
                %v1135 = vld [vmem:[%s1123 + $0x28] sm:$0xff]
                %1136 = vst [vmem:[%s1124 + $0x48] sm:$0xff] %v1135
              $region114: #{discriminator_forward.8} parent=108 // loop_footer
                %s1122 = sadd.s32 1, %s1118
              $region115: #{discriminator_forward.8} parent=108 // loop_footer_branch
                %1117 = sbr.rel target = $region111
              $region116: #{discriminator_forward.8} parent=108 // loop_exit
                _
            $region109: #{discriminator_forward.8} parent=104 // pred_fallthru
              _
            // Predicated region
            $region117: #{discriminator_forward.8} parent=104 // pred_check
              _
            $region118: #{discriminator_forward.8} parent=104 // pred_check_branch
              %1138 = sbr.rel target = $region120
            $region119: #{discriminator_forward.8} parent=104 // pred_region
              _
            $region120: #{discriminator_forward.8} parent=104 // pred_fallthru
              _
          $region105: #{discriminator_forward.8} parent=100 // pred_fallthru
            _
          %1139 = vnop
        $region101: #{discriminator_forward.8} parent=80 // pred_fallthru
          _
      $region81: #{discriminator_forward.8} parent=5 // pred_fallthru
        _
      %p1140 = scmp.le.s32.totalorder 2, %s8
      // Predicated region
      $region121: #{discriminator_forward.8} parent=5 // pred_check
        %p1141 = pneg %p1140
      $region122: #{discriminator_forward.8} parent=5 // pred_check_branch
        %1143 = sbr.rel (%p1141) target = $region124
      $region123: #{discriminator_forward.8} parent=5 // pred_region
        %s1144 = ssub.s32 %s8, 2
        // Predicated region
        $region125: #{discriminator_forward.8} parent=123 // pred_check
          %p1145 = pneg %p114
        $region126: #{discriminator_forward.8} parent=123 // pred_check_branch
          %1147 = sbr.rel (%p1145) target = $region128
        $region127: #{discriminator_forward.8} parent=123 // pred_region
          %s1148 = sand.u32 %s99, 1
          %s1149 = sand.u32 %s99, 1
          %s1150 = smul.addr %s1149, 48
          %s1151 = scalar_lea.vmem [#allocation5], %s1150
        $region128: #{discriminator_forward.8} parent=123 // pred_fallthru
          _
      $region124: #{discriminator_forward.8} parent=5 // pred_fallthru
        _
    $region6: #{discriminator_forward.8} parent=1 // loop_footer
      %s12 = sadd.s32 1, %s8
    $region7: #{discriminator_forward.8} parent=1 // loop_footer_branch
      %7 = sbr.rel target = $region3
    $region8: #{discriminator_forward.8} parent=1 // loop_exit
      _

// kernel: discriminator_forward.9
$region0: #{discriminator_forward.9}
  #allocation0 [shape = 'u32[]', space=smem, size = 0x4, offset = 0x4, fixed_abs, tag = 'smem constant byte address 0x4 - core index']
  #allocation1 [shape = 'u32[144,128]{1,0:T(1,128)}', space=vmem, size = 0x12000, scoped, tag = 'internal scratch']
  #allocation2 [shape = 'f32[8,128]{1,0:T(8,128)}', space=vmem, size = 0x1000, scoped, tag = 'scratch operand']
  %s0 = inlined_call_operand.vmem [shape: bf16[8,8192], index: 0, kind: input, shape index: {}]
  %s1 = inlined_call_operand.vmem [shape: bf16[8192,128], index: 1, kind: input, shape index: {}]
  %s2 = inlined_call_operand.vmem [shape: f32[8,128], index: 2, kind: output, shape index: {0}]
  %s3 = inlined_call_operand.vmem [shape: f32[8,128], index: 3, kind: output, shape index: {1}]
  %4 = xla_tuple %s2, %s3
  %s5 = sld [smem:[#allocation0]]
  $region57: #{discriminator_forward.9} parent=0
    _
  %s7 = ssub.s32 1, %s5
  %s8 = scalar_select 0, %s7, %s5
  loop: start=0, step=1, limit=18
  $region2: #{discriminator_forward.9} parent=0 // loop_pre_header
    _
  $region3: #{discriminator_forward.9} parent=0 // loop_header
    %s10 = sphi 0, %s14
    %p11 = scmp.ge.s32.totalorder %s10, 18
    %s17 = sphi 0, %s36
    %s18 = sphi 0, %s32
    %s19 = sphi 0, %s28
    %s20 = sphi 0, %s17
    %s21 = sphi 0, %s18
    %s22 = sphi 0, %s19
    %s23 = sphi 0, %s20
    %s24 = sphi 0, %s21
    %s25 = sphi 0, %s22
    %s41 = sphi 0, %s43
    %s44 = sphi 0, %s41
    %s45 = sphi 0, %s44
    %s61 = sphi 0, %s45
    %s69 = sphi 0, %s71
    %s72 = sphi 0, %s69
    %s73 = sphi 0, %s72
    %s89 = sphi 0, %s73
    %s97 = sphi 0, %s99
    %s100 = sphi 0, %s97
    %s101 = sphi 0, %s100
    %s117 = sphi 0, %s101
    %s125 = sphi 0, %s127
    %s128 = sphi 0, %s125
    %s129 = sphi 0, %s128
    %s145 = sphi 0, %s129
  $region4: #{discriminator_forward.9} parent=0 // loop_header_branch
    %13 = sbr.rel (%p11) target = $region8
  $region5: #{discriminator_forward.9} parent=0 // loop_body
    %s15 = ssub.s32 %s10, 1
    %s16 = ssub.s32 %s10, 2
    %s26 = sadd.s32 1, %s19
    %p27 = scmp.ge.s32.totalorder %s26, 16
    %s28 = scalar_select %p27, 0, %s26
    %s29 = sadd.s32 1, %s18
    %s30 = scalar_select %p27, %s29, %s18
    %p31 = scmp.ge.s32.totalorder %s30, 1
    %s32 = scalar_select %p31, 0, %s30
    %s33 = sadd.s32 1, %s17
    %s34 = scalar_select %p31, %s33, %s17
    %p35 = scmp.ge.s32.totalorder %s34, 1
    %s36 = scalar_select %p35, 0, %s34
    %s37 = ssub.s32 %s17, %s36
    %s38 = ssub.s32 %s19, %s28
    %s39 = sor.u32 %s37, %s38
    %p40 = scmp.eq.s32.totalorder %s39, 0
    %s42 = sadd.s32 %s41, 1
    %s43 = scalar_select %p40, %s41, %s42
    %p46 = pneg %p40
    %p47 = scmp.eq.s32.totalorder %s10, 15
    %p48 = por %p46, %p47
    %p49 = scmp.ne.s32.totalorder %s41, %s44
    %p50 = scmp.eq.s32.totalorder %s10, 0
    %p51 = por %p49, %p50
    %p52 = scmp.ne.s32.totalorder %s41, %s44
    %p53 = scmp.eq.s32.totalorder %s15, 15
    %p54 = por %p52, %p53
    %p55 = scmp.ne.s32.totalorder %s44, %s45
    %p56 = scmp.eq.s32.totalorder %s15, 0
    %p57 = por %p55, %p56
    %p58 = scmp.ne.s32.totalorder %s44, %s45
    %p59 = scmp.eq.s32.totalorder %s16, 15
    %p60 = por %p58, %p59
    %p62 = scmp.ne.s32.totalorder %s45, %s61
    %p63 = scmp.eq.s32.totalorder %s16, 0
    %p64 = por %p62, %p63
    %s65 = ssub.s32 %s19, %s28
    %s66 = ssub.s32 %s18, %s32
    %s67 = sor.u32 %s65, %s66
    %p68 = scmp.eq.s32.totalorder %s67, 0
    %s70 = sadd.s32 %s69, 1
    %s71 = scalar_select %p68, %s69, %s70
    %p74 = pneg %p68
    %p75 = scmp.eq.s32.totalorder %s10, 15
    %p76 = por %p74, %p75
    %p77 = scmp.ne.s32.totalorder %s69, %s72
    %p78 = scmp.eq.s32.totalorder %s10, 0
    %p79 = por %p77, %p78
    %p80 = scmp.ne.s32.totalorder %s69, %s72
    %p81 = scmp.eq.s32.totalorder %s15, 15
    %p82 = por %p80, %p81
    %p83 = scmp.ne.s32.totalorder %s72, %s73
    %p84 = scmp.eq.s32.totalorder %s15, 0
    %p85 = por %p83, %p84
    %p86 = scmp.ne.s32.totalorder %s72, %s73
    %p87 = scmp.eq.s32.totalorder %s16, 15
    %p88 = por %p86, %p87
    %p90 = scmp.ne.s32.totalorder %s73, %s89
    %p91 = scmp.eq.s32.totalorder %s16, 0
    %p92 = por %p90, %p91
    %s93 = ssub.s32 %s17, %s36
    %s94 = ssub.s32 %s18, %s32
    %s95 = sor.u32 %s93, %s94
    %p96 = scmp.eq.s32.totalorder %s95, 0
    %s98 = sadd.s32 %s97, 1
    %s99 = scalar_select %p96, %s97, %s98
    %p102 = pneg %p96
    %p103 = scmp.eq.s32.totalorder %s10, 15
    %p104 = por %p102, %p103
    %p105 = scmp.ne.s32.totalorder %s97, %s100
    %p106 = scmp.eq.s32.totalorder %s10, 0
    %p107 = por %p105, %p106
    %p108 = scmp.ne.s32.totalorder %s97, %s100
    %p109 = scmp.eq.s32.totalorder %s15, 15
    %p110 = por %p108, %p109
    %p111 = scmp.ne.s32.totalorder %s100, %s101
    %p112 = scmp.eq.s32.totalorder %s15, 0
    %p113 = por %p111, %p112
    %p114 = scmp.ne.s32.totalorder %s100, %s101
    %p115 = scmp.eq.s32.totalorder %s16, 15
    %p116 = por %p114, %p115
    %p118 = scmp.ne.s32.totalorder %s101, %s117
    %p119 = scmp.eq.s32.totalorder %s16, 0
    %p120 = por %p118, %p119
    %s121 = ssub.s32 %s17, %s36
    %s122 = ssub.s32 %s18, %s32
    %s123 = sor.u32 %s121, %s122
    %p124 = scmp.eq.s32.totalorder %s123, 0
    %s126 = sadd.s32 %s125, 1
    %s127 = scalar_select %p124, %s125, %s126
    %p130 = pneg %p124
    %p131 = scmp.eq.s32.totalorder %s10, 15
    %p132 = por %p130, %p131
    %p133 = scmp.ne.s32.totalorder %s125, %s128
    %p134 = scmp.eq.s32.totalorder %s10, 0
    %p135 = por %p133, %p134
    %p136 = scmp.ne.s32.totalorder %s125, %s128
    %p137 = scmp.eq.s32.totalorder %s15, 15
    %p138 = por %p136, %p137
    %p139 = scmp.ne.s32.totalorder %s128, %s129
    %p140 = scmp.eq.s32.totalorder %s15, 0
    %p141 = por %p139, %p140
    %p142 = scmp.ne.s32.totalorder %s128, %s129
    %p143 = scmp.eq.s32.totalorder %s16, 15
    %p144 = por %p142, %p143
    %p146 = scmp.ne.s32.totalorder %s129, %s145
    %p147 = scmp.eq.s32.totalorder %s16, 0
    %p148 = por %p146, %p147
    %p149 = scmp.le.s32.totalorder 1, %s10
    %p150 = scmp.lt.s32.totalorder %s10, 17
    %p151 = pnand %p149, %p150
    %p152 = pneg %p151
    // Predicated region
    $region9: #{discriminator_forward.9} parent=5 // pred_check
      _
    $region10: #{discriminator_forward.9} parent=5 // pred_check_branch
      %154 = sbr.rel (%p151) target = $region12
    $region11: #{discriminator_forward.9} parent=5 // pred_region
      %s155 = ssub.s32 %s10, 1
    $region12: #{discriminator_forward.9} parent=5 // pred_fallthru
      _
    %p156 = scmp.lt.s32.totalorder %s10, 16
    // Predicated region
    $region13: #{discriminator_forward.9} parent=5 // pred_check
      %p157 = pneg %p156
    $region14: #{discriminator_forward.9} parent=5 // pred_check_branch
      %159 = sbr.rel (%p157) target = $region16
    $region15: #{discriminator_forward.9} parent=5 // pred_region
      // Predicated region
      $region17: #{discriminator_forward.9} parent=15 // pred_check
        %p160 = pneg %p51
      $region18: #{discriminator_forward.9} parent=15 // pred_check_branch
        %162 = sbr.rel (%p160) target = $region20
      $region19: #{discriminator_forward.9} parent=15 // pred_region
        %s163 = smul.u32 4, %s19
        %p164 = scmp.lt.s32.totalorder %s17, 0
        %s165 = scalar_select %p164, %s17, 0
        %p166 = scmp.lt.s32.totalorder %s163, 63
        %s167 = scalar_select %p166, %s163, 63
        %s168 = smul.addr %s165, 64
        %s169 = sadd.s32 %s167, %s168
        %s170 = smul.addr %s169, 4
        %s171 = scalar_lea.vmem %s0, %s170
        %s172 = smul.u32 4, %s19
      $region20: #{discriminator_forward.9} parent=15 // pred_fallthru
        _
      // Predicated region
      $region21: #{discriminator_forward.9} parent=15 // pred_check
        %p173 = pneg %p79
      $region22: #{discriminator_forward.9} parent=15 // pred_check_branch
        %175 = sbr.rel (%p173) target = $region24
      $region23: #{discriminator_forward.9} parent=15 // pred_region
        %s176 = smul.u32 64, %s19
        %p177 = scmp.lt.s32.totalorder %s176, 1023
        %s178 = scalar_select %p177, %s176, 1023
        %p179 = scmp.lt.s32.totalorder %s18, 0
        %s180 = scalar_select %p179, %s18, 0
        %s181 = sadd.s32 %s180, %s178
        %s182 = smul.addr %s181, 4
        %s183 = scalar_lea.vmem %s1, %s182
        %s184 = smul.u32 64, %s19
      $region24: #{discriminator_forward.9} parent=15 // pred_fallthru
        _
    $region16: #{discriminator_forward.9} parent=5 // pred_fallthru
      _
    %p185 = scmp.le.s32.totalorder 1, %s10
    %p186 = scmp.lt.s32.totalorder %s10, 17
    %p187 = pnand %p185, %p186
    %p188 = pneg %p187
    // Predicated region
    $region25: #{discriminator_forward.9} parent=5 // pred_check
      _
    $region26: #{discriminator_forward.9} parent=5 // pred_check_branch
      %190 = sbr.rel (%p187) target = $region28
    $region27: #{discriminator_forward.9} parent=5 // pred_region
      %s191 = ssub.s32 %s10, 1
      %s192 = smul.u32 4, %s22
      %p193 = scmp.lt.s32.totalorder %s20, 0
      %s194 = scalar_select %p193, %s20, 0
      %p195 = scmp.lt.s32.totalorder %s192, 63
      %s196 = scalar_select %p195, %s192, 63
      %s197 = smul.addr %s194, 64
      %s198 = sadd.s32 %s196, %s197
      %s199 = smul.addr %s198, 4
      %s200 = scalar_lea.vmem %s0, %s199
      %p201 = pneg %p57
      %p202 = pneg %p54
      %s203 = smul.u32 64, %s22
      %p204 = scmp.lt.s32.totalorder %s203, 1023
      %s205 = scalar_select %p204, %s203, 1023
      %p206 = scmp.lt.s32.totalorder %s21, 0
      %s207 = scalar_select %p206, %s21, 0
      %s208 = sadd.s32 %s207, %s205
      %s209 = smul.addr %s208, 4
      %s210 = scalar_lea.vmem %s1, %s209
      %p211 = pneg %p85
      %p212 = pneg %p82
      %p213 = pneg %p113
      %p214 = pneg %p110
      %p215 = scmp.lt.s32.totalorder %s20, 0
      %s216 = scalar_select %p215, %s20, 0
      %p217 = scmp.lt.s32.totalorder %s21, 0
      %s218 = scalar_select %p217, %s21, 0
      %s219 = sadd.s32 %s218, %s216
      %s220 = smul.addr %s219, 8
      %s221 = scalar_lea.vmem %s2, %s220
      %p222 = pneg %p141
      %p223 = pneg %p138
      %p224 = scmp.lt.s32.totalorder %s20, 0
      %s225 = scalar_select %p224, %s20, 0
      %p226 = scmp.lt.s32.totalorder %s21, 0
      %s227 = scalar_select %p226, %s21, 0
      %s228 = sadd.s32 %s227, %s225
      %s229 = smul.addr %s228, 8
      %s230 = scalar_lea.vmem %s3, %s229
      %s231 = smul.u32 4, %s22
      %p232 = scmp.lt.s32.totalorder %s20, 0
      %s233 = scalar_select %p232, %s20, 0
      %p234 = scmp.lt.s32.totalorder %s231, 63
      %s235 = scalar_select %p234, %s231, 63
      %s236 = smul.addr %s233, 64
      %s237 = sadd.s32 %s235, %s236
      %s238 = smul.addr %s237, 4
      %s239 = scalar_lea.vmem %s0, %s238
      %s240 = smul.u32 4, %s22
      %s241 = smul.u32 64, %s22
      %p242 = scmp.lt.s32.totalorder %s241, 1023
      %s243 = scalar_select %p242, %s241, 1023
      %p244 = scmp.lt.s32.totalorder %s21, 0
      %s245 = scalar_select %p244, %s21, 0
      %s246 = sadd.s32 %s245, %s243
      %s247 = smul.addr %s246, 4
      %s248 = scalar_lea.vmem %s1, %s247
      %s249 = smul.u32 64, %s22
      %p250 = scmp.lt.s32.totalorder %s20, 0
      %s251 = scalar_select %p250, %s20, 0
      %p252 = scmp.lt.s32.totalorder %s21, 0
      %s253 = scalar_select %p252, %s21, 0
      %s254 = sadd.s32 %s253, %s251
      %s255 = smul.addr %s254, 8
      %s256 = scalar_lea.vmem %s2, %s255
      %p257 = scmp.lt.s32.totalorder %s20, 0
      %s258 = scalar_select %p257, %s20, 0
      %p259 = scmp.lt.s32.totalorder %s21, 0
      %s260 = scalar_select %p259, %s21, 0
      %s261 = sadd.s32 %s260, %s258
      %s262 = smul.addr %s261, 8
      %s263 = scalar_lea.vmem %s3, %s262
      %p265 = scmp.eq.s32.totalorder %s22, 0
      // Predicated region
      $region29: #{discriminator_forward.9} parent=27 // pred_check
        %p266 = pneg %p265
      $region30: #{discriminator_forward.9} parent=27 // pred_check_branch
        %268 = sbr.rel (%p266) target = $region32
      $region31: #{discriminator_forward.9} parent=27 // pred_region
        %269 = vst [vmem:[#allocation2] sm:$0xff] 0.0
      $region32: #{discriminator_forward.9} parent=27 // pred_fallthru
        _
      %v270 = vld [vmem:[#allocation2] sm:$0xff]
      %v271 = vld [vmem:[%s239] sm:$0xff]
      %v272 = vld [vmem:[%s239 + $0x8] sm:$0xff]
      %v273 = vld [vmem:[%s248] sm:$0xf]
      %v274 = vld [vmem:[%s248 + $0x4] sm:$0xf]
      %v275 = vld [vmem:[%s248 + $0x8] sm:$0xf]
      %v276 = vld [vmem:[%s248 + $0xc] sm:$0xf]
      %v277 = vld [vmem:[%s248 + $0x10] sm:$0xf]
      %v278 = vld [vmem:[%s248 + $0x14] sm:$0xf]
      %v279 = vld [vmem:[%s248 + $0x18] sm:$0xf]
      %v280 = vld [vmem:[%s248 + $0x1c] sm:$0xf]
      %v281 = vld [vmem:[%s248 + $0x20] sm:$0xf]
      %v282 = vld [vmem:[%s248 + $0x24] sm:$0xf]
      %v283 = vld [vmem:[%s248 + $0x28] sm:$0xf]
      %v284 = vld [vmem:[%s248 + $0x2c] sm:$0xf]
      %v285 = vld [vmem:[%s248 + $0x30] sm:$0xf]
      %v286 = vld [vmem:[%s248 + $0x34] sm:$0xf]
      %v287 = vld [vmem:[%s248 + $0x38] sm:$0xf]
      %v288 = vld [vmem:[%s248 + $0x3c] sm:$0xf]
      %v289 = vld [vmem:[%s248 + $0x40] sm:$0xf]
      %v290 = vld [vmem:[%s248 + $0x44] sm:$0xf]
      %v291 = vld [vmem:[%s248 + $0x48] sm:$0xf]
      %v292 = vld [vmem:[%s248 + $0x4c] sm:$0xf]
      %v293 = vld [vmem:[%s248 + $0x50] sm:$0xf]
      %v294 = vld [vmem:[%s248 + $0x54] sm:$0xf]
      %v295 = vld [vmem:[%s248 + $0x58] sm:$0xf]
      %v296 = vld [vmem:[%s248 + $0x5c] sm:$0xf]
      %v297 = vld [vmem:[%s248 + $0x60] sm:$0xf]
      %v298 = vld [vmem:[%s248 + $0x64] sm:$0xf]
      %v299 = vld [vmem:[%s248 + $0x68] sm:$0xf]
      %v300 = vld [vmem:[%s248 + $0x6c] sm:$0xf]
      %v301 = vld [vmem:[%s248 + $0x70] sm:$0xf]
      %v302 = vld [vmem:[%s248 + $0x74] sm:$0xf]
      %v303 = vld [vmem:[%s248 + $0x78] sm:$0xf]
      %v304 = vld [vmem:[%s248 + $0x7c] sm:$0xf]
      %v305 = vld [vmem:[%s248 + $0x80] sm:$0xf]
      %v306 = vld [vmem:[%s248 + $0x84] sm:$0xf]
      %v307 = vld [vmem:[%s248 + $0x88] sm:$0xf]
      %v308 = vld [vmem:[%s248 + $0x8c] sm:$0xf]
      %v309 = vld [vmem:[%s248 + $0x90] sm:$0xf]
      %v310 = vld [vmem:[%s248 + $0x94] sm:$0xf]
      %v311 = vld [vmem:[%s248 + $0x98] sm:$0xf]
      %v312 = vld [vmem:[%s248 + $0x9c] sm:$0xf]
      %v313 = vld [vmem:[%s248 + $0xa0] sm:$0xf]
      %v314 = vld [vmem:[%s248 + $0xa4] sm:$0xf]
      %v315 = vld [vmem:[%s248 + $0xa8] sm:$0xf]
      %v316 = vld [vmem:[%s248 + $0xac] sm:$0xf]
      %v317 = vld [vmem:[%s248 + $0xb0] sm:$0xf]
      %v318 = vld [vmem:[%s248 + $0xb4] sm:$0xf]
      %v319 = vld [vmem:[%s248 + $0xb8] sm:$0xf]
      %v320 = vld [vmem:[%s248 + $0xbc] sm:$0xf]
      %v321 = vld [vmem:[%s248 + $0xc0] sm:$0xf]
      %v322 = vld [vmem:[%s248 + $0xc4] sm:$0xf]
      %v323 = vld [vmem:[%s248 + $0xc8] sm:$0xf]
      %v324 = vld [vmem:[%s248 + $0xcc] sm:$0xf]
      %v325 = vld [vmem:[%s248 + $0xd0] sm:$0xf]
      %v326 = vld [vmem:[%s248 + $0xd4] sm:$0xf]
      %v327 = vld [vmem:[%s248 + $0xd8] sm:$0xf]
      %v328 = vld [vmem:[%s248 + $0xdc] sm:$0xf]
      %v329 = vld [vmem:[%s248 + $0xe0] sm:$0xf]
      %v330 = vld [vmem:[%s248 + $0xe4] sm:$0xf]
      %v331 = vld [vmem:[%s248 + $0xe8] sm:$0xf]
      %v332 = vld [vmem:[%s248 + $0xec] sm:$0xf]
      %v333 = vld [vmem:[%s248 + $0xf0] sm:$0xf]
      %v334 = vld [vmem:[%s248 + $0xf4] sm:$0xf]
      %v335 = vld [vmem:[%s248 + $0xf8] sm:$0xf]
      %v336 = vld [vmem:[%s248 + $0xfc] sm:$0xf]
      %v339 = vunpack.c.l.b16 %v271
      %v340 = vunpack.c.h.b16 %v271
      %v341 = vunpack.c.l.b16 %v272
      %v342 = vunpack.c.h.b16 %v272
      %v343 = vpack.c.b16 %v339, %v339
      %v344 = vpack.c.b16 %v340, %v340
      %v345 = vpack.c.b16 %v341, %v341
      %v346 = vpack.c.b16 %v342, %v342
      %v415 = vunpack.c.l.b16 %v273
      %v416 = vunpack.c.l.b16 %v274
      %v417 = vunpack.c.l.b16 %v275
      %v418 = vunpack.c.l.b16 %v276
      %v419 = vunpack.c.l.b16 %v277
      %v420 = vunpack.c.l.b16 %v278
      %v421 = vunpack.c.l.b16 %v279
      %v422 = vunpack.c.l.b16 %v280
      %v423 = vunpack.c.l.b16 %v281
      %v424 = vunpack.c.l.b16 %v282
      %v425 = vunpack.c.l.b16 %v283
      %v426 = vunpack.c.l.b16 %v284
      %v427 = vunpack.c.l.b16 %v285
      %v428 = vunpack.c.l.b16 %v286
      %v429 = vunpack.c.l.b16 %v287
      %v430 = vunpack.c.l.b16 %v288
      %v431 = vunpack.c.l.b16 %v289
      %v432 = vunpack.c.l.b16 %v290
      %v433 = vunpack.c.l.b16 %v291
      %v434 = vunpack.c.l.b16 %v292
      %v435 = vunpack.c.l.b16 %v293
      %v436 = vunpack.c.l.b16 %v294
      %v437 = vunpack.c.l.b16 %v295
      %v438 = vunpack.c.l.b16 %v296
      %v439 = vunpack.c.l.b16 %v297
      %v440 = vunpack.c.l.b16 %v298
      %v441 = vunpack.c.l.b16 %v299
      %v442 = vunpack.c.l.b16 %v300
      %v443 = vunpack.c.l.b16 %v301
      %v444 = vunpack.c.l.b16 %v302
      %v445 = vunpack.c.l.b16 %v303
      %v446 = vunpack.c.l.b16 %v304
      %v447 = vunpack.c.l.b16 %v305
      %v448 = vunpack.c.l.b16 %v306
      %v449 = vunpack.c.l.b16 %v307
      %v450 = vunpack.c.l.b16 %v308
      %v451 = vunpack.c.l.b16 %v309
      %v452 = vunpack.c.l.b16 %v310
      %v453 = vunpack.c.l.b16 %v311
      %v454 = vunpack.c.l.b16 %v312
      %v455 = vunpack.c.l.b16 %v313
      %v456 = vunpack.c.l.b16 %v314
      %v457 = vunpack.c.l.b16 %v315
      %v458 = vunpack.c.l.b16 %v316
      %v459 = vunpack.c.l.b16 %v317
      %v460 = vunpack.c.l.b16 %v318
      %v461 = vunpack.c.l.b16 %v319
      %v462 = vunpack.c.l.b16 %v320
      %v463 = vunpack.c.l.b16 %v321
      %v464 = vunpack.c.l.b16 %v322
      %v465 = vunpack.c.l.b16 %v323
      %v466 = vunpack.c.l.b16 %v324
      %v467 = vunpack.c.l.b16 %v325
      %v468 = vunpack.c.l.b16 %v326
      %v469 = vunpack.c.l.b16 %v327
      %v470 = vunpack.c.l.b16 %v328
      %v471 = vunpack.c.l.b16 %v329
      %v472 = vunpack.c.l.b16 %v330
      %v473 = vunpack.c.l.b16 %v331
      %v474 = vunpack.c.l.b16 %v332
      %v475 = vunpack.c.l.b16 %v333
      %v476 = vunpack.c.l.b16 %v334
      %v477 = vunpack.c.l.b16 %v335
      %v478 = vunpack.c.l.b16 %v336
      %v479 = vpack.c.b16 %v416, %v415
      %v480 = vpack.c.b16 %v418, %v417
      %v481 = vpack.c.b16 %v420, %v419
      %v482 = vpack.c.b16 %v422, %v421
      %v483 = vpack.c.b16 %v424, %v423
      %v484 = vpack.c.b16 %v426, %v425
      %v485 = vpack.c.b16 %v428, %v427
      %v486 = vpack.c.b16 %v430, %v429
      %v487 = vpack.c.b16 %v432, %v431
      %v488 = vpack.c.b16 %v434, %v433
      %v489 = vpack.c.b16 %v436, %v435
      %v490 = vpack.c.b16 %v438, %v437
      %v491 = vpack.c.b16 %v440, %v439
      %v492 = vpack.c.b16 %v442, %v441
      %v493 = vpack.c.b16 %v444, %v443
      %v494 = vpack.c.b16 %v446, %v445
      %v495 = vpack.c.b16 %v448, %v447
      %v496 = vpack.c.b16 %v450, %v449
      %v497 = vpack.c.b16 %v452, %v451
      %v498 = vpack.c.b16 %v454, %v453
      %v499 = vpack.c.b16 %v456, %v455
      %v500 = vpack.c.b16 %v458, %v457
      %v501 = vpack.c.b16 %v460, %v459
      %v502 = vpack.c.b16 %v462, %v461
      %v503 = vpack.c.b16 %v464, %v463
      %v504 = vpack.c.b16 %v466, %v465
      %v505 = vpack.c.b16 %v468, %v467
      %v506 = vpack.c.b16 %v470, %v469
      %v507 = vpack.c.b16 %v472, %v471
      %v508 = vpack.c.b16 %v474, %v473
      %v509 = vpack.c.b16 %v476, %v475
      %v510 = vpack.c.b16 %v478, %v477
      %543 = vmatprep.subr.bf16.mxu0 0
      %544 = vmatpush1.bf16.msra.mxu0 %v479
      %545 = vmatprep.subr.bf16.mxu0 0
      %546 = vmatpush1.bf16.msra.mxu0 %v480
      %547 = vmatprep.subr.bf16.mxu0 0
      %548 = vmatpush1.bf16.msra.mxu0 %v481
      %549 = vmatprep.subr.bf16.mxu0 0
      %550 = vmatpush1.bf16.msra.mxu0 %v482
      %551 = vmatprep.subr.bf16.mxu0 0
      %552 = vmatpush1.bf16.msra.mxu0 %v483
      %553 = vmatprep.subr.bf16.mxu0 0
      %554 = vmatpush1.bf16.msra.mxu0 %v484
      %555 = vmatprep.subr.bf16.mxu0 0
      %556 = vmatpush1.bf16.msra.mxu0 %v485
      %557 = vmatprep.subr.bf16.mxu0 0
      %558 = vmatpush1.bf16.msra.mxu0 %v486
      %559 = vmatprep.subr.bf16.mxu0 0
      %560 = vmatpush1.bf16.msra.mxu0 %v487
      %561 = vmatprep.subr.bf16.mxu0 0
      %562 = vmatpush1.bf16.msra.mxu0 %v488
      %563 = vmatprep.subr.bf16.mxu0 0
      %564 = vmatpush1.bf16.msra.mxu0 %v489
      %565 = vmatprep.subr.bf16.mxu0 0
      %566 = vmatpush1.bf16.msra.mxu0 %v490
      %567 = vmatprep.subr.bf16.mxu0 0
      %568 = vmatpush1.bf16.msra.mxu0 %v491
      %569 = vmatprep.subr.bf16.mxu0 0
      %570 = vmatpush1.bf16.msra.mxu0 %v492
      %571 = vmatprep.subr.bf16.mxu0 0
      %572 = vmatpush1.bf16.msra.mxu0 %v493
      %573 = vmatprep.subr.bf16.mxu0 0
      %574 = vmatpush1.bf16.msra.mxu0 %v494
      %575 = vmatprep.mubr.bf16.mxu0 %v344
      %576 = vmatmul.mubr.bf16.gmra.mrb[0].mxu0 %v343
      %v577 = vpop.f32.mrb[0].mxu0
      %v578 = vadd.f32 0.0, %v577
      %v579 = vpop.f32.mrb[0].mxu0
      %v580 = vpop.f32.mrb[0].mxu0
      %v581 = vpop.f32.mrb[0].mxu0
      %582 = vdwg.mxu0
      %583 = vmatprep.subr.bf16.mxu0 0
      %584 = vmatpush1.bf16.msra.mxu0 %v495
      %585 = vmatprep.subr.bf16.mxu0 0
      %586 = vmatpush1.bf16.msra.mxu0 %v496
      %587 = vmatprep.subr.bf16.mxu0 0
      %588 = vmatpush1.bf16.msra.mxu0 %v497
      %589 = vmatprep.subr.bf16.mxu0 0
      %590 = vmatpush1.bf16.msra.mxu0 %v498
      %591 = vmatprep.subr.bf16.mxu0 0
      %592 = vmatpush1.bf16.msra.mxu0 %v499
      %593 = vmatprep.subr.bf16.mxu0 0
      %594 = vmatpush1.bf16.msra.mxu0 %v500
      %595 = vmatprep.subr.bf16.mxu0 0
      %596 = vmatpush1.bf16.msra.mxu0 %v501
      %597 = vmatprep.subr.bf16.mxu0 0
      %598 = vmatpush1.bf16.msra.mxu0 %v502
      %599 = vmatprep.subr.bf16.mxu0 0
      %600 = vmatpush1.bf16.msra.mxu0 %v503
      %601 = vmatprep.subr.bf16.mxu0 0
      %602 = vmatpush1.bf16.msra.mxu0 %v504
      %603 = vmatprep.subr.bf16.mxu0 0
      %604 = vmatpush1.bf16.msra.mxu0 %v505
      %605 = vmatprep.subr.bf16.mxu0 0
      %606 = vmatpush1.bf16.msra.mxu0 %v506
      %607 = vmatprep.subr.bf16.mxu0 0
      %608 = vmatpush1.bf16.msra.mxu0 %v507
      %609 = vmatprep.subr.bf16.mxu0 0
      %610 = vmatpush1.bf16.msra.mxu0 %v508
      %611 = vmatprep.subr.bf16.mxu0 0
      %612 = vmatpush1.bf16.msra.mxu0 %v509
      %613 = vmatprep.subr.bf16.mxu0 0
      %614 = vmatpush1.bf16.msra.mxu0 %v510
      %615 = vmatprep.mubr.bf16.mxu0 %v346
      %616 = vmatmul.mubr.bf16.gmra.mrb[0].mxu0 %v345
      %v617 = vpop.f32.mrb[0].mxu0
      %v618 = vadd.f32 %v578, %v617
      %v619 = vpop.f32.mrb[0].mxu0
      %v620 = vpop.f32.mrb[0].mxu0
      %v621 = vpop.f32.mrb[0].mxu0
      %622 = vdwg.mxu0
      %v623 = vadd.f32 %v270, %v618
      %624 = vst [vmem:[#allocation2] sm:$0xff] %v623
      %p625 = scmp.eq.s32.totalorder %s22, 15
      // Predicated region
      $region33: #{discriminator_forward.9} parent=27 // pred_check
        %p626 = pneg %p625
      $region34: #{discriminator_forward.9} parent=27 // pred_check_branch
        %628 = sbr.rel (%p626) target = $region36
      $region35: #{discriminator_forward.9} parent=27 // pred_region
        %v629 = vld [vmem:[#allocation2] sm:$0xff]
        %630 = vst [vmem:[%s256] sm:$0xff] %v629
        %v631 = vmul.f32 %v629, 0.5
        %v632 = vtanh.pop %v631
        %v633 = vadd.f32 %v632, 1.0
        %v634 = vmul.f32 %v633, 0.5
        %635 = vst [vmem:[%s263] sm:$0xff] %v634
      $region36: #{discriminator_forward.9} parent=27 // pred_fallthru
        _
      %p636 = scmp.lt.s32.totalorder %s20, 0
      %s637 = scalar_select %p636, %s20, 0
      %p638 = scmp.lt.s32.totalorder %s21, 0
      %s639 = scalar_select %p638, %s21, 0
      %s640 = sadd.s32 %s639, %s637
      %s641 = smul.addr %s640, 8
      %s642 = scalar_lea.vmem %s2, %s641
      %p643 = scmp.lt.s32.totalorder %s20, 0
      %s644 = scalar_select %p643, %s20, 0
      %p645 = scmp.lt.s32.totalorder %s21, 0
      %s646 = scalar_select %p645, %s21, 0
      %s647 = sadd.s32 %s646, %s644
      %s648 = smul.addr %s647, 8
      %s649 = scalar_lea.vmem %s3, %s648
      // Predicated region
      $region37: #{discriminator_forward.9} parent=27 // pred_check
        %p650 = pneg %p110
      $region38: #{discriminator_forward.9} parent=27 // pred_check_branch
        %652 = sbr.rel (%p650) target = $region40
      $region39: #{discriminator_forward.9} parent=27 // pred_region
        _
      $region40: #{discriminator_forward.9} parent=27 // pred_fallthru
        _
      // Predicated region
      $region41: #{discriminator_forward.9} parent=27 // pred_check
        %p653 = pneg %p138
      $region42: #{discriminator_forward.9} parent=27 // pred_check_branch
        %655 = sbr.rel (%p653) target = $region44
      $region43: #{discriminator_forward.9} parent=27 // pred_region
        _
      $region44: #{discriminator_forward.9} parent=27 // pred_fallthru
        _
      // Predicated region
      $region45: #{discriminator_forward.9} parent=27 // pred_check
        %p656 = pneg %p110
      $region46: #{discriminator_forward.9} parent=27 // pred_check_branch
        %658 = sbr.rel (%p656) target = $region48
      $region47: #{discriminator_forward.9} parent=27 // pred_region
        %p659 = scmp.lt.s32.totalorder %s20, 0
        %s660 = scalar_select %p659, %s20, 0
        %p661 = scmp.lt.s32.totalorder %s21, 0
        %s662 = scalar_select %p661, %s21, 0
        %s663 = sadd.s32 %s662, %s660
        %s664 = smul.addr %s663, 8
        %s665 = scalar_lea.vmem %s2, %s664
      $region48: #{discriminator_forward.9} parent=27 // pred_fallthru
        _
      // Predicated region
      $region49: #{discriminator_forward.9} parent=27 // pred_check
        %p666 = pneg %p138
      $region50: #{discriminator_forward.9} parent=27 // pred_check_branch
        %668 = sbr.rel (%p666) target = $region52
      $region51: #{discriminator_forward.9} parent=27 // pred_region
        %p669 = scmp.lt.s32.totalorder %s20, 0
        %s670 = scalar_select %p669, %s20, 0
        %p671 = scmp.lt.s32.totalorder %s21, 0
        %s672 = scalar_select %p671, %s21, 0
        %s673 = sadd.s32 %s672, %s670
        %s674 = smul.addr %s673, 8
        %s675 = scalar_lea.vmem %s3, %s674
      $region52: #{discriminator_forward.9} parent=27 // pred_fallthru
        _
    $region28: #{discriminator_forward.9} parent=5 // pred_fallthru
      _
    %p676 = scmp.le.s32.totalorder 2, %s10
    // Predicated region
    $region53: #{discriminator_forward.9} parent=5 // pred_check
      %p677 = pneg %p676
    $region54: #{discriminator_forward.9} parent=5 // pred_check_branch
      %679 = sbr.rel (%p677) target = $region56
    $region55: #{discriminator_forward.9} parent=5 // pred_region
      %s680 = ssub.s32 %s10, 2
    $region56: #{discriminator_forward.9} parent=5 // pred_fallthru
      _
  $region6: #{discriminator_forward.9} parent=0 // loop_footer
    %s14 = sadd.s32 1, %s10
  $region7: #{discriminator_forward.9} parent=0 // loop_footer_branch
    %9 = sbr.rel target = $region3
  $region8: #{discriminator_forward.9} parent=0 // loop_exit
    _

</llo_original>
